<compile_context>
chip_gen: v7x
topology: tpu7x:2x2x1
jax: 0.10.0
libtpu: 0.0.40
codegen_flags: <defaults>
</compile_context>

<pallas_src>
import jax
import jax.numpy as jnp
import numpy as np
from jax.experimental import pallas as pl
from jax.experimental.pallas import tpu as pltpu


# ------------------------------ Pallas kernel ------------------------------

def _make_pointnet_kernel(*, c_in, group, tile_n, n_valid, emb):
    """Builds the kernel body with static config baked in."""
    needs_mask = (n_valid % tile_n) != 0     # true iff padded columns exist
    n_chunks = tile_n // 128

    def kernel(x_ref,
               w1_ref, b1_ref, w2_ref, b2_ref, w3_ref, b3_ref,
               w4_ref, b4_ref, w5_ref, b5_ref,
               w6t_ref, shift6_ref, w7t_ref, bias7_ref,
               out_ref, acc_ref):
        """One grid step = (batch-group bg, point-tile t).

        x_ref     : (G, C_in, TN)   input tile, NCL layout, points on lanes
        w*_ref    : (C_out, C_in)   BN-scale-folded conv weights (bf16 on MXU
                                    layers, f32 for the tiny first layer)
        b*_ref    : (C_out, 1)      folded BN shift (f32)
        w6t_ref   : (emb, 256)      linear1 weight, BN6-scaled, transposed, bf16
        shift6_ref: (1, 256)        BN6 shift (f32)
        w7t_ref   : (256, out_c)    linear2 weight, transposed, bf16
        bias7_ref : (1, out_c)      linear2 bias (f32)
        out_ref   : (1, G, out_c)   written only on the last point tile
        acc_ref   : (G, emb, 128) f32  lane-wide running max (VMEM scratch)

        Correctness of acc_ref relies on the grid order (bg outer, t inner)
        and on the t == 0 reinitialization.
        """
        t = pl.program_id(1)

        @pl.when(t == 0)
        def _():
            # -inf init is safe: the final head reduce takes the max over all
            # 128 accumulator lanes, and every batch has >= 1 valid column.
            acc_ref[...] = jnp.full(acc_ref.shape, -jnp.inf, acc_ref.dtype)

        if needs_mask:
            col = t * tile_n + jax.lax.broadcasted_iota(
                jnp.int32, (1, tile_n), 1)
            valid = col < n_valid            # (1, TN) - padded cols are False

        def mm_shift_relu(w_ref, b_ref, hh):
            # bf16 MXU matmul, f32 accumulate + shift + ReLU, bf16 epilogue.
            y = jnp.dot(w_ref[...], hh, preferred_element_type=jnp.float32)
            return jnp.maximum(y + b_ref[...], 0.0).astype(jnp.bfloat16)

        for g in range(group):
            x = x_ref[g]                                   # (C_in, TN) f32

            # ---- layer 1 (BN1 scale folded into w1) -------------------------
            if c_in <= 8:
                # K is tiny: VPU broadcast multiply-adds; keep the MXU free.
                w1 = w1_ref[...]                           # (64, C_in) f32
                y1 = w1[:, 0:1] * x[0:1, :]
                for c in range(1, c_in):
                    y1 = y1 + w1[:, c:c + 1] * x[c:c + 1, :]
            else:
                y1 = jnp.dot(w1_ref[...], x.astype(jnp.bfloat16),
                             preferred_element_type=jnp.float32)
            h = jnp.maximum(y1 + b1_ref[...], 0.0).astype(jnp.bfloat16)

            # ---- layers 2..5 ------------------------------------------------
            h = mm_shift_relu(w2_ref, b2_ref, h)           # (64, TN)
            h = mm_shift_relu(w3_ref, b3_ref, h)           # (64, TN)
            h = mm_shift_relu(w4_ref, b4_ref, h)           # (128, TN)
            h = mm_shift_relu(w5_ref, b5_ref, h)           # (emb, TN)

            if needs_mask:
                # Padded columns are ReLU(0*W + shift) > 0 possibly; mask them.
                h = jnp.where(valid, h, jnp.asarray(-jnp.inf, h.dtype))

            # ---- lane-wide running max (VPU only; XLU reduce deferred) ------
            m = h[:, 0:128]
            for kk in range(1, n_chunks):
                m = jnp.maximum(m, h[:, kk * 128:(kk + 1) * 128])
            acc_ref[g] = jnp.maximum(acc_ref[g], m.astype(jnp.float32))

        # ---- head, fused into the last point tile of this batch group ------
        @pl.when(t == pl.num_programs(1) - 1)
        def _():
            pooled = jnp.max(acc_ref[...], axis=2)          # (G, emb) f32
            h6 = jnp.dot(pooled.astype(jnp.bfloat16), w6t_ref[...],
                         preferred_element_type=jnp.float32)  # (G, 256)
            h6 = jnp.maximum(h6 + shift6_ref[...], 0.0)
            # TODO(synk): nn.Dropout(p=0.5) training-mode masking not
            # implemented; eval-mode dropout is identity (inference path).
            out = jnp.dot(h6.astype(jnp.bfloat16), w7t_ref[...],
                          preferred_element_type=jnp.float32) + bias7_ref[...]
            out_ref[0] = out                                 # (G, out_c)

    return kernel


# ------------------------- Tiling / VMEM budgeting ---------------------------

def _pick_tiling(B, C_in, N, emb, out_c):
    """Choose (batch group G, padded N, tile_n, vmem_limit_bytes)."""
    # Multi-batch blocking only pays off when per-batch point work is small.
    if N <= 1024:
        group = max(g for g in range(1, min(B, 8) + 1) if B % g == 0)
    else:
        group = 1

    n_pad = ((N + 127) // 128) * 128
    chan_sum = 64 + 64 + 64 + 128 + emb

    def live_bytes(tn):
        act = group * chan_sum * tn * (2 + 4)   # bf16 activations + f32 mm acc
        inp = 2 * group * C_in * tn * 4         # double-buffered f32 input tile
        scratch = group * emb * 128 * 4         # lane-wide running max
        wts = 2 * 2 * (64 * C_in + 2 * 64 * 64 + 64 * 128 + 128 * emb
                       + emb * 256 + 256 * max(out_c, 128))
        return act + inp + scratch + wts

    budget = 36 * 1024 * 1024                   # safe even on v7x (64 MiB phys)
    tile_n = 128
    for cand in (n_pad, 8192, 4096, 2048, 1024, 512, 256, 128):
        if cand <= n_pad and n_pad % cand == 0 and live_bytes(cand) <= budget:
            tile_n = cand
            break

    vmem_limit = int(min(48 * 1024 * 1024,
                         max(32 * 1024 * 1024, 1.5 * live_bytes(tile_n))))
    return group, n_pad, tile_n, vmem_limit


# -------------------------------- Wrapper ------------------------------------

def _const_spec(arr):
    zeros = (0,) * arr.ndim
    return pl.BlockSpec(arr.shape, lambda bg, t, _z=zeros: _z)


def pointnet_pallas(x, prep, *, tile_n=None, group=None):
    """x: (B, C_in, N) in the original PyTorch NCL layout -> (B, out_c)."""
    B, C_in, N = x.shape
    emb = prep["conv_w"][-1].shape[0]
    out_c = prep["w7t"].shape[1]

    g_sel, n_pad, tn_sel, vmem_limit = _pick_tiling(B, C_in, N, emb, out_c)
    if group is None:
        group = g_sel
    if tile_n is None:
        tile_n = tn_sel
    assert B % group == 0
    assert n_pad % tile_n == 0 and tile_n % 128 == 0

    xf = x.astype(jnp.float32)
    if n_pad != N:
        xf = jnp.pad(xf, ((0, 0), (0, 0), (0, n_pad - N)))

    kernel = _make_pointnet_kernel(c_in=C_in, group=group, tile_n=tile_n,
                                   n_valid=N, emb=emb)

    in_specs = [pl.BlockSpec((group, C_in, tile_n), lambda bg, t: (bg, 0, t))]
    args = [xf]
    for w, s in zip(prep["conv_w"], prep["conv_shift"]):
        in_specs += [_const_spec(w), _const_spec(s)]
        args += [w, s]
    for a in (prep["w6t"], prep["shift6"], prep["w7t"], prep["bias7"]):
        in_specs.append(_const_spec(a))
        args.append(a)

    grid_spec = pltpu.PrefetchScalarGridSpec(
        num_scalar_prefetch=0,
        grid=(B // group, n_pad // tile_n),
        in_specs=in_specs,
        out_specs=pl.BlockSpec((1, group, out_c), lambda bg, t: (bg, 0, 0)),
        scratch_shapes=[pltpu.VMEM((group, emb, 128), jnp.float32)],
    )

    out = pl.pallas_call(
        kernel,
        out_shape=jax.ShapeDtypeStruct((B // group, group, out_c), jnp.float32),
        grid_spec=grid_spec,
        compiler_params=pltpu.CompilerParams(
            dimension_semantics=("parallel", "arbitrary"),
            vmem_limit_bytes=vmem_limit),
    )(*args)
    return out.reshape(B, out_c)


@jax.jit
def pointnet_forward(x_ncl, prep):
    return pointnet_pallas(x_ncl, prep)


# --------------------------- Parameter construction -------------------------

def _bn_raw(c):
    """Deterministic, non-trivial inference-mode BatchNorm parameters."""
    idx = np.arange(c, dtype=np.float32)
    gamma = 1.0 + 0.01 * idx
    beta = 0.02 * idx - 0.1
    mean = 0.01 * (idx - c / 2.0)
    var = 1.0 + 0.05 * (idx % 7)
    return tuple(jnp.asarray(a) for a in (gamma, beta, mean, var))


def make_raw_params(inp_channel, emb_dims, output_channels, key):
    """PyTorch-layout parameters: conv/linear weights are (C_out, C_in)."""
    dims = [inp_channel, 64, 64, 64, 128, emb_dims]
    keys = jax.random.split(key, 8)
    conv_w = [0.1 * jax.random.normal(keys[i], (dims[i + 1], dims[i]),
                                      jnp.float32) for i in range(5)]
    conv_bn = [_bn_raw(dims[i + 1]) for i in range(5)]
    w6 = 0.1 * jax.random.normal(keys[5], (256, emb_dims), jnp.float32)
    bn6 = _bn_raw(256)
    w7 = 0.1 * jax.random.normal(keys[6], (output_channels, 256), jnp.float32)
    b7 = 0.05 * jax.random.normal(keys[7], (output_channels,), jnp.float32)
    return {"conv_w": conv_w, "conv_bn": conv_bn, "w6": w6, "bn6": bn6,
            "w7": w7, "b7": b7}


def prepare_params(raw, eps=1e-5):
    """Fold eval-mode BN scale into weights; cast MXU-layer weights to bf16.

    Head weights are stored pre-transposed ((emb,256) / (256,out_c)) so the
    head runs as (G, emb) @ (emb, 256) @ (256, out_c) with no in-kernel
    transpose and a (G, out_c) row-major output.
    """
    conv_w, conv_shift = [], []
    for w, (g, b, m, v) in zip(raw["conv_w"], raw["conv_bn"]):
        scale = g / jnp.sqrt(v + eps)
        shift = (b - m * scale).reshape(-1, 1).astype(jnp.float32)
        wf = w * scale[:, None]
        # Layer with tiny K stays f32 (VPU broadcast-MAC path in the kernel).
        wf = wf.astype(jnp.float32 if w.shape[1] <= 8 else jnp.bfloat16)
        conv_w.append(wf)
        conv_shift.append(shift)
    g6, b6, m6, v6 = raw["bn6"]
    s6 = g6 / jnp.sqrt(v6 + eps)
    shift6 = (b6 - m6 * s6).reshape(1, -1).astype(jnp.float32)     # (1, 256)
    w6t = (raw["w6"] * s6[:, None]).T.astype(jnp.bfloat16)         # (emb, 256)
    w7t = raw["w7"].T.astype(jnp.bfloat16)                         # (256, out_c)
    bias7 = raw["b7"].reshape(1, -1).astype(jnp.float32)           # (1, out_c)
    return {"conv_w": conv_w, "conv_shift": conv_shift,
            "w6t": w6t, "shift6": shift6, "w7t": w7t, "bias7": bias7}


# ------------------------------ Pure-JAX reference ---------------------------
# Mirrors the kernel's deployed mixed-precision math (bf16 matmul operands and
# bf16 inter-layer activations, f32 accumulation, f32 elementwise) so the
# check is tight and meaningful.

def reference_forward(x_ncl, prep):
    h = x_ncl.astype(jnp.float32)                                  # (B, C, N)
    for w, s in zip(prep["conv_w"], prep["conv_shift"]):
        hh = h.astype(jnp.bfloat16) if w.dtype == jnp.bfloat16 else h
        y = jnp.einsum("oc,bcn->bon", w, hh,
                       preferred_element_type=jnp.float32)
        h = jnp.maximum(y + s[None, :, :], 0.0).astype(jnp.bfloat16)
    pooled = jnp.max(h, axis=2)                                    # (B, emb) bf16
    h6 = jnp.dot(pooled, prep["w6t"], preferred_element_type=jnp.float32)
    h6 = jnp.maximum(h6 + prep["shift6"], 0.0)
    out = jnp.dot(h6.astype(jnp.bfloat16), prep["w7t"],
                  preferred_element_type=jnp.float32)
    return out + prep["bias7"]


# ----------------------------------- Main ------------------------------------

if __name__ == "__main__":
    B, C_IN, N_POINTS = 2, 3, 256
    EMB_DIMS, OUT_CHANNELS = 128, 16

    root = jax.random.PRNGKey(0)
    k_x, k_p = jax.random.split(root)
    x = jax.random.normal(k_x, (B, C_IN, N_POINTS), jnp.float32)   # (B, C, L)
    raw = make_raw_params(C_IN, EMB_DIMS, OUT_CHANNELS, k_p)
    prep = prepare_params(raw)

    out = jax.block_until_ready(pointnet_forward(x, prep))
    ref = jax.block_until_ready(reference_forward(x, prep))

    np.testing.assert_allclose(np.asarray(out), np.asarray(ref),
                               rtol=5e-3, atol=5e-3)
    assert out.shape == (B, OUT_CHANNELS)
    print("KERNEL_OK")
</pallas_src>

<mosaic_0001>
module attributes {stable_mosaic.version = 11 : i64} {
  func.func @kernel(%arg0: i32, %arg1: i32, %arg2: memref<2x3x256xf32, #tpu.memory_space<vmem>>, %arg3: memref<64x3xf32, #tpu.memory_space<vmem>>, %arg4: memref<64x1xf32, #tpu.memory_space<vmem>>, %arg5: memref<64x64xbf16, #tpu.memory_space<vmem>>, %arg6: memref<64x1xf32, #tpu.memory_space<vmem>>, %arg7: memref<64x64xbf16, #tpu.memory_space<vmem>>, %arg8: memref<64x1xf32, #tpu.memory_space<vmem>>, %arg9: memref<128x64xbf16, #tpu.memory_space<vmem>>, %arg10: memref<128x1xf32, #tpu.memory_space<vmem>>, %arg11: memref<128x128xbf16, #tpu.memory_space<vmem>>, %arg12: memref<128x1xf32, #tpu.memory_space<vmem>>, %arg13: memref<128x256xbf16, #tpu.memory_space<vmem>>, %arg14: memref<1x256xf32, #tpu.memory_space<vmem>>, %arg15: memref<256x16xbf16, #tpu.memory_space<vmem>>, %arg16: memref<1x16xf32, #tpu.memory_space<vmem>>, %arg17: memref<1x2x16xf32, #tpu.memory_space<vmem>>, %arg18: memref<2x128x128xf32, #tpu.memory_space<vmem>>) attributes {dimension_semantics = [#tpu.dimension_semantics<parallel>, #tpu.dimension_semantics<arbitrary>], iteration_bounds = array<i64: 1, 1>, scalar_prefetch = 0 : i64, scratch_operands = 1 : i64, tpu.core_type = #tpu.core_type<tc>, window_params = [{transform_indices = @transform_0, window_bounds = array<i64: 2, 3, 256>}, {pipeline_mode = #tpu.pipeline_mode<synchronous>, transform_indices = @transform_1, window_bounds = array<i64: 64, 3>}, {pipeline_mode = #tpu.pipeline_mode<synchronous>, transform_indices = @transform_2, window_bounds = array<i64: 64, 1>}, {pipeline_mode = #tpu.pipeline_mode<synchronous>, transform_indices = @transform_3, window_bounds = array<i64: 64, 64>}, {pipeline_mode = #tpu.pipeline_mode<synchronous>, transform_indices = @transform_4, window_bounds = array<i64: 64, 1>}, {pipeline_mode = #tpu.pipeline_mode<synchronous>, transform_indices = @transform_5, window_bounds = array<i64: 64, 64>}, {pipeline_mode = #tpu.pipeline_mode<synchronous>, transform_indices = @transform_6, window_bounds = array<i64: 64, 1>}, {pipeline_mode = #tpu.pipeline_mode<synchronous>, transform_indices = @transform_7, window_bounds = array<i64: 128, 64>}, {pipeline_mode = #tpu.pipeline_mode<synchronous>, transform_indices = @transform_8, window_bounds = array<i64: 128, 1>}, {pipeline_mode = #tpu.pipeline_mode<synchronous>, transform_indices = @transform_9, window_bounds = array<i64: 128, 128>}, {pipeline_mode = #tpu.pipeline_mode<synchronous>, transform_indices = @transform_10, window_bounds = array<i64: 128, 1>}, {pipeline_mode = #tpu.pipeline_mode<synchronous>, transform_indices = @transform_11, window_bounds = array<i64: 128, 256>}, {pipeline_mode = #tpu.pipeline_mode<synchronous>, transform_indices = @transform_12, window_bounds = array<i64: 1, 256>}, {pipeline_mode = #tpu.pipeline_mode<synchronous>, transform_indices = @transform_13, window_bounds = array<i64: 256, 16>}, {pipeline_mode = #tpu.pipeline_mode<synchronous>, transform_indices = @transform_14, window_bounds = array<i64: 1, 16>}, {transform_indices = @transform_15, window_bounds = array<i64: 1, 2, 16>}]} {
    %c0_i32 = arith.constant 0 : i32
    %0 = arith.cmpi eq, %arg1, %c0_i32 : i32
    %1 = arith.extui %0 : i1 to i32
    %c0_i32_0 = arith.constant 0 : i32
    %2 = arith.cmpi ne, %1, %c0_i32_0 : i32
    scf.if %2 {
      %cst_76 = arith.constant 0xFF800000 : f32
      %142 = vector.broadcast %cst_76 : f32 to vector<2x128x128xf32>
      %c0_77 = arith.constant 0 : index
      %c0_78 = arith.constant 0 : index
      %c0_79 = arith.constant 0 : index
      %143 = vector.load %arg18[%c0_77, %c0_78, %c0_79] : memref<2x128x128xf32, #tpu.memory_space<vmem>>, vector<2x128x128xf32>
      tpu.vector_store %arg18[%c0_77, %c0_78, %c0_79], %142 {strides = array<i32>} : memref<2x128x128xf32, #tpu.memory_space<vmem>>, vector<2x128x128xf32>,
    } else {
    }
    %c0 = arith.constant 0 : index
    %c0_1 = arith.constant 0 : index
    %c0_2 = arith.constant 0 : index
    %3 = vector.load %arg2[%c0, %c0_1, %c0_2] : memref<2x3x256xf32, #tpu.memory_space<vmem>>, vector<1x3x256xf32>
    %4 = vector.shape_cast %3 : vector<1x3x256xf32> to vector<3x256xf32>
    %c0_3 = arith.constant 0 : index
    %c0_4 = arith.constant 0 : index
    %5 = vector.load %arg3[%c0_3, %c0_4] : memref<64x3xf32, #tpu.memory_space<vmem>>, vector<64x3xf32>
    %6 = vector.extract_strided_slice %5 {offsets = [0, 0], sizes = [64, 1], strides = [1, 1]} : vector<64x3xf32> to vector<64x1xf32>
    %7 = vector.extract_strided_slice %4 {offsets = [0, 0], sizes = [1, 256], strides = [1, 1]} : vector<3x256xf32> to vector<1x256xf32>
    %8 = vector.broadcast %6 : vector<64x1xf32> to vector<64x256xf32>
    %9 = vector.broadcast %7 : vector<1x256xf32> to vector<64x256xf32>
    %10 = arith.mulf %8, %9 : vector<64x256xf32>
    %11 = vector.extract_strided_slice %5 {offsets = [0, 1], sizes = [64, 1], strides = [1, 1]} : vector<64x3xf32> to vector<64x1xf32>
    %12 = vector.extract_strided_slice %4 {offsets = [1, 0], sizes = [1, 256], strides = [1, 1]} : vector<3x256xf32> to vector<1x256xf32>
    %13 = vector.broadcast %11 : vector<64x1xf32> to vector<64x256xf32>
    %14 = vector.broadcast %12 : vector<1x256xf32> to vector<64x256xf32>
    %15 = arith.mulf %13, %14 : vector<64x256xf32>
    %16 = arith.addf %10, %15 : vector<64x256xf32>
    %17 = vector.extract_strided_slice %5 {offsets = [0, 2], sizes = [64, 1], strides = [1, 1]} : vector<64x3xf32> to vector<64x1xf32>
    %18 = vector.extract_strided_slice %4 {offsets = [2, 0], sizes = [1, 256], strides = [1, 1]} : vector<3x256xf32> to vector<1x256xf32>
    %19 = vector.broadcast %17 : vector<64x1xf32> to vector<64x256xf32>
    %20 = vector.broadcast %18 : vector<1x256xf32> to vector<64x256xf32>
    %21 = arith.mulf %19, %20 : vector<64x256xf32>
    %22 = arith.addf %16, %21 : vector<64x256xf32>
    %c0_5 = arith.constant 0 : index
    %c0_6 = arith.constant 0 : index
    %23 = vector.load %arg4[%c0_5, %c0_6] : memref<64x1xf32, #tpu.memory_space<vmem>>, vector<64x1xf32>
    %24 = vector.broadcast %23 : vector<64x1xf32> to vector<64x256xf32>
    %25 = arith.addf %22, %24 : vector<64x256xf32>
    %cst = arith.constant 0.000000e+00 : f32
    %26 = vector.broadcast %cst : f32 to vector<64x256xf32>
    %27 = arith.maximumf %25, %26 : vector<64x256xf32>
    %28 = arith.truncf %27 : vector<64x256xf32> to vector<64x256xbf16>
    %c0_7 = arith.constant 0 : index
    %c0_8 = arith.constant 0 : index
    %29 = vector.load %arg5[%c0_7, %c0_8] : memref<64x64xbf16, #tpu.memory_space<vmem>>, vector<64x64xbf16>
    %cst_9 = arith.constant dense<0.000000e+00> : vector<64x256xf32>
    %30 = tpu.matmul %29, %28, %cst_9 {dimension_numbers = #tpu.dot_dimension_numbers<[1], [0], [0], [1], [0, 0, 1, 1], [], []>} : vector<64x64xbf16>, vector<64x256xbf16>, vector<64x256xf32> -> vector<64x256xf32>
    %c0_10 = arith.constant 0 : index
    %c0_11 = arith.constant 0 : index
    %31 = vector.load %arg6[%c0_10, %c0_11] : memref<64x1xf32, #tpu.memory_space<vmem>>, vector<64x1xf32>
    %32 = vector.broadcast %31 : vector<64x1xf32> to vector<64x256xf32>
    %33 = arith.addf %30, %32 : vector<64x256xf32>
    %cst_12 = arith.constant 0.000000e+00 : f32
    %34 = vector.broadcast %cst_12 : f32 to vector<64x256xf32>
    %35 = arith.maximumf %33, %34 : vector<64x256xf32>
    %36 = arith.truncf %35 : vector<64x256xf32> to vector<64x256xbf16>
    %c0_13 = arith.constant 0 : index
    %c0_14 = arith.constant 0 : index
    %37 = vector.load %arg7[%c0_13, %c0_14] : memref<64x64xbf16, #tpu.memory_space<vmem>>, vector<64x64xbf16>
    %cst_15 = arith.constant dense<0.000000e+00> : vector<64x256xf32>
    %38 = tpu.matmul %37, %36, %cst_15 {dimension_numbers = #tpu.dot_dimension_numbers<[1], [0], [0], [1], [0, 0, 1, 1], [], []>} : vector<64x64xbf16>, vector<64x256xbf16>, vector<64x256xf32> -> vector<64x256xf32>
    %c0_16 = arith.constant 0 : index
    %c0_17 = arith.constant 0 : index
    %39 = vector.load %arg8[%c0_16, %c0_17] : memref<64x1xf32, #tpu.memory_space<vmem>>, vector<64x1xf32>
    %40 = vector.broadcast %39 : vector<64x1xf32> to vector<64x256xf32>
    %41 = arith.addf %38, %40 : vector<64x256xf32>
    %cst_18 = arith.constant 0.000000e+00 : f32
    %42 = vector.broadcast %cst_18 : f32 to vector<64x256xf32>
    %43 = arith.maximumf %41, %42 : vector<64x256xf32>
    %44 = arith.truncf %43 : vector<64x256xf32> to vector<64x256xbf16>
    %c0_19 = arith.constant 0 : index
    %c0_20 = arith.constant 0 : index
    %45 = vector.load %arg9[%c0_19, %c0_20] : memref<128x64xbf16, #tpu.memory_space<vmem>>, vector<128x64xbf16>
    %cst_21 = arith.constant dense<0.000000e+00> : vector<128x256xf32>
    %46 = tpu.matmul %45, %44, %cst_21 {dimension_numbers = #tpu.dot_dimension_numbers<[1], [0], [0], [1], [0, 0, 1, 1], [], []>} : vector<128x64xbf16>, vector<64x256xbf16>, vector<128x256xf32> -> vector<128x256xf32>
    %c0_22 = arith.constant 0 : index
    %c0_23 = arith.constant 0 : index
    %47 = vector.load %arg10[%c0_22, %c0_23] : memref<128x1xf32, #tpu.memory_space<vmem>>, vector<128x1xf32>
    %48 = vector.broadcast %47 : vector<128x1xf32> to vector<128x256xf32>
    %49 = arith.addf %46, %48 : vector<128x256xf32>
    %cst_24 = arith.constant 0.000000e+00 : f32
    %50 = vector.broadcast %cst_24 : f32 to vector<128x256xf32>
    %51 = arith.maximumf %49, %50 : vector<128x256xf32>
    %52 = arith.truncf %51 : vector<128x256xf32> to vector<128x256xbf16>
    %c0_25 = arith.constant 0 : index
    %c0_26 = arith.constant 0 : index
    %53 = vector.load %arg11[%c0_25, %c0_26] : memref<128x128xbf16, #tpu.memory_space<vmem>>, vector<128x128xbf16>
    %cst_27 = arith.constant dense<0.000000e+00> : vector<128x256xf32>
    %54 = tpu.matmul %53, %52, %cst_27 {dimension_numbers = #tpu.dot_dimension_numbers<[1], [0], [0], [1], [0, 0, 1, 1], [], []>} : vector<128x128xbf16>, vector<128x256xbf16>, vector<128x256xf32> -> vector<128x256xf32>
    %c0_28 = arith.constant 0 : index
    %c0_29 = arith.constant 0 : index
    %55 = vector.load %arg12[%c0_28, %c0_29] : memref<128x1xf32, #tpu.memory_space<vmem>>, vector<128x1xf32>
    %56 = vector.broadcast %55 : vector<128x1xf32> to vector<128x256xf32>
    %57 = arith.addf %54, %56 : vector<128x256xf32>
    %cst_30 = arith.constant 0.000000e+00 : f32
    %58 = vector.broadcast %cst_30 : f32 to vector<128x256xf32>
    %59 = arith.maximumf %57, %58 : vector<128x256xf32>
    %60 = arith.truncf %59 : vector<128x256xf32> to vector<128x256xbf16>
    %61 = vector.extract_strided_slice %60 {offsets = [0, 0], sizes = [128, 128], strides = [1, 1]} : vector<128x256xbf16> to vector<128x128xbf16>
    %62 = vector.extract_strided_slice %60 {offsets = [0, 128], sizes = [128, 128], strides = [1, 1]} : vector<128x256xbf16> to vector<128x128xbf16>
    %63 = arith.maximumf %61, %62 : vector<128x128xbf16>
    %c0_31 = arith.constant 0 : index
    %c0_32 = arith.constant 0 : index
    %c0_33 = arith.constant 0 : index
    %64 = vector.load %arg18[%c0_31, %c0_32, %c0_33] : memref<2x128x128xf32, #tpu.memory_space<vmem>>, vector<1x128x128xf32>
    %65 = vector.shape_cast %64 : vector<1x128x128xf32> to vector<128x128xf32>
    %66 = arith.extf %63 : vector<128x128xbf16> to vector<128x128xf32>
    %67 = arith.maximumf %65, %66 : vector<128x128xf32>
    %c0_34 = arith.constant 0 : index
    %c0_35 = arith.constant 0 : index
    %c0_36 = arith.constant 0 : index
    %68 = vector.load %arg18[%c0_34, %c0_35, %c0_36] : memref<2x128x128xf32, #tpu.memory_space<vmem>>, vector<1x128x128xf32>
    %69 = vector.shape_cast %68 : vector<1x128x128xf32> to vector<128x128xf32>
    %70 = vector.shape_cast %67 : vector<128x128xf32> to vector<1x128x128xf32>
    tpu.vector_store %arg18[%c0_34, %c0_35, %c0_36], %70 {strides = array<i32>} : memref<2x128x128xf32, #tpu.memory_space<vmem>>, vector<1x128x128xf32>,
    %c1 = arith.constant 1 : index
    %c0_37 = arith.constant 0 : index
    %c0_38 = arith.constant 0 : index
    %71 = vector.load %arg2[%c1, %c0_37, %c0_38] : memref<2x3x256xf32, #tpu.memory_space<vmem>>, vector<1x3x256xf32>
    %72 = vector.shape_cast %71 : vector<1x3x256xf32> to vector<3x256xf32>
    %c0_39 = arith.constant 0 : index
    %c0_40 = arith.constant 0 : index
    %73 = vector.load %arg3[%c0_39, %c0_40] : memref<64x3xf32, #tpu.memory_space<vmem>>, vector<64x3xf32>
    %74 = vector.extract_strided_slice %73 {offsets = [0, 0], sizes = [64, 1], strides = [1, 1]} : vector<64x3xf32> to vector<64x1xf32>
    %75 = vector.extract_strided_slice %72 {offsets = [0, 0], sizes = [1, 256], strides = [1, 1]} : vector<3x256xf32> to vector<1x256xf32>
    %76 = vector.broadcast %74 : vector<64x1xf32> to vector<64x256xf32>
    %77 = vector.broadcast %75 : vector<1x256xf32> to vector<64x256xf32>
    %78 = arith.mulf %76, %77 : vector<64x256xf32>
    %79 = vector.extract_strided_slice %73 {offsets = [0, 1], sizes = [64, 1], strides = [1, 1]} : vector<64x3xf32> to vector<64x1xf32>
    %80 = vector.extract_strided_slice %72 {offsets = [1, 0], sizes = [1, 256], strides = [1, 1]} : vector<3x256xf32> to vector<1x256xf32>
    %81 = vector.broadcast %79 : vector<64x1xf32> to vector<64x256xf32>
    %82 = vector.broadcast %80 : vector<1x256xf32> to vector<64x256xf32>
    %83 = arith.mulf %81, %82 : vector<64x256xf32>
    %84 = arith.addf %78, %83 : vector<64x256xf32>
    %85 = vector.extract_strided_slice %73 {offsets = [0, 2], sizes = [64, 1], strides = [1, 1]} : vector<64x3xf32> to vector<64x1xf32>
    %86 = vector.extract_strided_slice %72 {offsets = [2, 0], sizes = [1, 256], strides = [1, 1]} : vector<3x256xf32> to vector<1x256xf32>
    %87 = vector.broadcast %85 : vector<64x1xf32> to vector<64x256xf32>
    %88 = vector.broadcast %86 : vector<1x256xf32> to vector<64x256xf32>
    %89 = arith.mulf %87, %88 : vector<64x256xf32>
    %90 = arith.addf %84, %89 : vector<64x256xf32>
    %c0_41 = arith.constant 0 : index
    %c0_42 = arith.constant 0 : index
    %91 = vector.load %arg4[%c0_41, %c0_42] : memref<64x1xf32, #tpu.memory_space<vmem>>, vector<64x1xf32>
    %92 = vector.broadcast %91 : vector<64x1xf32> to vector<64x256xf32>
    %93 = arith.addf %90, %92 : vector<64x256xf32>
    %cst_43 = arith.constant 0.000000e+00 : f32
    %94 = vector.broadcast %cst_43 : f32 to vector<64x256xf32>
    %95 = arith.maximumf %93, %94 : vector<64x256xf32>
    %96 = arith.truncf %95 : vector<64x256xf32> to vector<64x256xbf16>
    %c0_44 = arith.constant 0 : index
    %c0_45 = arith.constant 0 : index
    %97 = vector.load %arg5[%c0_44, %c0_45] : memref<64x64xbf16, #tpu.memory_space<vmem>>, vector<64x64xbf16>
    %cst_46 = arith.constant dense<0.000000e+00> : vector<64x256xf32>
    %98 = tpu.matmul %97, %96, %cst_46 {dimension_numbers = #tpu.dot_dimension_numbers<[1], [0], [0], [1], [0, 0, 1, 1], [], []>} : vector<64x64xbf16>, vector<64x256xbf16>, vector<64x256xf32> -> vector<64x256xf32>
    %c0_47 = arith.constant 0 : index
    %c0_48 = arith.constant 0 : index
    %99 = vector.load %arg6[%c0_47, %c0_48] : memref<64x1xf32, #tpu.memory_space<vmem>>, vector<64x1xf32>
    %100 = vector.broadcast %99 : vector<64x1xf32> to vector<64x256xf32>
    %101 = arith.addf %98, %100 : vector<64x256xf32>
    %cst_49 = arith.constant 0.000000e+00 : f32
    %102 = vector.broadcast %cst_49 : f32 to vector<64x256xf32>
    %103 = arith.maximumf %101, %102 : vector<64x256xf32>
    %104 = arith.truncf %103 : vector<64x256xf32> to vector<64x256xbf16>
    %c0_50 = arith.constant 0 : index
    %c0_51 = arith.constant 0 : index
    %105 = vector.load %arg7[%c0_50, %c0_51] : memref<64x64xbf16, #tpu.memory_space<vmem>>, vector<64x64xbf16>
    %cst_52 = arith.constant dense<0.000000e+00> : vector<64x256xf32>
    %106 = tpu.matmul %105, %104, %cst_52 {dimension_numbers = #tpu.dot_dimension_numbers<[1], [0], [0], [1], [0, 0, 1, 1], [], []>} : vector<64x64xbf16>, vector<64x256xbf16>, vector<64x256xf32> -> vector<64x256xf32>
    %c0_53 = arith.constant 0 : index
    %c0_54 = arith.constant 0 : index
    %107 = vector.load %arg8[%c0_53, %c0_54] : memref<64x1xf32, #tpu.memory_space<vmem>>, vector<64x1xf32>
    %108 = vector.broadcast %107 : vector<64x1xf32> to vector<64x256xf32>
    %109 = arith.addf %106, %108 : vector<64x256xf32>
    %cst_55 = arith.constant 0.000000e+00 : f32
    %110 = vector.broadcast %cst_55 : f32 to vector<64x256xf32>
    %111 = arith.maximumf %109, %110 : vector<64x256xf32>
    %112 = arith.truncf %111 : vector<64x256xf32> to vector<64x256xbf16>
    %c0_56 = arith.constant 0 : index
    %c0_57 = arith.constant 0 : index
    %113 = vector.load %arg9[%c0_56, %c0_57] : memref<128x64xbf16, #tpu.memory_space<vmem>>, vector<128x64xbf16>
    %cst_58 = arith.constant dense<0.000000e+00> : vector<128x256xf32>
    %114 = tpu.matmul %113, %112, %cst_58 {dimension_numbers = #tpu.dot_dimension_numbers<[1], [0], [0], [1], [0, 0, 1, 1], [], []>} : vector<128x64xbf16>, vector<64x256xbf16>, vector<128x256xf32> -> vector<128x256xf32>
    %c0_59 = arith.constant 0 : index
    %c0_60 = arith.constant 0 : index
    %115 = vector.load %arg10[%c0_59, %c0_60] : memref<128x1xf32, #tpu.memory_space<vmem>>, vector<128x1xf32>
    %116 = vector.broadcast %115 : vector<128x1xf32> to vector<128x256xf32>
    %117 = arith.addf %114, %116 : vector<128x256xf32>
    %cst_61 = arith.constant 0.000000e+00 : f32
    %118 = vector.broadcast %cst_61 : f32 to vector<128x256xf32>
    %119 = arith.maximumf %117, %118 : vector<128x256xf32>
    %120 = arith.truncf %119 : vector<128x256xf32> to vector<128x256xbf16>
    %c0_62 = arith.constant 0 : index
    %c0_63 = arith.constant 0 : index
    %121 = vector.load %arg11[%c0_62, %c0_63] : memref<128x128xbf16, #tpu.memory_space<vmem>>, vector<128x128xbf16>
    %cst_64 = arith.constant dense<0.000000e+00> : vector<128x256xf32>
    %122 = tpu.matmul %121, %120, %cst_64 {dimension_numbers = #tpu.dot_dimension_numbers<[1], [0], [0], [1], [0, 0, 1, 1], [], []>} : vector<128x128xbf16>, vector<128x256xbf16>, vector<128x256xf32> -> vector<128x256xf32>
    %c0_65 = arith.constant 0 : index
    %c0_66 = arith.constant 0 : index
    %123 = vector.load %arg12[%c0_65, %c0_66] : memref<128x1xf32, #tpu.memory_space<vmem>>, vector<128x1xf32>
    %124 = vector.broadcast %123 : vector<128x1xf32> to vector<128x256xf32>
    %125 = arith.addf %122, %124 : vector<128x256xf32>
    %cst_67 = arith.constant 0.000000e+00 : f32
    %126 = vector.broadcast %cst_67 : f32 to vector<128x256xf32>
    %127 = arith.maximumf %125, %126 : vector<128x256xf32>
    %128 = arith.truncf %127 : vector<128x256xf32> to vector<128x256xbf16>
    %129 = vector.extract_strided_slice %128 {offsets = [0, 0], sizes = [128, 128], strides = [1, 1]} : vector<128x256xbf16> to vector<128x128xbf16>
    %130 = vector.extract_strided_slice %128 {offsets = [0, 128], sizes = [128, 128], strides = [1, 1]} : vector<128x256xbf16> to vector<128x128xbf16>
    %131 = arith.maximumf %129, %130 : vector<128x128xbf16>
    %c1_68 = arith.constant 1 : index
    %c0_69 = arith.constant 0 : index
    %c0_70 = arith.constant 0 : index
    %132 = vector.load %arg18[%c1_68, %c0_69, %c0_70] : memref<2x128x128xf32, #tpu.memory_space<vmem>>, vector<1x128x128xf32>
    %133 = vector.shape_cast %132 : vector<1x128x128xf32> to vector<128x128xf32>
    %134 = arith.extf %131 : vector<128x128xbf16> to vector<128x128xf32>
    %135 = arith.maximumf %133, %134 : vector<128x128xf32>
    %c1_71 = arith.constant 1 : index
    %c0_72 = arith.constant 0 : index
    %c0_73 = arith.constant 0 : index
    %136 = vector.load %arg18[%c1_71, %c0_72, %c0_73] : memref<2x128x128xf32, #tpu.memory_space<vmem>>, vector<1x128x128xf32>
    %137 = vector.shape_cast %136 : vector<1x128x128xf32> to vector<128x128xf32>
    %138 = vector.shape_cast %135 : vector<128x128xf32> to vector<1x128x128xf32>
    tpu.vector_store %arg18[%c1_71, %c0_72, %c0_73], %138 {strides = array<i32>} : memref<2x128x128xf32, #tpu.memory_space<vmem>>, vector<1x128x128xf32>,
    %c0_i32_74 = arith.constant 0 : i32
    %139 = arith.cmpi eq, %arg1, %c0_i32_74 : i32
    %140 = arith.extui %139 : i1 to i32
    %c0_i32_75 = arith.constant 0 : i32
    %141 = arith.cmpi ne, %140, %c0_i32_75 : i32
    scf.if %141 {
      %c0_76 = arith.constant 0 : index
      %c0_77 = arith.constant 0 : index
      %c0_78 = arith.constant 0 : index
      %142 = vector.load %arg18[%c0_76, %c0_77, %c0_78] : memref<2x128x128xf32, #tpu.memory_space<vmem>>, vector<2x128x128xf32>
      %cst_79 = arith.constant dense<0xFF800000> : vector<2x128xf32>
      %143 = vector.multi_reduction <maximumf>, %142, %cst_79 [2] : vector<2x128x128xf32> to vector<2x128xf32>
      %144 = arith.truncf %143 : vector<2x128xf32> to vector<2x128xbf16>
      %c0_80 = arith.constant 0 : index
      %c0_81 = arith.constant 0 : index
      %145 = vector.load %arg13[%c0_80, %c0_81] : memref<128x256xbf16, #tpu.memory_space<vmem>>, vector<128x256xbf16>
      %cst_82 = arith.constant dense<0.000000e+00> : vector<2x256xf32>
      %146 = tpu.matmul %144, %145, %cst_82 {dimension_numbers = #tpu.dot_dimension_numbers<[1], [0], [0], [1], [0, 0, 1, 1], [], []>} : vector<2x128xbf16>, vector<128x256xbf16>, vector<2x256xf32> -> vector<2x256xf32>
      %c0_83 = arith.constant 0 : index
      %c0_84 = arith.constant 0 : index
      %147 = vector.load %arg14[%c0_83, %c0_84] : memref<1x256xf32, #tpu.memory_space<vmem>>, vector<1x256xf32>
      %148 = vector.broadcast %147 : vector<1x256xf32> to vector<2x256xf32>
      %149 = arith.addf %146, %148 : vector<2x256xf32>
      %cst_85 = arith.constant 0.000000e+00 : f32
      %150 = vector.broadcast %cst_85 : f32 to vector<2x256xf32>
      %151 = arith.maximumf %149, %150 : vector<2x256xf32>
      %152 = arith.truncf %151 : vector<2x256xf32> to vector<2x256xbf16>
      %c0_86 = arith.constant 0 : index
      %c0_87 = arith.constant 0 : index
      %153 = vector.load %arg15[%c0_86, %c0_87] : memref<256x16xbf16, #tpu.memory_space<vmem>>, vector<256x16xbf16>
      %cst_88 = arith.constant dense<0.000000e+00> : vector<2x16xf32>
      %154 = tpu.matmul %152, %153, %cst_88 {dimension_numbers = #tpu.dot_dimension_numbers<[1], [0], [0], [1], [0, 0, 1, 1], [], []>} : vector<2x256xbf16>, vector<256x16xbf16>, vector<2x16xf32> -> vector<2x16xf32>
      %c0_89 = arith.constant 0 : index
      %c0_90 = arith.constant 0 : index
      %155 = vector.load %arg16[%c0_89, %c0_90] : memref<1x16xf32, #tpu.memory_space<vmem>>, vector<1x16xf32>
      %156 = vector.broadcast %155 : vector<1x16xf32> to vector<2x16xf32>
      %157 = arith.addf %154, %156 : vector<2x16xf32>
      %c0_91 = arith.constant 0 : index
      %c0_92 = arith.constant 0 : index
      %c0_93 = arith.constant 0 : index
      %158 = vector.load %arg17[%c0_91, %c0_92, %c0_93] : memref<1x2x16xf32, #tpu.memory_space<vmem>>, vector<1x2x16xf32>
      %159 = vector.shape_cast %158 : vector<1x2x16xf32> to vector<2x16xf32>
      %160 = vector.shape_cast %157 : vector<2x16xf32> to vector<1x2x16xf32>
      tpu.vector_store %arg17[%c0_91, %c0_92, %c0_93], %160 {strides = array<i32>} : memref<1x2x16xf32, #tpu.memory_space<vmem>>, vector<1x2x16xf32>,
    } else {
    }
    return
  }
  func.func @transform_0(%arg0: i32, %arg1: i32) -> (i32, i32, i32) {
    %c0_i32 = arith.constant 0 : i32
    %c0_i32_0 = arith.constant 0 : i32
    return %arg0, %c0_i32, %arg1 : i32, i32, i32
  }
  func.func @transform_1(%arg0: i32, %arg1: i32) -> (i32, i32) {
    %c0_i32 = arith.constant 0 : i32
    %c0_i32_0 = arith.constant 0 : i32
    %c0_i32_1 = arith.constant 0 : i32
    return %c0_i32, %c0_i32_0 : i32, i32
  }
  func.func @transform_2(%arg0: i32, %arg1: i32) -> (i32, i32) {
    %c0_i32 = arith.constant 0 : i32
    %c0_i32_0 = arith.constant 0 : i32
    %c0_i32_1 = arith.constant 0 : i32
    return %c0_i32, %c0_i32_0 : i32, i32
  }
  func.func @transform_3(%arg0: i32, %arg1: i32) -> (i32, i32) {
    %c0_i32 = arith.constant 0 : i32
    %c0_i32_0 = arith.constant 0 : i32
    %c0_i32_1 = arith.constant 0 : i32
    return %c0_i32, %c0_i32_0 : i32, i32
  }
  func.func @transform_4(%arg0: i32, %arg1: i32) -> (i32, i32) {
    %c0_i32 = arith.constant 0 : i32
    %c0_i32_0 = arith.constant 0 : i32
    %c0_i32_1 = arith.constant 0 : i32
    return %c0_i32, %c0_i32_0 : i32, i32
  }
  func.func @transform_5(%arg0: i32, %arg1: i32) -> (i32, i32) {
    %c0_i32 = arith.constant 0 : i32
    %c0_i32_0 = arith.constant 0 : i32
    %c0_i32_1 = arith.constant 0 : i32
    return %c0_i32, %c0_i32_0 : i32, i32
  }
  func.func @transform_6(%arg0: i32, %arg1: i32) -> (i32, i32) {
    %c0_i32 = arith.constant 0 : i32
    %c0_i32_0 = arith.constant 0 : i32
    %c0_i32_1 = arith.constant 0 : i32
    return %c0_i32, %c0_i32_0 : i32, i32
  }
  func.func @transform_7(%arg0: i32, %arg1: i32) -> (i32, i32) {
    %c0_i32 = arith.constant 0 : i32
    %c0_i32_0 = arith.constant 0 : i32
    %c0_i32_1 = arith.constant 0 : i32
    return %c0_i32, %c0_i32_0 : i32, i32
  }
  func.func @transform_8(%arg0: i32, %arg1: i32) -> (i32, i32) {
    %c0_i32 = arith.constant 0 : i32
    %c0_i32_0 = arith.constant 0 : i32
    %c0_i32_1 = arith.constant 0 : i32
    return %c0_i32, %c0_i32_0 : i32, i32
  }
  func.func @transform_9(%arg0: i32, %arg1: i32) -> (i32, i32) {
    %c0_i32 = arith.constant 0 : i32
    %c0_i32_0 = arith.constant 0 : i32
    %c0_i32_1 = arith.constant 0 : i32
    return %c0_i32, %c0_i32_0 : i32, i32
  }
  func.func @transform_10(%arg0: i32, %arg1: i32) -> (i32, i32) {
    %c0_i32 = arith.constant 0 : i32
    %c0_i32_0 = arith.constant 0 : i32
    %c0_i32_1 = arith.constant 0 : i32
    return %c0_i32, %c0_i32_0 : i32, i32
  }
  func.func @transform_11(%arg0: i32, %arg1: i32) -> (i32, i32) {
    %c0_i32 = arith.constant 0 : i32
    %c0_i32_0 = arith.constant 0 : i32
    %c0_i32_1 = arith.constant 0 : i32
    return %c0_i32, %c0_i32_0 : i32, i32
  }
  func.func @transform_12(%arg0: i32, %arg1: i32) -> (i32, i32) {
    %c0_i32 = arith.constant 0 : i32
    %c0_i32_0 = arith.constant 0 : i32
    %c0_i32_1 = arith.constant 0 : i32
    return %c0_i32, %c0_i32_0 : i32, i32
  }
  func.func @transform_13(%arg0: i32, %arg1: i32) -> (i32, i32) {
    %c0_i32 = arith.constant 0 : i32
    %c0_i32_0 = arith.constant 0 : i32
    %c0_i32_1 = arith.constant 0 : i32
    return %c0_i32, %c0_i32_0 : i32, i32
  }
  func.func @transform_14(%arg0: i32, %arg1: i32) -> (i32, i32) {
    %c0_i32 = arith.constant 0 : i32
    %c0_i32_0 = arith.constant 0 : i32
    %c0_i32_1 = arith.constant 0 : i32
    return %c0_i32, %c0_i32_0 : i32, i32
  }
  func.func @transform_15(%arg0: i32, %arg1: i32) -> (i32, i32, i32) {
    %c0_i32 = arith.constant 0 : i32
    %c0_i32_0 = arith.constant 0 : i32
    %c0_i32_1 = arith.constant 0 : i32
    return %arg0, %c0_i32, %c0_i32_0 : i32, i32, i32
  }
}

</mosaic_0001>

<llo_original>
// kernel: pointnet_forward.1
$region0: #{pointnet_forward.1}
  #allocation0 [shape = 'u32[]', space=smem, size = 0x4, offset = 0x4, fixed_abs, tag = 'smem constant byte address 0x4 - core index']
  #allocation1 [shape = 'u32[144,128]{1,0:T(1,128)}', space=vmem, size = 0x12000, scoped, tag = 'internal scratch']
  #allocation2 [shape = 'f32[2,128,128]{2,1,0:T(8,128)}', space=vmem, size = 0x20000, scoped, tag = 'scratch operand']
  %s0 = inlined_call_operand.vmem [shape: f32[2,3,256], index: 0, kind: input, shape index: {}]
  %s1 = inlined_call_operand.vmem [shape: f32[64,3], index: 1, kind: input, shape index: {}]
  %s2 = inlined_call_operand.vmem [shape: f32[64,1], index: 2, kind: input, shape index: {}]
  %s3 = inlined_call_operand.vmem [shape: bf16[64,64], index: 3, kind: input, shape index: {}]
  %s4 = inlined_call_operand.vmem [shape: f32[64,1], index: 4, kind: input, shape index: {}]
  %s5 = inlined_call_operand.vmem [shape: bf16[64,64], index: 5, kind: input, shape index: {}]
  %s6 = inlined_call_operand.vmem [shape: f32[64,1], index: 6, kind: input, shape index: {}]
  %s7 = inlined_call_operand.vmem [shape: bf16[128,64], index: 7, kind: input, shape index: {}]
  %s8 = inlined_call_operand.vmem [shape: f32[128,1], index: 8, kind: input, shape index: {}]
  %s9 = inlined_call_operand.vmem [shape: bf16[128,128], index: 9, kind: input, shape index: {}]
  %s10 = inlined_call_operand.vmem [shape: f32[128,1], index: 10, kind: input, shape index: {}]
  %s11 = inlined_call_operand.vmem [shape: bf16[128,256], index: 11, kind: input, shape index: {}]
  %s12 = inlined_call_operand.vmem [shape: f32[1,256], index: 12, kind: input, shape index: {}]
  %s13 = inlined_call_operand.vmem [shape: bf16[256,16], index: 13, kind: input, shape index: {}]
  %s14 = inlined_call_operand.vmem [shape: f32[1,16], index: 14, kind: input, shape index: {}]
  %s15 = inlined_call_operand.hbm [shape: f32[1,2,16], index: 15, kind: output, shape index: {}]
  %s16 = sld [smem:[#allocation0]]
  $region78: #{pointnet_forward.1} parent=0
    _
  %s18 = ssub.s32 1, %s16
  %s19 = scalar_select 0, %s18, %s16
  $region1: #{pointnet_forward.1} parent=0
    #allocation3 [shape = 'u8[1024]{0}', space=vmem, size = 0x400, scoped, tag = 'output window, operand 0, single buffered']
    #allocation4 [shape = 's32[1]{0}', space=sflag, size = 0x4, scoped, tag = 'scoped memory for pointnet_forward.1']
    %20 = vsyncpa [#allocation4], 0
    // Predicated region
    $region2: #{pointnet_forward.1} parent=1 // pred_check
      _
    $region3: #{pointnet_forward.1} parent=1 // pred_check_branch
      %22 = sbr.rel (0) target = $region5
    $region4: #{pointnet_forward.1} parent=1 // pred_region
      _
    $region5: #{pointnet_forward.1} parent=1 // pred_fallthru
      _
    // Predicated region
    $region6: #{pointnet_forward.1} parent=1 // pred_check
      _
    $region7: #{pointnet_forward.1} parent=1 // pred_check_branch
      %24 = sbr.rel (0) target = $region9
    $region8: #{pointnet_forward.1} parent=1 // pred_region
      _
    $region9: #{pointnet_forward.1} parent=1 // pred_fallthru
      _
    // Predicated region
    $region10: #{pointnet_forward.1} parent=1 // pred_check
      _
    $region11: #{pointnet_forward.1} parent=1 // pred_check_branch
      %26 = sbr.rel (0) target = $region13
    $region12: #{pointnet_forward.1} parent=1 // pred_region
      _
    $region13: #{pointnet_forward.1} parent=1 // pred_fallthru
      _
    // Predicated region
    $region14: #{pointnet_forward.1} parent=1 // pred_check
      _
    $region15: #{pointnet_forward.1} parent=1 // pred_check_branch
      %28 = sbr.rel (0) target = $region17
    $region16: #{pointnet_forward.1} parent=1 // pred_region
      _
    $region17: #{pointnet_forward.1} parent=1 // pred_fallthru
      _
    // Predicated region
    $region18: #{pointnet_forward.1} parent=1 // pred_check
      _
    $region19: #{pointnet_forward.1} parent=1 // pred_check_branch
      %30 = sbr.rel (0) target = $region21
    $region20: #{pointnet_forward.1} parent=1 // pred_region
      _
    $region21: #{pointnet_forward.1} parent=1 // pred_fallthru
      _
    // Predicated region
    $region22: #{pointnet_forward.1} parent=1 // pred_check
      _
    $region23: #{pointnet_forward.1} parent=1 // pred_check_branch
      %32 = sbr.rel (0) target = $region25
    $region24: #{pointnet_forward.1} parent=1 // pred_region
      _
    $region25: #{pointnet_forward.1} parent=1 // pred_fallthru
      _
    // Predicated region
    $region26: #{pointnet_forward.1} parent=1 // pred_check
      _
    $region27: #{pointnet_forward.1} parent=1 // pred_check_branch
      %34 = sbr.rel (0) target = $region29
    $region28: #{pointnet_forward.1} parent=1 // pred_region
      _
    $region29: #{pointnet_forward.1} parent=1 // pred_fallthru
      _
    // Predicated region
    $region30: #{pointnet_forward.1} parent=1 // pred_check
      _
    $region31: #{pointnet_forward.1} parent=1 // pred_check_branch
      %36 = sbr.rel (0) target = $region33
    $region32: #{pointnet_forward.1} parent=1 // pred_region
      _
    $region33: #{pointnet_forward.1} parent=1 // pred_fallthru
      _
    // Predicated region
    $region34: #{pointnet_forward.1} parent=1 // pred_check
      _
    $region35: #{pointnet_forward.1} parent=1 // pred_check_branch
      %38 = sbr.rel (0) target = $region37
    $region36: #{pointnet_forward.1} parent=1 // pred_region
      _
    $region37: #{pointnet_forward.1} parent=1 // pred_fallthru
      _
    // Predicated region
    $region38: #{pointnet_forward.1} parent=1 // pred_check
      _
    $region39: #{pointnet_forward.1} parent=1 // pred_check_branch
      %40 = sbr.rel (0) target = $region41
    $region40: #{pointnet_forward.1} parent=1 // pred_region
      _
    $region41: #{pointnet_forward.1} parent=1 // pred_fallthru
      _
    // Predicated region
    $region42: #{pointnet_forward.1} parent=1 // pred_check
      _
    $region43: #{pointnet_forward.1} parent=1 // pred_check_branch
      %42 = sbr.rel (0) target = $region45
    $region44: #{pointnet_forward.1} parent=1 // pred_region
      _
    $region45: #{pointnet_forward.1} parent=1 // pred_fallthru
      _
    // Predicated region
    $region46: #{pointnet_forward.1} parent=1 // pred_check
      _
    $region47: #{pointnet_forward.1} parent=1 // pred_check_branch
      %44 = sbr.rel (0) target = $region49
    $region48: #{pointnet_forward.1} parent=1 // pred_region
      _
    $region49: #{pointnet_forward.1} parent=1 // pred_fallthru
      _
    // Predicated region
    $region50: #{pointnet_forward.1} parent=1 // pred_check
      _
    $region51: #{pointnet_forward.1} parent=1 // pred_check_branch
      %46 = sbr.rel (0) target = $region53
    $region52: #{pointnet_forward.1} parent=1 // pred_region
      _
    $region53: #{pointnet_forward.1} parent=1 // pred_fallthru
      _
    // Predicated region
    $region54: #{pointnet_forward.1} parent=1 // pred_check
      _
    $region55: #{pointnet_forward.1} parent=1 // pred_check_branch
      %48 = sbr.rel (0) target = $region57
    $region56: #{pointnet_forward.1} parent=1 // pred_region
      _
    $region57: #{pointnet_forward.1} parent=1 // pred_fallthru
      _
    // Predicated region
    $region58: #{pointnet_forward.1} parent=1 // pred_check
      _
    $region59: #{pointnet_forward.1} parent=1 // pred_check_branch
      %50 = sbr.rel (0) target = $region61
    $region60: #{pointnet_forward.1} parent=1 // pred_region
      _
    $region61: #{pointnet_forward.1} parent=1 // pred_fallthru
      _
    %p52 = scmp.eq.s32.totalorder 0, 0
    // Predicated region
    $region62: #{pointnet_forward.1} parent=1 // pred_check
      %p53 = pneg %p52
    $region63: #{pointnet_forward.1} parent=1 // pred_check_branch
      %55 = sbr.rel (%p53) target = $region65
    $region64: #{pointnet_forward.1} parent=1 // pred_region
      %56 = vst [vmem:[#allocation2] sm:$0xff] -inf
      %57 = vst [vmem:[#allocation2 + $0x8] sm:$0xff] -inf
      %58 = vst [vmem:[#allocation2 + $0x10] sm:$0xff] -inf
      %59 = vst [vmem:[#allocation2 + $0x18] sm:$0xff] -inf
      %60 = vst [vmem:[#allocation2 + $0x20] sm:$0xff] -inf
      %61 = vst [vmem:[#allocation2 + $0x28] sm:$0xff] -inf
      %62 = vst [vmem:[#allocation2 + $0x30] sm:$0xff] -inf
      %63 = vst [vmem:[#allocation2 + $0x38] sm:$0xff] -inf
      %64 = vst [vmem:[#allocation2 + $0x40] sm:$0xff] -inf
      %65 = vst [vmem:[#allocation2 + $0x48] sm:$0xff] -inf
      %66 = vst [vmem:[#allocation2 + $0x50] sm:$0xff] -inf
      %67 = vst [vmem:[#allocation2 + $0x58] sm:$0xff] -inf
      %68 = vst [vmem:[#allocation2 + $0x60] sm:$0xff] -inf
      %69 = vst [vmem:[#allocation2 + $0x68] sm:$0xff] -inf
      %70 = vst [vmem:[#allocation2 + $0x70] sm:$0xff] -inf
      %71 = vst [vmem:[#allocation2 + $0x78] sm:$0xff] -inf
      %72 = vst [vmem:[#allocation2 + $0x80] sm:$0xff] -inf
      %73 = vst [vmem:[#allocation2 + $0x88] sm:$0xff] -inf
      %74 = vst [vmem:[#allocation2 + $0x90] sm:$0xff] -inf
      %75 = vst [vmem:[#allocation2 + $0x98] sm:$0xff] -inf
      %76 = vst [vmem:[#allocation2 + $0xa0] sm:$0xff] -inf
      %77 = vst [vmem:[#allocation2 + $0xa8] sm:$0xff] -inf
      %78 = vst [vmem:[#allocation2 + $0xb0] sm:$0xff] -inf
      %79 = vst [vmem:[#allocation2 + $0xb8] sm:$0xff] -inf
      %80 = vst [vmem:[#allocation2 + $0xc0] sm:$0xff] -inf
      %81 = vst [vmem:[#allocation2 + $0xc8] sm:$0xff] -inf
      %82 = vst [vmem:[#allocation2 + $0xd0] sm:$0xff] -inf
      %83 = vst [vmem:[#allocation2 + $0xd8] sm:$0xff] -inf
      %84 = vst [vmem:[#allocation2 + $0xe0] sm:$0xff] -inf
      %85 = vst [vmem:[#allocation2 + $0xe8] sm:$0xff] -inf
      %86 = vst [vmem:[#allocation2 + $0xf0] sm:$0xff] -inf
      %87 = vst [vmem:[#allocation2 + $0xf8] sm:$0xff] -inf
    $region65: #{pointnet_forward.1} parent=1 // pred_fallthru
      _
    %v88 = vld [vmem:[%s0] sm:$0x77]
    %v89 = vld [vmem:[%s1] sm:$0xff]
    %v90 = vld [vmem:[%s1 + $0x8] sm:$0xff]
    %v91 = vld [vmem:[%s1 + $0x10] sm:$0xff]
    %v92 = vld [vmem:[%s1 + $0x18] sm:$0xff]
    %v93 = vld [vmem:[%s1 + $0x20] sm:$0xff]
    %v94 = vld [vmem:[%s1 + $0x28] sm:$0xff]
    %v95 = vld [vmem:[%s1 + $0x30] sm:$0xff]
    %v96 = vld [vmem:[%s1 + $0x38] sm:$0xff]
    %98 = vset.pattern.permute.xlu0 0
    %99 = vperm.xlu0 %98, %v89
    %v100 = vpop.permute.xlu0 %99
    %103 = vset.pattern.permute.xlu0 0
    %104 = vperm.xlu0 %103, %v90
    %v105 = vpop.permute.xlu0 %104
    %108 = vset.pattern.permute.xlu0 0
    %109 = vperm.xlu0 %108, %v91
    %v110 = vpop.permute.xlu0 %109
    %113 = vset.pattern.permute.xlu0 0
    %114 = vperm.xlu0 %113, %v92
    %v115 = vpop.permute.xlu0 %114
    %118 = vset.pattern.permute.xlu0 0
    %119 = vperm.xlu0 %118, %v93
    %v120 = vpop.permute.xlu0 %119
    %123 = vset.pattern.permute.xlu0 0
    %124 = vperm.xlu0 %123, %v94
    %v125 = vpop.permute.xlu0 %124
    %128 = vset.pattern.permute.xlu0 0
    %129 = vperm.xlu0 %128, %v95
    %v130 = vpop.permute.xlu0 %129
    %133 = vset.pattern.permute.xlu0 0
    %134 = vperm.xlu0 %133, %v96
    %v135 = vpop.permute.xlu0 %134
    %v138 = vlaneseq
    %v139 = vshrl.u32 %v138, 7
    %v140 = vsub.s32 0, %v139
    %v141 = vrot.slane %v88, %v140
    %v142 = vlaneseq
    %v143 = vshrl.u32 %v142, 7
    %v144 = vsub.s32 4, %v143
    %v145 = vrot.slane %v88, %v144
    %v148 = vlaneseq
    %v149 = vshrl.u32 %v148, 7
    %v150 = vsub.s32 0, %v149
    %v151 = vrot.slane %v141, %v150
    %v152 = vlaneseq
    %v153 = vshrl.u32 %v152, 7
    %v154 = vsub.s32 0, %v153
    %v155 = vrot.slane %v145, %v154
    %v156 = vmul.f32 %v100, %v151
    %v157 = vmul.f32 %v100, %v155
    %v158 = vmul.f32 %v105, %v151
    %v159 = vmul.f32 %v105, %v155
    %v160 = vmul.f32 %v110, %v151
    %v161 = vmul.f32 %v110, %v155
    %v162 = vmul.f32 %v115, %v151
    %v163 = vmul.f32 %v115, %v155
    %v164 = vmul.f32 %v120, %v151
    %v165 = vmul.f32 %v120, %v155
    %v166 = vmul.f32 %v125, %v151
    %v167 = vmul.f32 %v125, %v155
    %v168 = vmul.f32 %v130, %v151
    %v169 = vmul.f32 %v130, %v155
    %v170 = vmul.f32 %v135, %v151
    %v171 = vmul.f32 %v135, %v155
    %172 = vset.pattern.permute.xlu0 1
    %173 = vperm.xlu0 %172, %v89
    %v174 = vpop.permute.xlu0 %173
    %176 = vset.pattern.permute.xlu0 1
    %177 = vperm.xlu0 %176, %v90
    %v178 = vpop.permute.xlu0 %177
    %180 = vset.pattern.permute.xlu0 1
    %181 = vperm.xlu0 %180, %v91
    %v182 = vpop.permute.xlu0 %181
    %184 = vset.pattern.permute.xlu0 1
    %185 = vperm.xlu0 %184, %v92
    %v186 = vpop.permute.xlu0 %185
    %188 = vset.pattern.permute.xlu0 1
    %189 = vperm.xlu0 %188, %v93
    %v190 = vpop.permute.xlu0 %189
    %192 = vset.pattern.permute.xlu0 1
    %193 = vperm.xlu0 %192, %v94
    %v194 = vpop.permute.xlu0 %193
    %196 = vset.pattern.permute.xlu0 1
    %197 = vperm.xlu0 %196, %v95
    %v198 = vpop.permute.xlu0 %197
    %200 = vset.pattern.permute.xlu0 1
    %201 = vperm.xlu0 %200, %v96
    %v202 = vpop.permute.xlu0 %201
    %v204 = vlaneseq
    %v205 = vshrl.u32 %v204, 7
    %v206 = vsub.s32 1, %v205
    %v207 = vrot.slane %v88, %v206
    %v208 = vlaneseq
    %v209 = vshrl.u32 %v208, 7
    %v210 = vsub.s32 5, %v209
    %v211 = vrot.slane %v88, %v210
    %v214 = vlaneseq
    %v215 = vshrl.u32 %v214, 7
    %v216 = vsub.s32 1, %v215
    %v217 = vrot.slane %v207, %v216
    %v218 = vlaneseq
    %v219 = vshrl.u32 %v218, 7
    %v220 = vsub.s32 1, %v219
    %v221 = vrot.slane %v211, %v220
    %v222 = vmul.f32 %v174, %v217
    %v223 = vmul.f32 %v174, %v221
    %v224 = vmul.f32 %v178, %v217
    %v225 = vmul.f32 %v178, %v221
    %v226 = vmul.f32 %v182, %v217
    %v227 = vmul.f32 %v182, %v221
    %v228 = vmul.f32 %v186, %v217
    %v229 = vmul.f32 %v186, %v221
    %v230 = vmul.f32 %v190, %v217
    %v231 = vmul.f32 %v190, %v221
    %v232 = vmul.f32 %v194, %v217
    %v233 = vmul.f32 %v194, %v221
    %v234 = vmul.f32 %v198, %v217
    %v235 = vmul.f32 %v198, %v221
    %v236 = vmul.f32 %v202, %v217
    %v237 = vmul.f32 %v202, %v221
    %v238 = vadd.f32 %v156, %v222
    %v239 = vadd.f32 %v157, %v223
    %v240 = vadd.f32 %v158, %v224
    %v241 = vadd.f32 %v159, %v225
    %v242 = vadd.f32 %v160, %v226
    %v243 = vadd.f32 %v161, %v227
    %v244 = vadd.f32 %v162, %v228
    %v245 = vadd.f32 %v163, %v229
    %v246 = vadd.f32 %v164, %v230
    %v247 = vadd.f32 %v165, %v231
    %v248 = vadd.f32 %v166, %v232
    %v249 = vadd.f32 %v167, %v233
    %v250 = vadd.f32 %v168, %v234
    %v251 = vadd.f32 %v169, %v235
    %v252 = vadd.f32 %v170, %v236
    %v253 = vadd.f32 %v171, %v237
    %254 = vset.pattern.permute.xlu0 2
    %255 = vperm.xlu0 %254, %v89
    %v256 = vpop.permute.xlu0 %255
    %258 = vset.pattern.permute.xlu0 2
    %259 = vperm.xlu0 %258, %v90
    %v260 = vpop.permute.xlu0 %259
    %262 = vset.pattern.permute.xlu0 2
    %263 = vperm.xlu0 %262, %v91
    %v264 = vpop.permute.xlu0 %263
    %266 = vset.pattern.permute.xlu0 2
    %267 = vperm.xlu0 %266, %v92
    %v268 = vpop.permute.xlu0 %267
    %270 = vset.pattern.permute.xlu0 2
    %271 = vperm.xlu0 %270, %v93
    %v272 = vpop.permute.xlu0 %271
    %274 = vset.pattern.permute.xlu0 2
    %275 = vperm.xlu0 %274, %v94
    %v276 = vpop.permute.xlu0 %275
    %278 = vset.pattern.permute.xlu0 2
    %279 = vperm.xlu0 %278, %v95
    %v280 = vpop.permute.xlu0 %279
    %282 = vset.pattern.permute.xlu0 2
    %283 = vperm.xlu0 %282, %v96
    %v284 = vpop.permute.xlu0 %283
    %v286 = vlaneseq
    %v287 = vshrl.u32 %v286, 7
    %v288 = vsub.s32 2, %v287
    %v289 = vrot.slane %v88, %v288
    %v290 = vlaneseq
    %v291 = vshrl.u32 %v290, 7
    %v292 = vsub.s32 6, %v291
    %v293 = vrot.slane %v88, %v292
    %v296 = vlaneseq
    %v297 = vshrl.u32 %v296, 7
    %v298 = vsub.s32 2, %v297
    %v299 = vrot.slane %v289, %v298
    %v300 = vlaneseq
    %v301 = vshrl.u32 %v300, 7
    %v302 = vsub.s32 2, %v301
    %v303 = vrot.slane %v293, %v302
    %v304 = vmul.f32 %v256, %v299
    %v305 = vmul.f32 %v256, %v303
    %v306 = vmul.f32 %v260, %v299
    %v307 = vmul.f32 %v260, %v303
    %v308 = vmul.f32 %v264, %v299
    %v309 = vmul.f32 %v264, %v303
    %v310 = vmul.f32 %v268, %v299
    %v311 = vmul.f32 %v268, %v303
    %v312 = vmul.f32 %v272, %v299
    %v313 = vmul.f32 %v272, %v303
    %v314 = vmul.f32 %v276, %v299
    %v315 = vmul.f32 %v276, %v303
    %v316 = vmul.f32 %v280, %v299
    %v317 = vmul.f32 %v280, %v303
    %v318 = vmul.f32 %v284, %v299
    %v319 = vmul.f32 %v284, %v303
    %v320 = vadd.f32 %v238, %v304
    %v321 = vadd.f32 %v239, %v305
    %v322 = vadd.f32 %v240, %v306
    %v323 = vadd.f32 %v241, %v307
    %v324 = vadd.f32 %v242, %v308
    %v325 = vadd.f32 %v243, %v309
    %v326 = vadd.f32 %v244, %v310
    %v327 = vadd.f32 %v245, %v311
    %v328 = vadd.f32 %v246, %v312
    %v329 = vadd.f32 %v247, %v313
    %v330 = vadd.f32 %v248, %v314
    %v331 = vadd.f32 %v249, %v315
    %v332 = vadd.f32 %v250, %v316
    %v333 = vadd.f32 %v251, %v317
    %v334 = vadd.f32 %v252, %v318
    %v335 = vadd.f32 %v253, %v319
    %v336 = vld [vmem:[%s2] sm:$0xff]
    %v337 = vld [vmem:[%s2 + $0x8] sm:$0xff]
    %v338 = vld [vmem:[%s2 + $0x10] sm:$0xff]
    %v339 = vld [vmem:[%s2 + $0x18] sm:$0xff]
    %v340 = vld [vmem:[%s2 + $0x20] sm:$0xff]
    %v341 = vld [vmem:[%s2 + $0x28] sm:$0xff]
    %v342 = vld [vmem:[%s2 + $0x30] sm:$0xff]
    %v343 = vld [vmem:[%s2 + $0x38] sm:$0xff]
    %345 = vset.pattern.permute.xlu0 0
    %346 = vperm.xlu0 %345, %v336
    %v347 = vpop.permute.xlu0 %346
    %350 = vset.pattern.permute.xlu0 0
    %351 = vperm.xlu0 %350, %v337
    %v352 = vpop.permute.xlu0 %351
    %355 = vset.pattern.permute.xlu0 0
    %356 = vperm.xlu0 %355, %v338
    %v357 = vpop.permute.xlu0 %356
    %360 = vset.pattern.permute.xlu0 0
    %361 = vperm.xlu0 %360, %v339
    %v362 = vpop.permute.xlu0 %361
    %365 = vset.pattern.permute.xlu0 0
    %366 = vperm.xlu0 %365, %v340
    %v367 = vpop.permute.xlu0 %366
    %370 = vset.pattern.permute.xlu0 0
    %371 = vperm.xlu0 %370, %v341
    %v372 = vpop.permute.xlu0 %371
    %375 = vset.pattern.permute.xlu0 0
    %376 = vperm.xlu0 %375, %v342
    %v377 = vpop.permute.xlu0 %376
    %380 = vset.pattern.permute.xlu0 0
    %381 = vperm.xlu0 %380, %v343
    %v382 = vpop.permute.xlu0 %381
    %v384 = vadd.f32 %v320, %v347
    %v385 = vadd.f32 %v321, %v347
    %v386 = vadd.f32 %v322, %v352
    %v387 = vadd.f32 %v323, %v352
    %v388 = vadd.f32 %v324, %v357
    %v389 = vadd.f32 %v325, %v357
    %v390 = vadd.f32 %v326, %v362
    %v391 = vadd.f32 %v327, %v362
    %v392 = vadd.f32 %v328, %v367
    %v393 = vadd.f32 %v329, %v367
    %v394 = vadd.f32 %v330, %v372
    %v395 = vadd.f32 %v331, %v372
    %v396 = vadd.f32 %v332, %v377
    %v397 = vadd.f32 %v333, %v377
    %v398 = vadd.f32 %v334, %v382
    %v399 = vadd.f32 %v335, %v382
    %v400 = vmax.f32 %v384, 0.0
    %v401 = vmax.f32 %v385, 0.0
    %v402 = vmax.f32 %v386, 0.0
    %v403 = vmax.f32 %v387, 0.0
    %v404 = vmax.f32 %v388, 0.0
    %v405 = vmax.f32 %v389, 0.0
    %v406 = vmax.f32 %v390, 0.0
    %v407 = vmax.f32 %v391, 0.0
    %v408 = vmax.f32 %v392, 0.0
    %v409 = vmax.f32 %v393, 0.0
    %v410 = vmax.f32 %v394, 0.0
    %v411 = vmax.f32 %v395, 0.0
    %v412 = vmax.f32 %v396, 0.0
    %v413 = vmax.f32 %v397, 0.0
    %v414 = vmax.f32 %v398, 0.0
    %v415 = vmax.f32 %v399, 0.0
    %v416 = vpack.c.bf16 %v402, %v400
    %v417 = vpack.c.bf16 %v403, %v401
    %v418 = vpack.c.bf16 %v406, %v404
    %v419 = vpack.c.bf16 %v407, %v405
    %v420 = vpack.c.bf16 %v410, %v408
    %v421 = vpack.c.bf16 %v411, %v409
    %v422 = vpack.c.bf16 %v414, %v412
    %v423 = vpack.c.bf16 %v415, %v413
    %v424 = vld [vmem:[%s3] sm:$0xf]
    %v425 = vld [vmem:[%s3 + $0x4] sm:$0xf]
    %v426 = vld [vmem:[%s3 + $0x8] sm:$0xf]
    %v427 = vld [vmem:[%s3 + $0xc] sm:$0xf]
    %v428 = vld [vmem:[%s3 + $0x10] sm:$0xf]
    %v429 = vld [vmem:[%s3 + $0x14] sm:$0xf]
    %v430 = vld [vmem:[%s3 + $0x18] sm:$0xf]
    %v431 = vld [vmem:[%s3 + $0x1c] sm:$0xf]
    %v432 = vld [vmem:[%s4] sm:$0xff]
    %v433 = vld [vmem:[%s4 + $0x8] sm:$0xff]
    %v434 = vld [vmem:[%s4 + $0x10] sm:$0xff]
    %v435 = vld [vmem:[%s4 + $0x18] sm:$0xff]
    %v436 = vld [vmem:[%s4 + $0x20] sm:$0xff]
    %v437 = vld [vmem:[%s4 + $0x28] sm:$0xff]
    %v438 = vld [vmem:[%s4 + $0x30] sm:$0xff]
    %v439 = vld [vmem:[%s4 + $0x38] sm:$0xff]
    %441 = vset.pattern.permute.xlu0 0
    %442 = vperm.xlu0 %441, %v432
    %v443 = vpop.permute.xlu0 %442
    %446 = vset.pattern.permute.xlu0 0
    %447 = vperm.xlu0 %446, %v433
    %v448 = vpop.permute.xlu0 %447
    %451 = vset.pattern.permute.xlu0 0
    %452 = vperm.xlu0 %451, %v434
    %v453 = vpop.permute.xlu0 %452
    %456 = vset.pattern.permute.xlu0 0
    %457 = vperm.xlu0 %456, %v435
    %v458 = vpop.permute.xlu0 %457
    %461 = vset.pattern.permute.xlu0 0
    %462 = vperm.xlu0 %461, %v436
    %v463 = vpop.permute.xlu0 %462
    %466 = vset.pattern.permute.xlu0 0
    %467 = vperm.xlu0 %466, %v437
    %v468 = vpop.permute.xlu0 %467
    %471 = vset.pattern.permute.xlu0 0
    %472 = vperm.xlu0 %471, %v438
    %v473 = vpop.permute.xlu0 %472
    %476 = vset.pattern.permute.xlu0 0
    %477 = vperm.xlu0 %476, %v439
    %v478 = vpop.permute.xlu0 %477
    %v488 = vunpack.c.l.b16 %v424
    %v489 = vunpack.c.l.b16 %v425
    %v490 = vunpack.c.l.b16 %v426
    %v491 = vunpack.c.l.b16 %v427
    %v492 = vunpack.c.l.b16 %v428
    %v493 = vunpack.c.l.b16 %v429
    %v494 = vunpack.c.l.b16 %v430
    %v495 = vunpack.c.l.b16 %v431
    %v496 = vpack.c.b16 %v489, %v488
    %v497 = vpack.c.b16 %v491, %v490
    %v498 = vpack.c.b16 %v493, %v492
    %v499 = vpack.c.b16 %v495, %v494
    %vm500 = vcmask 523264
    %v502 = vsel %vm500, %v496, 0
    %v505 = vsel %vm500, %v497, 0
    %v508 = vsel %vm500, %v498, 0
    %v511 = vsel %vm500, %v499, 0
    %513 = vmatprep.subr.bf16.mxu0 %v417
    %514 = vmatpush1.bf16.msra.mxu0 %v416
    %515 = vmatprep.subr.bf16.mxu0 %v419
    %516 = vmatpush1.bf16.msra.mxu0 %v418
    %517 = vmatprep.subr.bf16.mxu0 %v421
    %518 = vmatpush1.bf16.msra.mxu0 %v420
    %519 = vmatprep.subr.bf16.mxu0 %v423
    %520 = vmatpush1.bf16.msra.mxu0 %v422
    %521 = vmatprep.subr.bf16.mxu0 0
    %522 = vmatpush1.bf16.msra.mxu0 0
    %523 = vmatprep.subr.bf16.mxu0 0
    %524 = vmatpush1.bf16.msra.mxu0 0
    %525 = vmatprep.subr.bf16.mxu0 0
    %526 = vmatpush1.bf16.msra.mxu0 0
    %527 = vmatprep.subr.bf16.mxu0 0
    %528 = vmatpush1.bf16.msra.mxu0 0
    %529 = vmatprep.subr.bf16.mxu0 0
    %530 = vmatpush1.bf16.msra.mxu0 0
    %531 = vmatprep.subr.bf16.mxu0 0
    %532 = vmatpush1.bf16.msra.mxu0 0
    %533 = vmatprep.subr.bf16.mxu0 0
    %534 = vmatpush1.bf16.msra.mxu0 0
    %535 = vmatprep.subr.bf16.mxu0 0
    %536 = vmatpush1.bf16.msra.mxu0 0
    %537 = vmatprep.subr.bf16.mxu0 0
    %538 = vmatpush1.bf16.msra.mxu0 0
    %539 = vmatprep.subr.bf16.mxu0 0
    %540 = vmatpush1.bf16.msra.mxu0 0
    %541 = vmatprep.subr.bf16.mxu0 0
    %542 = vmatpush1.bf16.msra.mxu0 0
    %543 = vmatprep.subr.bf16.mxu0 0
    %544 = vmatpush1.bf16.msra.mxu0 0
    %545 = vmatprep.mubr.bf16.mxu0 0
    %546 = vmatmul.mubr.bf16.gmra.mrb[0].mxu0 %v502
    %v547 = vpop.f32.mrb[0].mxu0
    %v548 = vadd.f32 %v443, %v547
    %v549 = vpop.f32.mrb[0].mxu0
    %v550 = vadd.f32 %v443, %v549
    %v551 = vpop.f32.mrb[0].mxu0
    %v552 = vadd.f32 %v448, %v551
    %v553 = vpop.f32.mrb[0].mxu0
    %v554 = vadd.f32 %v448, %v553
    %555 = vmatprep.mubr.bf16.mxu0 0
    %556 = vmatmul.mubr.bf16.gmra.mrb[0].mxu0 %v505
    %v557 = vpop.f32.mrb[0].mxu0
    %v558 = vadd.f32 %v453, %v557
    %v559 = vpop.f32.mrb[0].mxu0
    %v560 = vadd.f32 %v453, %v559
    %v561 = vpop.f32.mrb[0].mxu0
    %v562 = vadd.f32 %v458, %v561
    %v563 = vpop.f32.mrb[0].mxu0
    %v564 = vadd.f32 %v458, %v563
    %565 = vmatprep.mubr.bf16.mxu0 0
    %566 = vmatmul.mubr.bf16.gmra.mrb[0].mxu0 %v508
    %v567 = vpop.f32.mrb[0].mxu0
    %v568 = vadd.f32 %v463, %v567
    %v569 = vpop.f32.mrb[0].mxu0
    %v570 = vadd.f32 %v463, %v569
    %v571 = vpop.f32.mrb[0].mxu0
    %v572 = vadd.f32 %v468, %v571
    %v573 = vpop.f32.mrb[0].mxu0
    %v574 = vadd.f32 %v468, %v573
    %575 = vmatprep.mubr.bf16.mxu0 0
    %576 = vmatmul.mubr.bf16.gmra.mrb[0].mxu0 %v511
    %v577 = vpop.f32.mrb[0].mxu0
    %v578 = vadd.f32 %v473, %v577
    %v579 = vpop.f32.mrb[0].mxu0
    %v580 = vadd.f32 %v473, %v579
    %v581 = vpop.f32.mrb[0].mxu0
    %v582 = vadd.f32 %v478, %v581
    %v583 = vpop.f32.mrb[0].mxu0
    %v584 = vadd.f32 %v478, %v583
    %585 = vdwg.mxu0
    %v586 = vmax.f32 %v548, 0.0
    %v587 = vmax.f32 %v550, 0.0
    %v588 = vmax.f32 %v552, 0.0
    %v589 = vmax.f32 %v554, 0.0
    %v590 = vmax.f32 %v558, 0.0
    %v591 = vmax.f32 %v560, 0.0
    %v592 = vmax.f32 %v562, 0.0
    %v593 = vmax.f32 %v564, 0.0
    %v594 = vmax.f32 %v568, 0.0
    %v595 = vmax.f32 %v570, 0.0
    %v596 = vmax.f32 %v572, 0.0
    %v597 = vmax.f32 %v574, 0.0
    %v598 = vmax.f32 %v578, 0.0
    %v599 = vmax.f32 %v580, 0.0
    %v600 = vmax.f32 %v582, 0.0
    %v601 = vmax.f32 %v584, 0.0
    %v602 = vpack.c.bf16 %v588, %v586
    %v603 = vpack.c.bf16 %v589, %v587
    %v604 = vpack.c.bf16 %v592, %v590
    %v605 = vpack.c.bf16 %v593, %v591
    %v606 = vpack.c.bf16 %v596, %v594
    %v607 = vpack.c.bf16 %v597, %v595
    %v608 = vpack.c.bf16 %v600, %v598
    %v609 = vpack.c.bf16 %v601, %v599
    %v610 = vld [vmem:[%s5] sm:$0xf]
    %v611 = vld [vmem:[%s5 + $0x4] sm:$0xf]
    %v612 = vld [vmem:[%s5 + $0x8] sm:$0xf]
    %v613 = vld [vmem:[%s5 + $0xc] sm:$0xf]
    %v614 = vld [vmem:[%s5 + $0x10] sm:$0xf]
    %v615 = vld [vmem:[%s5 + $0x14] sm:$0xf]
    %v616 = vld [vmem:[%s5 + $0x18] sm:$0xf]
    %v617 = vld [vmem:[%s5 + $0x1c] sm:$0xf]
    %v618 = vld [vmem:[%s6] sm:$0xff]
    %v619 = vld [vmem:[%s6 + $0x8] sm:$0xff]
    %v620 = vld [vmem:[%s6 + $0x10] sm:$0xff]
    %v621 = vld [vmem:[%s6 + $0x18] sm:$0xff]
    %v622 = vld [vmem:[%s6 + $0x20] sm:$0xff]
    %v623 = vld [vmem:[%s6 + $0x28] sm:$0xff]
    %v624 = vld [vmem:[%s6 + $0x30] sm:$0xff]
    %v625 = vld [vmem:[%s6 + $0x38] sm:$0xff]
    %627 = vset.pattern.permute.xlu0 0
    %628 = vperm.xlu0 %627, %v618
    %v629 = vpop.permute.xlu0 %628
    %632 = vset.pattern.permute.xlu0 0
    %633 = vperm.xlu0 %632, %v619
    %v634 = vpop.permute.xlu0 %633
    %637 = vset.pattern.permute.xlu0 0
    %638 = vperm.xlu0 %637, %v620
    %v639 = vpop.permute.xlu0 %638
    %642 = vset.pattern.permute.xlu0 0
    %643 = vperm.xlu0 %642, %v621
    %v644 = vpop.permute.xlu0 %643
    %647 = vset.pattern.permute.xlu0 0
    %648 = vperm.xlu0 %647, %v622
    %v649 = vpop.permute.xlu0 %648
    %652 = vset.pattern.permute.xlu0 0
    %653 = vperm.xlu0 %652, %v623
    %v654 = vpop.permute.xlu0 %653
    %657 = vset.pattern.permute.xlu0 0
    %658 = vperm.xlu0 %657, %v624
    %v659 = vpop.permute.xlu0 %658
    %662 = vset.pattern.permute.xlu0 0
    %663 = vperm.xlu0 %662, %v625
    %v664 = vpop.permute.xlu0 %663
    %v674 = vunpack.c.l.b16 %v610
    %v675 = vunpack.c.l.b16 %v611
    %v676 = vunpack.c.l.b16 %v612
    %v677 = vunpack.c.l.b16 %v613
    %v678 = vunpack.c.l.b16 %v614
    %v679 = vunpack.c.l.b16 %v615
    %v680 = vunpack.c.l.b16 %v616
    %v681 = vunpack.c.l.b16 %v617
    %v682 = vpack.c.b16 %v675, %v674
    %v683 = vpack.c.b16 %v677, %v676
    %v684 = vpack.c.b16 %v679, %v678
    %v685 = vpack.c.b16 %v681, %v680
    %v687 = vsel %vm500, %v682, 0
    %v690 = vsel %vm500, %v683, 0
    %v693 = vsel %vm500, %v684, 0
    %v696 = vsel %vm500, %v685, 0
    %698 = vmatprep.subr.bf16.mxu0 %v603
    %699 = vmatpush1.bf16.msra.mxu0 %v602
    %700 = vmatprep.subr.bf16.mxu0 %v605
    %701 = vmatpush1.bf16.msra.mxu0 %v604
    %702 = vmatprep.subr.bf16.mxu0 %v607
    %703 = vmatpush1.bf16.msra.mxu0 %v606
    %704 = vmatprep.subr.bf16.mxu0 %v609
    %705 = vmatpush1.bf16.msra.mxu0 %v608
    %706 = vmatprep.subr.bf16.mxu0 0
    %707 = vmatpush1.bf16.msra.mxu0 0
    %708 = vmatprep.subr.bf16.mxu0 0
    %709 = vmatpush1.bf16.msra.mxu0 0
    %710 = vmatprep.subr.bf16.mxu0 0
    %711 = vmatpush1.bf16.msra.mxu0 0
    %712 = vmatprep.subr.bf16.mxu0 0
    %713 = vmatpush1.bf16.msra.mxu0 0
    %714 = vmatprep.subr.bf16.mxu0 0
    %715 = vmatpush1.bf16.msra.mxu0 0
    %716 = vmatprep.subr.bf16.mxu0 0
    %717 = vmatpush1.bf16.msra.mxu0 0
    %718 = vmatprep.subr.bf16.mxu0 0
    %719 = vmatpush1.bf16.msra.mxu0 0
    %720 = vmatprep.subr.bf16.mxu0 0
    %721 = vmatpush1.bf16.msra.mxu0 0
    %722 = vmatprep.subr.bf16.mxu0 0
    %723 = vmatpush1.bf16.msra.mxu0 0
    %724 = vmatprep.subr.bf16.mxu0 0
    %725 = vmatpush1.bf16.msra.mxu0 0
    %726 = vmatprep.subr.bf16.mxu0 0
    %727 = vmatpush1.bf16.msra.mxu0 0
    %728 = vmatprep.subr.bf16.mxu0 0
    %729 = vmatpush1.bf16.msra.mxu0 0
    %730 = vmatprep.mubr.bf16.mxu0 0
    %731 = vmatmul.mubr.bf16.gmra.mrb[0].mxu0 %v687
    %v732 = vpop.f32.mrb[0].mxu0
    %v733 = vadd.f32 %v629, %v732
    %v734 = vpop.f32.mrb[0].mxu0
    %v735 = vadd.f32 %v629, %v734
    %v736 = vpop.f32.mrb[0].mxu0
    %v737 = vadd.f32 %v634, %v736
    %v738 = vpop.f32.mrb[0].mxu0
    %v739 = vadd.f32 %v634, %v738
    %740 = vmatprep.mubr.bf16.mxu0 0
    %741 = vmatmul.mubr.bf16.gmra.mrb[0].mxu0 %v690
    %v742 = vpop.f32.mrb[0].mxu0
    %v743 = vadd.f32 %v639, %v742
    %v744 = vpop.f32.mrb[0].mxu0
    %v745 = vadd.f32 %v639, %v744
    %v746 = vpop.f32.mrb[0].mxu0
    %v747 = vadd.f32 %v644, %v746
    %v748 = vpop.f32.mrb[0].mxu0
    %v749 = vadd.f32 %v644, %v748
    %750 = vmatprep.mubr.bf16.mxu0 0
    %751 = vmatmul.mubr.bf16.gmra.mrb[0].mxu0 %v693
    %v752 = vpop.f32.mrb[0].mxu0
    %v753 = vadd.f32 %v649, %v752
    %v754 = vpop.f32.mrb[0].mxu0
    %v755 = vadd.f32 %v649, %v754
    %v756 = vpop.f32.mrb[0].mxu0
    %v757 = vadd.f32 %v654, %v756
    %v758 = vpop.f32.mrb[0].mxu0
    %v759 = vadd.f32 %v654, %v758
    %760 = vmatprep.mubr.bf16.mxu0 0
    %761 = vmatmul.mubr.bf16.gmra.mrb[0].mxu0 %v696
    %v762 = vpop.f32.mrb[0].mxu0
    %v763 = vadd.f32 %v659, %v762
    %v764 = vpop.f32.mrb[0].mxu0
    %v765 = vadd.f32 %v659, %v764
    %v766 = vpop.f32.mrb[0].mxu0
    %v767 = vadd.f32 %v664, %v766
    %v768 = vpop.f32.mrb[0].mxu0
    %v769 = vadd.f32 %v664, %v768
    %770 = vdwg.mxu0
    %v771 = vmax.f32 %v733, 0.0
    %v772 = vmax.f32 %v735, 0.0
    %v773 = vmax.f32 %v737, 0.0
    %v774 = vmax.f32 %v739, 0.0
    %v775 = vmax.f32 %v743, 0.0
    %v776 = vmax.f32 %v745, 0.0
    %v777 = vmax.f32 %v747, 0.0
    %v778 = vmax.f32 %v749, 0.0
    %v779 = vmax.f32 %v753, 0.0
    %v780 = vmax.f32 %v755, 0.0
    %v781 = vmax.f32 %v757, 0.0
    %v782 = vmax.f32 %v759, 0.0
    %v783 = vmax.f32 %v763, 0.0
    %v784 = vmax.f32 %v765, 0.0
    %v785 = vmax.f32 %v767, 0.0
    %v786 = vmax.f32 %v769, 0.0
    %v787 = vpack.c.bf16 %v773, %v771
    %v788 = vpack.c.bf16 %v774, %v772
    %v789 = vpack.c.bf16 %v777, %v775
    %v790 = vpack.c.bf16 %v778, %v776
    %v791 = vpack.c.bf16 %v781, %v779
    %v792 = vpack.c.bf16 %v782, %v780
    %v793 = vpack.c.bf16 %v785, %v783
    %v794 = vpack.c.bf16 %v786, %v784
    %v795 = vld [vmem:[%s7] sm:$0xf]
    %v796 = vld [vmem:[%s7 + $0x4] sm:$0xf]
    %v797 = vld [vmem:[%s7 + $0x8] sm:$0xf]
    %v798 = vld [vmem:[%s7 + $0xc] sm:$0xf]
    %v799 = vld [vmem:[%s7 + $0x10] sm:$0xf]
    %v800 = vld [vmem:[%s7 + $0x14] sm:$0xf]
    %v801 = vld [vmem:[%s7 + $0x18] sm:$0xf]
    %v802 = vld [vmem:[%s7 + $0x1c] sm:$0xf]
    %v803 = vld [vmem:[%s7 + $0x20] sm:$0xf]
    %v804 = vld [vmem:[%s7 + $0x24] sm:$0xf]
    %v805 = vld [vmem:[%s7 + $0x28] sm:$0xf]
    %v806 = vld [vmem:[%s7 + $0x2c] sm:$0xf]
    %v807 = vld [vmem:[%s7 + $0x30] sm:$0xf]
    %v808 = vld [vmem:[%s7 + $0x34] sm:$0xf]
    %v809 = vld [vmem:[%s7 + $0x38] sm:$0xf]
    %v810 = vld [vmem:[%s7 + $0x3c] sm:$0xf]
    %v811 = vld [vmem:[%s8] sm:$0xff]
    %v812 = vld [vmem:[%s8 + $0x8] sm:$0xff]
    %v813 = vld [vmem:[%s8 + $0x10] sm:$0xff]
    %v814 = vld [vmem:[%s8 + $0x18] sm:$0xff]
    %v815 = vld [vmem:[%s8 + $0x20] sm:$0xff]
    %v816 = vld [vmem:[%s8 + $0x28] sm:$0xff]
    %v817 = vld [vmem:[%s8 + $0x30] sm:$0xff]
    %v818 = vld [vmem:[%s8 + $0x38] sm:$0xff]
    %v819 = vld [vmem:[%s8 + $0x40] sm:$0xff]
    %v820 = vld [vmem:[%s8 + $0x48] sm:$0xff]
    %v821 = vld [vmem:[%s8 + $0x50] sm:$0xff]
    %v822 = vld [vmem:[%s8 + $0x58] sm:$0xff]
    %v823 = vld [vmem:[%s8 + $0x60] sm:$0xff]
    %v824 = vld [vmem:[%s8 + $0x68] sm:$0xff]
    %v825 = vld [vmem:[%s8 + $0x70] sm:$0xff]
    %v826 = vld [vmem:[%s8 + $0x78] sm:$0xff]
    %828 = vset.pattern.permute.xlu0 0
    %829 = vperm.xlu0 %828, %v811
    %v830 = vpop.permute.xlu0 %829
    %833 = vset.pattern.permute.xlu0 0
    %834 = vperm.xlu0 %833, %v812
    %v835 = vpop.permute.xlu0 %834
    %838 = vset.pattern.permute.xlu0 0
    %839 = vperm.xlu0 %838, %v813
    %v840 = vpop.permute.xlu0 %839
    %843 = vset.pattern.permute.xlu0 0
    %844 = vperm.xlu0 %843, %v814
    %v845 = vpop.permute.xlu0 %844
    %848 = vset.pattern.permute.xlu0 0
    %849 = vperm.xlu0 %848, %v815
    %v850 = vpop.permute.xlu0 %849
    %853 = vset.pattern.permute.xlu0 0
    %854 = vperm.xlu0 %853, %v816
    %v855 = vpop.permute.xlu0 %854
    %858 = vset.pattern.permute.xlu0 0
    %859 = vperm.xlu0 %858, %v817
    %v860 = vpop.permute.xlu0 %859
    %863 = vset.pattern.permute.xlu0 0
    %864 = vperm.xlu0 %863, %v818
    %v865 = vpop.permute.xlu0 %864
    %868 = vset.pattern.permute.xlu0 0
    %869 = vperm.xlu0 %868, %v819
    %v870 = vpop.permute.xlu0 %869
    %873 = vset.pattern.permute.xlu0 0
    %874 = vperm.xlu0 %873, %v820
    %v875 = vpop.permute.xlu0 %874
    %878 = vset.pattern.permute.xlu0 0
    %879 = vperm.xlu0 %878, %v821
    %v880 = vpop.permute.xlu0 %879
    %883 = vset.pattern.permute.xlu0 0
    %884 = vperm.xlu0 %883, %v822
    %v885 = vpop.permute.xlu0 %884
    %888 = vset.pattern.permute.xlu0 0
    %889 = vperm.xlu0 %888, %v823
    %v890 = vpop.permute.xlu0 %889
    %893 = vset.pattern.permute.xlu0 0
    %894 = vperm.xlu0 %893, %v824
    %v895 = vpop.permute.xlu0 %894
    %898 = vset.pattern.permute.xlu0 0
    %899 = vperm.xlu0 %898, %v825
    %v900 = vpop.permute.xlu0 %899
    %903 = vset.pattern.permute.xlu0 0
    %904 = vperm.xlu0 %903, %v826
    %v905 = vpop.permute.xlu0 %904
    %v923 = vunpack.c.l.b16 %v795
    %v924 = vunpack.c.l.b16 %v796
    %v925 = vunpack.c.l.b16 %v797
    %v926 = vunpack.c.l.b16 %v798
    %v927 = vunpack.c.l.b16 %v799
    %v928 = vunpack.c.l.b16 %v800
    %v929 = vunpack.c.l.b16 %v801
    %v930 = vunpack.c.l.b16 %v802
    %v931 = vunpack.c.l.b16 %v803
    %v932 = vunpack.c.l.b16 %v804
    %v933 = vunpack.c.l.b16 %v805
    %v934 = vunpack.c.l.b16 %v806
    %v935 = vunpack.c.l.b16 %v807
    %v936 = vunpack.c.l.b16 %v808
    %v937 = vunpack.c.l.b16 %v809
    %v938 = vunpack.c.l.b16 %v810
    %v939 = vpack.c.b16 %v924, %v923
    %v940 = vpack.c.b16 %v926, %v925
    %v941 = vpack.c.b16 %v928, %v927
    %v942 = vpack.c.b16 %v930, %v929
    %v943 = vpack.c.b16 %v932, %v931
    %v944 = vpack.c.b16 %v934, %v933
    %v945 = vpack.c.b16 %v936, %v935
    %v946 = vpack.c.b16 %v938, %v937
    %v948 = vsel %vm500, %v939, 0
    %v951 = vsel %vm500, %v940, 0
    %v954 = vsel %vm500, %v941, 0
    %v957 = vsel %vm500, %v942, 0
    %v960 = vsel %vm500, %v943, 0
    %v963 = vsel %vm500, %v944, 0
    %v966 = vsel %vm500, %v945, 0
    %v969 = vsel %vm500, %v946, 0
    %971 = vmatprep.subr.bf16.mxu0 %v788
    %972 = vmatpush1.bf16.msra.mxu0 %v787
    %973 = vmatprep.subr.bf16.mxu0 %v790
    %974 = vmatpush1.bf16.msra.mxu0 %v789
    %975 = vmatprep.subr.bf16.mxu0 %v792
    %976 = vmatpush1.bf16.msra.mxu0 %v791
    %977 = vmatprep.subr.bf16.mxu0 %v794
    %978 = vmatpush1.bf16.msra.mxu0 %v793
    %979 = vmatprep.subr.bf16.mxu0 0
    %980 = vmatpush1.bf16.msra.mxu0 0
    %981 = vmatprep.subr.bf16.mxu0 0
    %982 = vmatpush1.bf16.msra.mxu0 0
    %983 = vmatprep.subr.bf16.mxu0 0
    %984 = vmatpush1.bf16.msra.mxu0 0
    %985 = vmatprep.subr.bf16.mxu0 0
    %986 = vmatpush1.bf16.msra.mxu0 0
    %987 = vmatprep.subr.bf16.mxu0 0
    %988 = vmatpush1.bf16.msra.mxu0 0
    %989 = vmatprep.subr.bf16.mxu0 0
    %990 = vmatpush1.bf16.msra.mxu0 0
    %991 = vmatprep.subr.bf16.mxu0 0
    %992 = vmatpush1.bf16.msra.mxu0 0
    %993 = vmatprep.subr.bf16.mxu0 0
    %994 = vmatpush1.bf16.msra.mxu0 0
    %995 = vmatprep.subr.bf16.mxu0 0
    %996 = vmatpush1.bf16.msra.mxu0 0
    %997 = vmatprep.subr.bf16.mxu0 0
    %998 = vmatpush1.bf16.msra.mxu0 0
    %999 = vmatprep.subr.bf16.mxu0 0
    %1000 = vmatpush1.bf16.msra.mxu0 0
    %1001 = vmatprep.subr.bf16.mxu0 0
    %1002 = vmatpush1.bf16.msra.mxu0 0
    %1003 = vmatprep.mubr.bf16.mxu0 0
    %1004 = vmatmul.mubr.bf16.gmra.mrb[0].mxu0 %v948
    %v1005 = vpop.f32.mrb[0].mxu0
    %v1006 = vadd.f32 %v830, %v1005
    %v1007 = vpop.f32.mrb[0].mxu0
    %v1008 = vadd.f32 %v830, %v1007
    %v1009 = vpop.f32.mrb[0].mxu0
    %v1010 = vadd.f32 %v835, %v1009
    %v1011 = vpop.f32.mrb[0].mxu0
    %v1012 = vadd.f32 %v835, %v1011
    %1013 = vmatprep.mubr.bf16.mxu0 0
    %1014 = vmatmul.mubr.bf16.gmra.mrb[0].mxu0 %v951
    %v1015 = vpop.f32.mrb[0].mxu0
    %v1016 = vadd.f32 %v840, %v1015
    %v1017 = vpop.f32.mrb[0].mxu0
    %v1018 = vadd.f32 %v840, %v1017
    %v1019 = vpop.f32.mrb[0].mxu0
    %v1020 = vadd.f32 %v845, %v1019
    %v1021 = vpop.f32.mrb[0].mxu0
    %v1022 = vadd.f32 %v845, %v1021
    %1023 = vmatprep.mubr.bf16.mxu0 0
    %1024 = vmatmul.mubr.bf16.gmra.mrb[0].mxu0 %v954
    %v1025 = vpop.f32.mrb[0].mxu0
    %v1026 = vadd.f32 %v850, %v1025
    %v1027 = vpop.f32.mrb[0].mxu0
    %v1028 = vadd.f32 %v850, %v1027
    %v1029 = vpop.f32.mrb[0].mxu0
    %v1030 = vadd.f32 %v855, %v1029
    %v1031 = vpop.f32.mrb[0].mxu0
    %v1032 = vadd.f32 %v855, %v1031
    %1033 = vmatprep.mubr.bf16.mxu0 0
    %1034 = vmatmul.mubr.bf16.gmra.mrb[0].mxu0 %v957
    %v1035 = vpop.f32.mrb[0].mxu0
    %v1036 = vadd.f32 %v860, %v1035
    %v1037 = vpop.f32.mrb[0].mxu0
    %v1038 = vadd.f32 %v860, %v1037
    %v1039 = vpop.f32.mrb[0].mxu0
    %v1040 = vadd.f32 %v865, %v1039
    %v1041 = vpop.f32.mrb[0].mxu0
    %v1042 = vadd.f32 %v865, %v1041
    %1043 = vmatprep.mubr.bf16.mxu0 0
    %1044 = vmatmul.mubr.bf16.gmra.mrb[0].mxu0 %v960
    %v1045 = vpop.f32.mrb[0].mxu0
    %v1046 = vadd.f32 %v870, %v1045
    %v1047 = vpop.f32.mrb[0].mxu0
    %v1048 = vadd.f32 %v870, %v1047
    %v1049 = vpop.f32.mrb[0].mxu0
    %v1050 = vadd.f32 %v875, %v1049
    %v1051 = vpop.f32.mrb[0].mxu0
    %v1052 = vadd.f32 %v875, %v1051
    %1053 = vmatprep.mubr.bf16.mxu0 0
    %1054 = vmatmul.mubr.bf16.gmra.mrb[0].mxu0 %v963
    %v1055 = vpop.f32.mrb[0].mxu0
    %v1056 = vadd.f32 %v880, %v1055
    %v1057 = vpop.f32.mrb[0].mxu0
    %v1058 = vadd.f32 %v880, %v1057
    %v1059 = vpop.f32.mrb[0].mxu0
    %v1060 = vadd.f32 %v885, %v1059
    %v1061 = vpop.f32.mrb[0].mxu0
    %v1062 = vadd.f32 %v885, %v1061
    %1063 = vmatprep.mubr.bf16.mxu0 0
    %1064 = vmatmul.mubr.bf16.gmra.mrb[0].mxu0 %v966
    %v1065 = vpop.f32.mrb[0].mxu0
    %v1066 = vadd.f32 %v890, %v1065
    %v1067 = vpop.f32.mrb[0].mxu0
    %v1068 = vadd.f32 %v890, %v1067
    %v1069 = vpop.f32.mrb[0].mxu0
    %v1070 = vadd.f32 %v895, %v1069
    %v1071 = vpop.f32.mrb[0].mxu0
    %v1072 = vadd.f32 %v895, %v1071
    %1073 = vmatprep.mubr.bf16.mxu0 0
    %1074 = vmatmul.mubr.bf16.gmra.mrb[0].mxu0 %v969
    %v1075 = vpop.f32.mrb[0].mxu0
    %v1076 = vadd.f32 %v900, %v1075
    %v1077 = vpop.f32.mrb[0].mxu0
    %v1078 = vadd.f32 %v900, %v1077
    %v1079 = vpop.f32.mrb[0].mxu0
    %v1080 = vadd.f32 %v905, %v1079
    %v1081 = vpop.f32.mrb[0].mxu0
    %v1082 = vadd.f32 %v905, %v1081
    %1083 = vdwg.mxu0
    %v1084 = vmax.f32 %v1006, 0.0
    %v1085 = vmax.f32 %v1008, 0.0
    %v1086 = vmax.f32 %v1010, 0.0
    %v1087 = vmax.f32 %v1012, 0.0
    %v1088 = vmax.f32 %v1016, 0.0
    %v1089 = vmax.f32 %v1018, 0.0
    %v1090 = vmax.f32 %v1020, 0.0
    %v1091 = vmax.f32 %v1022, 0.0
    %v1092 = vmax.f32 %v1026, 0.0
    %v1093 = vmax.f32 %v1028, 0.0
    %v1094 = vmax.f32 %v1030, 0.0
    %v1095 = vmax.f32 %v1032, 0.0
    %v1096 = vmax.f32 %v1036, 0.0
    %v1097 = vmax.f32 %v1038, 0.0
    %v1098 = vmax.f32 %v1040, 0.0
    %v1099 = vmax.f32 %v1042, 0.0
    %v1100 = vmax.f32 %v1046, 0.0
    %v1101 = vmax.f32 %v1048, 0.0
    %v1102 = vmax.f32 %v1050, 0.0
    %v1103 = vmax.f32 %v1052, 0.0
    %v1104 = vmax.f32 %v1056, 0.0
    %v1105 = vmax.f32 %v1058, 0.0
    %v1106 = vmax.f32 %v1060, 0.0
    %v1107 = vmax.f32 %v1062, 0.0
    %v1108 = vmax.f32 %v1066, 0.0
    %v1109 = vmax.f32 %v1068, 0.0
    %v1110 = vmax.f32 %v1070, 0.0
    %v1111 = vmax.f32 %v1072, 0.0
    %v1112 = vmax.f32 %v1076, 0.0
    %v1113 = vmax.f32 %v1078, 0.0
    %v1114 = vmax.f32 %v1080, 0.0
    %v1115 = vmax.f32 %v1082, 0.0
    %v1116 = vpack.c.bf16 %v1086, %v1084
    %v1117 = vpack.c.bf16 %v1087, %v1085
    %v1118 = vpack.c.bf16 %v1090, %v1088
    %v1119 = vpack.c.bf16 %v1091, %v1089
    %v1120 = vpack.c.bf16 %v1094, %v1092
    %v1121 = vpack.c.bf16 %v1095, %v1093
    %v1122 = vpack.c.bf16 %v1098, %v1096
    %v1123 = vpack.c.bf16 %v1099, %v1097
    %v1124 = vpack.c.bf16 %v1102, %v1100
    %v1125 = vpack.c.bf16 %v1103, %v1101
    %v1126 = vpack.c.bf16 %v1106, %v1104
    %v1127 = vpack.c.bf16 %v1107, %v1105
    %v1128 = vpack.c.bf16 %v1110, %v1108
    %v1129 = vpack.c.bf16 %v1111, %v1109
    %v1130 = vpack.c.bf16 %v1114, %v1112
    %v1131 = vpack.c.bf16 %v1115, %v1113
    %v1132 = vld [vmem:[%s9] sm:$0xf]
    %v1133 = vld [vmem:[%s9 + $0x4] sm:$0xf]
    %v1134 = vld [vmem:[%s9 + $0x8] sm:$0xf]
    %v1135 = vld [vmem:[%s9 + $0xc] sm:$0xf]
    %v1136 = vld [vmem:[%s9 + $0x10] sm:$0xf]
    %v1137 = vld [vmem:[%s9 + $0x14] sm:$0xf]
    %v1138 = vld [vmem:[%s9 + $0x18] sm:$0xf]
    %v1139 = vld [vmem:[%s9 + $0x1c] sm:$0xf]
    %v1140 = vld [vmem:[%s9 + $0x20] sm:$0xf]
    %v1141 = vld [vmem:[%s9 + $0x24] sm:$0xf]
    %v1142 = vld [vmem:[%s9 + $0x28] sm:$0xf]
    %v1143 = vld [vmem:[%s9 + $0x2c] sm:$0xf]
    %v1144 = vld [vmem:[%s9 + $0x30] sm:$0xf]
    %v1145 = vld [vmem:[%s9 + $0x34] sm:$0xf]
    %v1146 = vld [vmem:[%s9 + $0x38] sm:$0xf]
    %v1147 = vld [vmem:[%s9 + $0x3c] sm:$0xf]
    %v1148 = vld [vmem:[%s10] sm:$0xff]
    %v1149 = vld [vmem:[%s10 + $0x8] sm:$0xff]
    %v1150 = vld [vmem:[%s10 + $0x10] sm:$0xff]
    %v1151 = vld [vmem:[%s10 + $0x18] sm:$0xff]
    %v1152 = vld [vmem:[%s10 + $0x20] sm:$0xff]
    %v1153 = vld [vmem:[%s10 + $0x28] sm:$0xff]
    %v1154 = vld [vmem:[%s10 + $0x30] sm:$0xff]
    %v1155 = vld [vmem:[%s10 + $0x38] sm:$0xff]
    %v1156 = vld [vmem:[%s10 + $0x40] sm:$0xff]
    %v1157 = vld [vmem:[%s10 + $0x48] sm:$0xff]
    %v1158 = vld [vmem:[%s10 + $0x50] sm:$0xff]
    %v1159 = vld [vmem:[%s10 + $0x58] sm:$0xff]
    %v1160 = vld [vmem:[%s10 + $0x60] sm:$0xff]
    %v1161 = vld [vmem:[%s10 + $0x68] sm:$0xff]
    %v1162 = vld [vmem:[%s10 + $0x70] sm:$0xff]
    %v1163 = vld [vmem:[%s10 + $0x78] sm:$0xff]
    %1165 = vset.pattern.permute.xlu0 0
    %1166 = vperm.xlu0 %1165, %v1148
    %v1167 = vpop.permute.xlu0 %1166
    %1170 = vset.pattern.permute.xlu0 0
    %1171 = vperm.xlu0 %1170, %v1149
    %v1172 = vpop.permute.xlu0 %1171
    %1175 = vset.pattern.permute.xlu0 0
    %1176 = vperm.xlu0 %1175, %v1150
    %v1177 = vpop.permute.xlu0 %1176
    %1180 = vset.pattern.permute.xlu0 0
    %1181 = vperm.xlu0 %1180, %v1151
    %v1182 = vpop.permute.xlu0 %1181
    %1185 = vset.pattern.permute.xlu0 0
    %1186 = vperm.xlu0 %1185, %v1152
    %v1187 = vpop.permute.xlu0 %1186
    %1190 = vset.pattern.permute.xlu0 0
    %1191 = vperm.xlu0 %1190, %v1153
    %v1192 = vpop.permute.xlu0 %1191
    %1195 = vset.pattern.permute.xlu0 0
    %1196 = vperm.xlu0 %1195, %v1154
    %v1197 = vpop.permute.xlu0 %1196
    %1200 = vset.pattern.permute.xlu0 0
    %1201 = vperm.xlu0 %1200, %v1155
    %v1202 = vpop.permute.xlu0 %1201
    %1205 = vset.pattern.permute.xlu0 0
    %1206 = vperm.xlu0 %1205, %v1156
    %v1207 = vpop.permute.xlu0 %1206
    %1210 = vset.pattern.permute.xlu0 0
    %1211 = vperm.xlu0 %1210, %v1157
    %v1212 = vpop.permute.xlu0 %1211
    %1215 = vset.pattern.permute.xlu0 0
    %1216 = vperm.xlu0 %1215, %v1158
    %v1217 = vpop.permute.xlu0 %1216
    %1220 = vset.pattern.permute.xlu0 0
    %1221 = vperm.xlu0 %1220, %v1159
    %v1222 = vpop.permute.xlu0 %1221
    %1225 = vset.pattern.permute.xlu0 0
    %1226 = vperm.xlu0 %1225, %v1160
    %v1227 = vpop.permute.xlu0 %1226
    %1230 = vset.pattern.permute.xlu0 0
    %1231 = vperm.xlu0 %1230, %v1161
    %v1232 = vpop.permute.xlu0 %1231
    %1235 = vset.pattern.permute.xlu0 0
    %1236 = vperm.xlu0 %1235, %v1162
    %v1237 = vpop.permute.xlu0 %1236
    %1240 = vset.pattern.permute.xlu0 0
    %1241 = vperm.xlu0 %1240, %v1163
    %v1242 = vpop.permute.xlu0 %1241
    %v1260 = vunpack.c.l.b16 %v1132
    %v1261 = vunpack.c.l.b16 %v1133
    %v1262 = vunpack.c.l.b16 %v1134
    %v1263 = vunpack.c.l.b16 %v1135
    %v1264 = vunpack.c.l.b16 %v1136
    %v1265 = vunpack.c.l.b16 %v1137
    %v1266 = vunpack.c.l.b16 %v1138
    %v1267 = vunpack.c.l.b16 %v1139
    %v1268 = vunpack.c.l.b16 %v1140
    %v1269 = vunpack.c.l.b16 %v1141
    %v1270 = vunpack.c.l.b16 %v1142
    %v1271 = vunpack.c.l.b16 %v1143
    %v1272 = vunpack.c.l.b16 %v1144
    %v1273 = vunpack.c.l.b16 %v1145
    %v1274 = vunpack.c.l.b16 %v1146
    %v1275 = vunpack.c.l.b16 %v1147
    %v1276 = vpack.c.b16 %v1261, %v1260
    %v1277 = vpack.c.b16 %v1263, %v1262
    %v1278 = vpack.c.b16 %v1265, %v1264
    %v1279 = vpack.c.b16 %v1267, %v1266
    %v1280 = vpack.c.b16 %v1269, %v1268
    %v1281 = vpack.c.b16 %v1271, %v1270
    %v1282 = vpack.c.b16 %v1273, %v1272
    %v1283 = vpack.c.b16 %v1275, %v1274
    %1292 = vmatprep.subr.bf16.mxu0 %v1117
    %1293 = vmatpush1.bf16.msra.mxu0 %v1116
    %1294 = vmatprep.subr.bf16.mxu0 %v1119
    %1295 = vmatpush1.bf16.msra.mxu0 %v1118
    %1296 = vmatprep.subr.bf16.mxu0 %v1121
    %1297 = vmatpush1.bf16.msra.mxu0 %v1120
    %1298 = vmatprep.subr.bf16.mxu0 %v1123
    %1299 = vmatpush1.bf16.msra.mxu0 %v1122
    %1300 = vmatprep.subr.bf16.mxu0 %v1125
    %1301 = vmatpush1.bf16.msra.mxu0 %v1124
    %1302 = vmatprep.subr.bf16.mxu0 %v1127
    %1303 = vmatpush1.bf16.msra.mxu0 %v1126
    %1304 = vmatprep.subr.bf16.mxu0 %v1129
    %1305 = vmatpush1.bf16.msra.mxu0 %v1128
    %1306 = vmatprep.subr.bf16.mxu0 %v1131
    %1307 = vmatpush1.bf16.msra.mxu0 %v1130
    %1308 = vmatprep.subr.bf16.mxu0 0
    %1309 = vmatpush1.bf16.msra.mxu0 0
    %1310 = vmatprep.subr.bf16.mxu0 0
    %1311 = vmatpush1.bf16.msra.mxu0 0
    %1312 = vmatprep.subr.bf16.mxu0 0
    %1313 = vmatpush1.bf16.msra.mxu0 0
    %1314 = vmatprep.subr.bf16.mxu0 0
    %1315 = vmatpush1.bf16.msra.mxu0 0
    %1316 = vmatprep.subr.bf16.mxu0 0
    %1317 = vmatpush1.bf16.msra.mxu0 0
    %1318 = vmatprep.subr.bf16.mxu0 0
    %1319 = vmatpush1.bf16.msra.mxu0 0
    %1320 = vmatprep.subr.bf16.mxu0 0
    %1321 = vmatpush1.bf16.msra.mxu0 0
    %1322 = vmatprep.subr.bf16.mxu0 0
    %1323 = vmatpush1.bf16.msra.mxu0 0
    %1324 = vmatprep.mubr.bf16.mxu0 0
    %1325 = vmatmul.mubr.bf16.gmra.mrb[0].mxu0 %v1276
    %v1326 = vpop.f32.mrb[0].mxu0
    %v1327 = vadd.f32 %v1167, %v1326
    %v1328 = vpop.f32.mrb[0].mxu0
    %v1329 = vadd.f32 %v1167, %v1328
    %v1330 = vpop.f32.mrb[0].mxu0
    %v1331 = vadd.f32 %v1172, %v1330
    %v1332 = vpop.f32.mrb[0].mxu0
    %v1333 = vadd.f32 %v1172, %v1332
    %1334 = vmatprep.mubr.bf16.mxu0 0
    %1335 = vmatmul.mubr.bf16.gmra.mrb[0].mxu0 %v1277
    %v1336 = vpop.f32.mrb[0].mxu0
    %v1337 = vadd.f32 %v1177, %v1336
    %v1338 = vpop.f32.mrb[0].mxu0
    %v1339 = vadd.f32 %v1177, %v1338
    %v1340 = vpop.f32.mrb[0].mxu0
    %v1341 = vadd.f32 %v1182, %v1340
    %v1342 = vpop.f32.mrb[0].mxu0
    %v1343 = vadd.f32 %v1182, %v1342
    %1344 = vmatprep.mubr.bf16.mxu0 0
    %1345 = vmatmul.mubr.bf16.gmra.mrb[0].mxu0 %v1278
    %v1346 = vpop.f32.mrb[0].mxu0
    %v1347 = vadd.f32 %v1187, %v1346
    %v1348 = vpop.f32.mrb[0].mxu0
    %v1349 = vadd.f32 %v1187, %v1348
    %v1350 = vpop.f32.mrb[0].mxu0
    %v1351 = vadd.f32 %v1192, %v1350
    %v1352 = vpop.f32.mrb[0].mxu0
    %v1353 = vadd.f32 %v1192, %v1352
    %1354 = vmatprep.mubr.bf16.mxu0 0
    %1355 = vmatmul.mubr.bf16.gmra.mrb[0].mxu0 %v1279
    %v1356 = vpop.f32.mrb[0].mxu0
    %v1357 = vadd.f32 %v1197, %v1356
    %v1358 = vpop.f32.mrb[0].mxu0
    %v1359 = vadd.f32 %v1197, %v1358
    %v1360 = vpop.f32.mrb[0].mxu0
    %v1361 = vadd.f32 %v1202, %v1360
    %v1362 = vpop.f32.mrb[0].mxu0
    %v1363 = vadd.f32 %v1202, %v1362
    %1364 = vmatprep.mubr.bf16.mxu0 0
    %1365 = vmatmul.mubr.bf16.gmra.mrb[0].mxu0 %v1280
    %v1366 = vpop.f32.mrb[0].mxu0
    %v1367 = vadd.f32 %v1207, %v1366
    %v1368 = vpop.f32.mrb[0].mxu0
    %v1369 = vadd.f32 %v1207, %v1368
    %v1370 = vpop.f32.mrb[0].mxu0
    %v1371 = vadd.f32 %v1212, %v1370
    %v1372 = vpop.f32.mrb[0].mxu0
    %v1373 = vadd.f32 %v1212, %v1372
    %1374 = vmatprep.mubr.bf16.mxu0 0
    %1375 = vmatmul.mubr.bf16.gmra.mrb[0].mxu0 %v1281
    %v1376 = vpop.f32.mrb[0].mxu0
    %v1377 = vadd.f32 %v1217, %v1376
    %v1378 = vpop.f32.mrb[0].mxu0
    %v1379 = vadd.f32 %v1217, %v1378
    %v1380 = vpop.f32.mrb[0].mxu0
    %v1381 = vadd.f32 %v1222, %v1380
    %v1382 = vpop.f32.mrb[0].mxu0
    %v1383 = vadd.f32 %v1222, %v1382
    %1384 = vmatprep.mubr.bf16.mxu0 0
    %1385 = vmatmul.mubr.bf16.gmra.mrb[0].mxu0 %v1282
    %v1386 = vpop.f32.mrb[0].mxu0
    %v1387 = vadd.f32 %v1227, %v1386
    %v1388 = vpop.f32.mrb[0].mxu0
    %v1389 = vadd.f32 %v1227, %v1388
    %v1390 = vpop.f32.mrb[0].mxu0
    %v1391 = vadd.f32 %v1232, %v1390
    %v1392 = vpop.f32.mrb[0].mxu0
    %v1393 = vadd.f32 %v1232, %v1392
    %1394 = vmatprep.mubr.bf16.mxu0 0
    %1395 = vmatmul.mubr.bf16.gmra.mrb[0].mxu0 %v1283
    %v1396 = vpop.f32.mrb[0].mxu0
    %v1397 = vadd.f32 %v1237, %v1396
    %v1398 = vpop.f32.mrb[0].mxu0
    %v1399 = vadd.f32 %v1237, %v1398
    %v1400 = vpop.f32.mrb[0].mxu0
    %v1401 = vadd.f32 %v1242, %v1400
    %v1402 = vpop.f32.mrb[0].mxu0
    %v1403 = vadd.f32 %v1242, %v1402
    %1404 = vdwg.mxu0
    %v1405 = vmax.f32 %v1327, 0.0
    %v1406 = vmax.f32 %v1329, 0.0
    %v1407 = vmax.f32 %v1331, 0.0
    %v1408 = vmax.f32 %v1333, 0.0
    %v1409 = vmax.f32 %v1337, 0.0
    %v1410 = vmax.f32 %v1339, 0.0
    %v1411 = vmax.f32 %v1341, 0.0
    %v1412 = vmax.f32 %v1343, 0.0
    %v1413 = vmax.f32 %v1347, 0.0
    %v1414 = vmax.f32 %v1349, 0.0
    %v1415 = vmax.f32 %v1351, 0.0
    %v1416 = vmax.f32 %v1353, 0.0
    %v1417 = vmax.f32 %v1357, 0.0
    %v1418 = vmax.f32 %v1359, 0.0
    %v1419 = vmax.f32 %v1361, 0.0
    %v1420 = vmax.f32 %v1363, 0.0
    %v1421 = vmax.f32 %v1367, 0.0
    %v1422 = vmax.f32 %v1369, 0.0
    %v1423 = vmax.f32 %v1371, 0.0
    %v1424 = vmax.f32 %v1373, 0.0
    %v1425 = vmax.f32 %v1377, 0.0
    %v1426 = vmax.f32 %v1379, 0.0
    %v1427 = vmax.f32 %v1381, 0.0
    %v1428 = vmax.f32 %v1383, 0.0
    %v1429 = vmax.f32 %v1387, 0.0
    %v1430 = vmax.f32 %v1389, 0.0
    %v1431 = vmax.f32 %v1391, 0.0
    %v1432 = vmax.f32 %v1393, 0.0
    %v1433 = vmax.f32 %v1397, 0.0
    %v1434 = vmax.f32 %v1399, 0.0
    %v1435 = vmax.f32 %v1401, 0.0
    %v1436 = vmax.f32 %v1403, 0.0
    %v1437 = vpack.c.bf16 %v1407, %v1405
    %v1438 = vpack.c.bf16 %v1408, %v1406
    %v1439 = vpack.c.bf16 %v1411, %v1409
    %v1440 = vpack.c.bf16 %v1412, %v1410
    %v1441 = vpack.c.bf16 %v1415, %v1413
    %v1442 = vpack.c.bf16 %v1416, %v1414
    %v1443 = vpack.c.bf16 %v1419, %v1417
    %v1444 = vpack.c.bf16 %v1420, %v1418
    %v1445 = vpack.c.bf16 %v1423, %v1421
    %v1446 = vpack.c.bf16 %v1424, %v1422
    %v1447 = vpack.c.bf16 %v1427, %v1425
    %v1448 = vpack.c.bf16 %v1428, %v1426
    %v1449 = vpack.c.bf16 %v1431, %v1429
    %v1450 = vpack.c.bf16 %v1432, %v1430
    %v1451 = vpack.c.bf16 %v1435, %v1433
    %v1452 = vpack.c.bf16 %v1436, %v1434
    %v1453 = vmax.bf16 %v1437, %v1438
    %v1454 = vmax.bf16 %v1439, %v1440
    %v1455 = vmax.bf16 %v1441, %v1442
    %v1456 = vmax.bf16 %v1443, %v1444
    %v1457 = vmax.bf16 %v1445, %v1446
    %v1458 = vmax.bf16 %v1447, %v1448
    %v1459 = vmax.bf16 %v1449, %v1450
    %v1460 = vmax.bf16 %v1451, %v1452
    %v1461 = vld [vmem:[#allocation2] sm:$0xff]
    %v1462 = vld [vmem:[#allocation2 + $0x8] sm:$0xff]
    %v1463 = vld [vmem:[#allocation2 + $0x10] sm:$0xff]
    %v1464 = vld [vmem:[#allocation2 + $0x18] sm:$0xff]
    %v1465 = vld [vmem:[#allocation2 + $0x20] sm:$0xff]
    %v1466 = vld [vmem:[#allocation2 + $0x28] sm:$0xff]
    %v1467 = vld [vmem:[#allocation2 + $0x30] sm:$0xff]
    %v1468 = vld [vmem:[#allocation2 + $0x38] sm:$0xff]
    %v1469 = vld [vmem:[#allocation2 + $0x40] sm:$0xff]
    %v1470 = vld [vmem:[#allocation2 + $0x48] sm:$0xff]
    %v1471 = vld [vmem:[#allocation2 + $0x50] sm:$0xff]
    %v1472 = vld [vmem:[#allocation2 + $0x58] sm:$0xff]
    %v1473 = vld [vmem:[#allocation2 + $0x60] sm:$0xff]
    %v1474 = vld [vmem:[#allocation2 + $0x68] sm:$0xff]
    %v1475 = vld [vmem:[#allocation2 + $0x70] sm:$0xff]
    %v1476 = vld [vmem:[#allocation2 + $0x78] sm:$0xff]
    %v1477 = vunpack.c.l.bf16 %v1453
    %v1478 = vunpack.c.h.bf16 %v1453
    %v1479 = vunpack.c.l.bf16 %v1454
    %v1480 = vunpack.c.h.bf16 %v1454
    %v1481 = vunpack.c.l.bf16 %v1455
    %v1482 = vunpack.c.h.bf16 %v1455
    %v1483 = vunpack.c.l.bf16 %v1456
    %v1484 = vunpack.c.h.bf16 %v1456
    %v1485 = vunpack.c.l.bf16 %v1457
    %v1486 = vunpack.c.h.bf16 %v1457
    %v1487 = vunpack.c.l.bf16 %v1458
    %v1488 = vunpack.c.h.bf16 %v1458
    %v1489 = vunpack.c.l.bf16 %v1459
    %v1490 = vunpack.c.h.bf16 %v1459
    %v1491 = vunpack.c.l.bf16 %v1460
    %v1492 = vunpack.c.h.bf16 %v1460
    %v1493 = vmax.f32 %v1461, %v1477
    %v1494 = vmax.f32 %v1462, %v1478
    %v1495 = vmax.f32 %v1463, %v1479
    %v1496 = vmax.f32 %v1464, %v1480
    %v1497 = vmax.f32 %v1465, %v1481
    %v1498 = vmax.f32 %v1466, %v1482
    %v1499 = vmax.f32 %v1467, %v1483
    %v1500 = vmax.f32 %v1468, %v1484
    %v1501 = vmax.f32 %v1469, %v1485
    %v1502 = vmax.f32 %v1470, %v1486
    %v1503 = vmax.f32 %v1471, %v1487
    %v1504 = vmax.f32 %v1472, %v1488
    %v1505 = vmax.f32 %v1473, %v1489
    %v1506 = vmax.f32 %v1474, %v1490
    %v1507 = vmax.f32 %v1475, %v1491
    %v1508 = vmax.f32 %v1476, %v1492
    %1509 = vst [vmem:[#allocation2] sm:$0xff] %v1493
    %1510 = vst [vmem:[#allocation2 + $0x8] sm:$0xff] %v1494
    %1511 = vst [vmem:[#allocation2 + $0x10] sm:$0xff] %v1495
    %1512 = vst [vmem:[#allocation2 + $0x18] sm:$0xff] %v1496
    %1513 = vst [vmem:[#allocation2 + $0x20] sm:$0xff] %v1497
    %1514 = vst [vmem:[#allocation2 + $0x28] sm:$0xff] %v1498
    %1515 = vst [vmem:[#allocation2 + $0x30] sm:$0xff] %v1499
    %1516 = vst [vmem:[#allocation2 + $0x38] sm:$0xff] %v1500
    %1517 = vst [vmem:[#allocation2 + $0x40] sm:$0xff] %v1501
    %1518 = vst [vmem:[#allocation2 + $0x48] sm:$0xff] %v1502
    %1519 = vst [vmem:[#allocation2 + $0x50] sm:$0xff] %v1503
    %1520 = vst [vmem:[#allocation2 + $0x58] sm:$0xff] %v1504
    %1521 = vst [vmem:[#allocation2 + $0x60] sm:$0xff] %v1505
    %1522 = vst [vmem:[#allocation2 + $0x68] sm:$0xff] %v1506
    %1523 = vst [vmem:[#allocation2 + $0x70] sm:$0xff] %v1507
    %1524 = vst [vmem:[#allocation2 + $0x78] sm:$0xff] %v1508
    %s1525 = scalar_lea.vmem %s0, 8
    %v1526 = vld [vmem:[%s1525] sm:$0x77]
    %v1527 = vld [vmem:[%s1] sm:$0xff]
    %v1528 = vld [vmem:[%s1 + $0x8] sm:$0xff]
    %v1529 = vld [vmem:[%s1 + $0x10] sm:$0xff]
    %v1530 = vld [vmem:[%s1 + $0x18] sm:$0xff]
    %v1531 = vld [vmem:[%s1 + $0x20] sm:$0xff]
    %v1532 = vld [vmem:[%s1 + $0x28] sm:$0xff]
    %v1533 = vld [vmem:[%s1 + $0x30] sm:$0xff]
    %v1534 = vld [vmem:[%s1 + $0x38] sm:$0xff]
    %1536 = vset.pattern.permute.xlu0 0
    %1537 = vperm.xlu0 %1536, %v1527
    %v1538 = vpop.permute.xlu0 %1537
    %1541 = vset.pattern.permute.xlu0 0
    %1542 = vperm.xlu0 %1541, %v1528
    %v1543 = vpop.permute.xlu0 %1542
    %1546 = vset.pattern.permute.xlu0 0
    %1547 = vperm.xlu0 %1546, %v1529
    %v1548 = vpop.permute.xlu0 %1547
    %1551 = vset.pattern.permute.xlu0 0
    %1552 = vperm.xlu0 %1551, %v1530
    %v1553 = vpop.permute.xlu0 %1552
    %1556 = vset.pattern.permute.xlu0 0
    %1557 = vperm.xlu0 %1556, %v1531
    %v1558 = vpop.permute.xlu0 %1557
    %1561 = vset.pattern.permute.xlu0 0
    %1562 = vperm.xlu0 %1561, %v1532
    %v1563 = vpop.permute.xlu0 %1562
    %1566 = vset.pattern.permute.xlu0 0
    %1567 = vperm.xlu0 %1566, %v1533
    %v1568 = vpop.permute.xlu0 %1567
    %1571 = vset.pattern.permute.xlu0 0
    %1572 = vperm.xlu0 %1571, %v1534
    %v1573 = vpop.permute.xlu0 %1572
    %v1576 = vlaneseq
    %v1577 = vshrl.u32 %v1576, 7
    %v1578 = vsub.s32 0, %v1577
    %v1579 = vrot.slane %v1526, %v1578
    %v1580 = vlaneseq
    %v1581 = vshrl.u32 %v1580, 7
    %v1582 = vsub.s32 4, %v1581
    %v1583 = vrot.slane %v1526, %v1582
    %v1586 = vlaneseq
    %v1587 = vshrl.u32 %v1586, 7
    %v1588 = vsub.s32 0, %v1587
    %v1589 = vrot.slane %v1579, %v1588
    %v1590 = vlaneseq
    %v1591 = vshrl.u32 %v1590, 7
    %v1592 = vsub.s32 0, %v1591
    %v1593 = vrot.slane %v1583, %v1592
    %v1594 = vmul.f32 %v1538, %v1589
    %v1595 = vmul.f32 %v1538, %v1593
    %v1596 = vmul.f32 %v1543, %v1589
    %v1597 = vmul.f32 %v1543, %v1593
    %v1598 = vmul.f32 %v1548, %v1589
    %v1599 = vmul.f32 %v1548, %v1593
    %v1600 = vmul.f32 %v1553, %v1589
    %v1601 = vmul.f32 %v1553, %v1593
    %v1602 = vmul.f32 %v1558, %v1589
    %v1603 = vmul.f32 %v1558, %v1593
    %v1604 = vmul.f32 %v1563, %v1589
    %v1605 = vmul.f32 %v1563, %v1593
    %v1606 = vmul.f32 %v1568, %v1589
    %v1607 = vmul.f32 %v1568, %v1593
    %v1608 = vmul.f32 %v1573, %v1589
    %v1609 = vmul.f32 %v1573, %v1593
    %1610 = vset.pattern.permute.xlu0 1
    %1611 = vperm.xlu0 %1610, %v1527
    %v1612 = vpop.permute.xlu0 %1611
    %1614 = vset.pattern.permute.xlu0 1
    %1615 = vperm.xlu0 %1614, %v1528
    %v1616 = vpop.permute.xlu0 %1615
    %1618 = vset.pattern.permute.xlu0 1
    %1619 = vperm.xlu0 %1618, %v1529
    %v1620 = vpop.permute.xlu0 %1619
    %1622 = vset.pattern.permute.xlu0 1
    %1623 = vperm.xlu0 %1622, %v1530
    %v1624 = vpop.permute.xlu0 %1623
    %1626 = vset.pattern.permute.xlu0 1
    %1627 = vperm.xlu0 %1626, %v1531
    %v1628 = vpop.permute.xlu0 %1627
    %1630 = vset.pattern.permute.xlu0 1
    %1631 = vperm.xlu0 %1630, %v1532
    %v1632 = vpop.permute.xlu0 %1631
    %1634 = vset.pattern.permute.xlu0 1
    %1635 = vperm.xlu0 %1634, %v1533
    %v1636 = vpop.permute.xlu0 %1635
    %1638 = vset.pattern.permute.xlu0 1
    %1639 = vperm.xlu0 %1638, %v1534
    %v1640 = vpop.permute.xlu0 %1639
    %v1642 = vlaneseq
    %v1643 = vshrl.u32 %v1642, 7
    %v1644 = vsub.s32 1, %v1643
    %v1645 = vrot.slane %v1526, %v1644
    %v1646 = vlaneseq
    %v1647 = vshrl.u32 %v1646, 7
    %v1648 = vsub.s32 5, %v1647
    %v1649 = vrot.slane %v1526, %v1648
    %v1652 = vlaneseq
    %v1653 = vshrl.u32 %v1652, 7
    %v1654 = vsub.s32 1, %v1653
    %v1655 = vrot.slane %v1645, %v1654
    %v1656 = vlaneseq
    %v1657 = vshrl.u32 %v1656, 7
    %v1658 = vsub.s32 1, %v1657
    %v1659 = vrot.slane %v1649, %v1658
    %v1660 = vmul.f32 %v1612, %v1655
    %v1661 = vmul.f32 %v1612, %v1659
    %v1662 = vmul.f32 %v1616, %v1655
    %v1663 = vmul.f32 %v1616, %v1659
    %v1664 = vmul.f32 %v1620, %v1655
    %v1665 = vmul.f32 %v1620, %v1659
    %v1666 = vmul.f32 %v1624, %v1655
    %v1667 = vmul.f32 %v1624, %v1659
    %v1668 = vmul.f32 %v1628, %v1655
    %v1669 = vmul.f32 %v1628, %v1659
    %v1670 = vmul.f32 %v1632, %v1655
    %v1671 = vmul.f32 %v1632, %v1659
    %v1672 = vmul.f32 %v1636, %v1655
    %v1673 = vmul.f32 %v1636, %v1659
    %v1674 = vmul.f32 %v1640, %v1655
    %v1675 = vmul.f32 %v1640, %v1659
    %v1676 = vadd.f32 %v1594, %v1660
    %v1677 = vadd.f32 %v1595, %v1661
    %v1678 = vadd.f32 %v1596, %v1662
    %v1679 = vadd.f32 %v1597, %v1663
    %v1680 = vadd.f32 %v1598, %v1664
    %v1681 = vadd.f32 %v1599, %v1665
    %v1682 = vadd.f32 %v1600, %v1666
    %v1683 = vadd.f32 %v1601, %v1667
    %v1684 = vadd.f32 %v1602, %v1668
    %v1685 = vadd.f32 %v1603, %v1669
    %v1686 = vadd.f32 %v1604, %v1670
    %v1687 = vadd.f32 %v1605, %v1671
    %v1688 = vadd.f32 %v1606, %v1672
    %v1689 = vadd.f32 %v1607, %v1673
    %v1690 = vadd.f32 %v1608, %v1674
    %v1691 = vadd.f32 %v1609, %v1675
    %1692 = vset.pattern.permute.xlu0 2
    %1693 = vperm.xlu0 %1692, %v1527
    %v1694 = vpop.permute.xlu0 %1693
    %1696 = vset.pattern.permute.xlu0 2
    %1697 = vperm.xlu0 %1696, %v1528
    %v1698 = vpop.permute.xlu0 %1697
    %1700 = vset.pattern.permute.xlu0 2
    %1701 = vperm.xlu0 %1700, %v1529
    %v1702 = vpop.permute.xlu0 %1701
    %1704 = vset.pattern.permute.xlu0 2
    %1705 = vperm.xlu0 %1704, %v1530
    %v1706 = vpop.permute.xlu0 %1705
    %1708 = vset.pattern.permute.xlu0 2
    %1709 = vperm.xlu0 %1708, %v1531
    %v1710 = vpop.permute.xlu0 %1709
    %1712 = vset.pattern.permute.xlu0 2
    %1713 = vperm.xlu0 %1712, %v1532
    %v1714 = vpop.permute.xlu0 %1713
    %1716 = vset.pattern.permute.xlu0 2
    %1717 = vperm.xlu0 %1716, %v1533
    %v1718 = vpop.permute.xlu0 %1717
    %1720 = vset.pattern.permute.xlu0 2
    %1721 = vperm.xlu0 %1720, %v1534
    %v1722 = vpop.permute.xlu0 %1721
    %v1724 = vlaneseq
    %v1725 = vshrl.u32 %v1724, 7
    %v1726 = vsub.s32 2, %v1725
    %v1727 = vrot.slane %v1526, %v1726
    %v1728 = vlaneseq
    %v1729 = vshrl.u32 %v1728, 7
    %v1730 = vsub.s32 6, %v1729
    %v1731 = vrot.slane %v1526, %v1730
    %v1734 = vlaneseq
    %v1735 = vshrl.u32 %v1734, 7
    %v1736 = vsub.s32 2, %v1735
    %v1737 = vrot.slane %v1727, %v1736
    %v1738 = vlaneseq
    %v1739 = vshrl.u32 %v1738, 7
    %v1740 = vsub.s32 2, %v1739
    %v1741 = vrot.slane %v1731, %v1740
    %v1742 = vmul.f32 %v1694, %v1737
    %v1743 = vmul.f32 %v1694, %v1741
    %v1744 = vmul.f32 %v1698, %v1737
    %v1745 = vmul.f32 %v1698, %v1741
    %v1746 = vmul.f32 %v1702, %v1737
    %v1747 = vmul.f32 %v1702, %v1741
    %v1748 = vmul.f32 %v1706, %v1737
    %v1749 = vmul.f32 %v1706, %v1741
    %v1750 = vmul.f32 %v1710, %v1737
    %v1751 = vmul.f32 %v1710, %v1741
    %v1752 = vmul.f32 %v1714, %v1737
    %v1753 = vmul.f32 %v1714, %v1741
    %v1754 = vmul.f32 %v1718, %v1737
    %v1755 = vmul.f32 %v1718, %v1741
    %v1756 = vmul.f32 %v1722, %v1737
    %v1757 = vmul.f32 %v1722, %v1741
    %v1758 = vadd.f32 %v1676, %v1742
    %v1759 = vadd.f32 %v1677, %v1743
    %v1760 = vadd.f32 %v1678, %v1744
    %v1761 = vadd.f32 %v1679, %v1745
    %v1762 = vadd.f32 %v1680, %v1746
    %v1763 = vadd.f32 %v1681, %v1747
    %v1764 = vadd.f32 %v1682, %v1748
    %v1765 = vadd.f32 %v1683, %v1749
    %v1766 = vadd.f32 %v1684, %v1750
    %v1767 = vadd.f32 %v1685, %v1751
    %v1768 = vadd.f32 %v1686, %v1752
    %v1769 = vadd.f32 %v1687, %v1753
    %v1770 = vadd.f32 %v1688, %v1754
    %v1771 = vadd.f32 %v1689, %v1755
    %v1772 = vadd.f32 %v1690, %v1756
    %v1773 = vadd.f32 %v1691, %v1757
    %v1774 = vld [vmem:[%s2] sm:$0xff]
    %v1775 = vld [vmem:[%s2 + $0x8] sm:$0xff]
    %v1776 = vld [vmem:[%s2 + $0x10] sm:$0xff]
    %v1777 = vld [vmem:[%s2 + $0x18] sm:$0xff]
    %v1778 = vld [vmem:[%s2 + $0x20] sm:$0xff]
    %v1779 = vld [vmem:[%s2 + $0x28] sm:$0xff]
    %v1780 = vld [vmem:[%s2 + $0x30] sm:$0xff]
    %v1781 = vld [vmem:[%s2 + $0x38] sm:$0xff]
    %1783 = vset.pattern.permute.xlu0 0
    %1784 = vperm.xlu0 %1783, %v1774
    %v1785 = vpop.permute.xlu0 %1784
    %1788 = vset.pattern.permute.xlu0 0
    %1789 = vperm.xlu0 %1788, %v1775
    %v1790 = vpop.permute.xlu0 %1789
    %1793 = vset.pattern.permute.xlu0 0
    %1794 = vperm.xlu0 %1793, %v1776
    %v1795 = vpop.permute.xlu0 %1794
    %1798 = vset.pattern.permute.xlu0 0
    %1799 = vperm.xlu0 %1798, %v1777
    %v1800 = vpop.permute.xlu0 %1799
    %1803 = vset.pattern.permute.xlu0 0
    %1804 = vperm.xlu0 %1803, %v1778
    %v1805 = vpop.permute.xlu0 %1804
    %1808 = vset.pattern.permute.xlu0 0
    %1809 = vperm.xlu0 %1808, %v1779
    %v1810 = vpop.permute.xlu0 %1809
    %1813 = vset.pattern.permute.xlu0 0
    %1814 = vperm.xlu0 %1813, %v1780
    %v1815 = vpop.permute.xlu0 %1814
    %1818 = vset.pattern.permute.xlu0 0
    %1819 = vperm.xlu0 %1818, %v1781
    %v1820 = vpop.permute.xlu0 %1819
    %v1822 = vadd.f32 %v1758, %v1785
    %v1823 = vadd.f32 %v1759, %v1785
    %v1824 = vadd.f32 %v1760, %v1790
    %v1825 = vadd.f32 %v1761, %v1790
    %v1826 = vadd.f32 %v1762, %v1795
    %v1827 = vadd.f32 %v1763, %v1795
    %v1828 = vadd.f32 %v1764, %v1800
    %v1829 = vadd.f32 %v1765, %v1800
    %v1830 = vadd.f32 %v1766, %v1805
    %v1831 = vadd.f32 %v1767, %v1805
    %v1832 = vadd.f32 %v1768, %v1810
    %v1833 = vadd.f32 %v1769, %v1810
    %v1834 = vadd.f32 %v1770, %v1815
    %v1835 = vadd.f32 %v1771, %v1815
    %v1836 = vadd.f32 %v1772, %v1820
    %v1837 = vadd.f32 %v1773, %v1820
    %v1838 = vmax.f32 %v1822, 0.0
    %v1839 = vmax.f32 %v1823, 0.0
    %v1840 = vmax.f32 %v1824, 0.0
    %v1841 = vmax.f32 %v1825, 0.0
    %v1842 = vmax.f32 %v1826, 0.0
    %v1843 = vmax.f32 %v1827, 0.0
    %v1844 = vmax.f32 %v1828, 0.0
    %v1845 = vmax.f32 %v1829, 0.0
    %v1846 = vmax.f32 %v1830, 0.0
    %v1847 = vmax.f32 %v1831, 0.0
    %v1848 = vmax.f32 %v1832, 0.0
    %v1849 = vmax.f32 %v1833, 0.0
    %v1850 = vmax.f32 %v1834, 0.0
    %v1851 = vmax.f32 %v1835, 0.0
    %v1852 = vmax.f32 %v1836, 0.0
    %v1853 = vmax.f32 %v1837, 0.0
    %v1854 = vpack.c.bf16 %v1840, %v1838
    %v1855 = vpack.c.bf16 %v1841, %v1839
    %v1856 = vpack.c.bf16 %v1844, %v1842
    %v1857 = vpack.c.bf16 %v1845, %v1843
    %v1858 = vpack.c.bf16 %v1848, %v1846
    %v1859 = vpack.c.bf16 %v1849, %v1847
    %v1860 = vpack.c.bf16 %v1852, %v1850
    %v1861 = vpack.c.bf16 %v1853, %v1851
    %v1862 = vld [vmem:[%s3] sm:$0xf]
    %v1863 = vld [vmem:[%s3 + $0x4] sm:$0xf]
    %v1864 = vld [vmem:[%s3 + $0x8] sm:$0xf]
    %v1865 = vld [vmem:[%s3 + $0xc] sm:$0xf]
    %v1866 = vld [vmem:[%s3 + $0x10] sm:$0xf]
    %v1867 = vld [vmem:[%s3 + $0x14] sm:$0xf]
    %v1868 = vld [vmem:[%s3 + $0x18] sm:$0xf]
    %v1869 = vld [vmem:[%s3 + $0x1c] sm:$0xf]
    %v1870 = vld [vmem:[%s4] sm:$0xff]
    %v1871 = vld [vmem:[%s4 + $0x8] sm:$0xff]
    %v1872 = vld [vmem:[%s4 + $0x10] sm:$0xff]
    %v1873 = vld [vmem:[%s4 + $0x18] sm:$0xff]
    %v1874 = vld [vmem:[%s4 + $0x20] sm:$0xff]
    %v1875 = vld [vmem:[%s4 + $0x28] sm:$0xff]
    %v1876 = vld [vmem:[%s4 + $0x30] sm:$0xff]
    %v1877 = vld [vmem:[%s4 + $0x38] sm:$0xff]
    %1879 = vset.pattern.permute.xlu0 0
    %1880 = vperm.xlu0 %1879, %v1870
    %v1881 = vpop.permute.xlu0 %1880
    %1884 = vset.pattern.permute.xlu0 0
    %1885 = vperm.xlu0 %1884, %v1871
    %v1886 = vpop.permute.xlu0 %1885
    %1889 = vset.pattern.permute.xlu0 0
    %1890 = vperm.xlu0 %1889, %v1872
    %v1891 = vpop.permute.xlu0 %1890
    %1894 = vset.pattern.permute.xlu0 0
    %1895 = vperm.xlu0 %1894, %v1873
    %v1896 = vpop.permute.xlu0 %1895
    %1899 = vset.pattern.permute.xlu0 0
    %1900 = vperm.xlu0 %1899, %v1874
    %v1901 = vpop.permute.xlu0 %1900
    %1904 = vset.pattern.permute.xlu0 0
    %1905 = vperm.xlu0 %1904, %v1875
    %v1906 = vpop.permute.xlu0 %1905
    %1909 = vset.pattern.permute.xlu0 0
    %1910 = vperm.xlu0 %1909, %v1876
    %v1911 = vpop.permute.xlu0 %1910
    %1914 = vset.pattern.permute.xlu0 0
    %1915 = vperm.xlu0 %1914, %v1877
    %v1916 = vpop.permute.xlu0 %1915
    %v1926 = vunpack.c.l.b16 %v1862
    %v1927 = vunpack.c.l.b16 %v1863
    %v1928 = vunpack.c.l.b16 %v1864
    %v1929 = vunpack.c.l.b16 %v1865
    %v1930 = vunpack.c.l.b16 %v1866
    %v1931 = vunpack.c.l.b16 %v1867
    %v1932 = vunpack.c.l.b16 %v1868
    %v1933 = vunpack.c.l.b16 %v1869
    %v1934 = vpack.c.b16 %v1927, %v1926
    %v1935 = vpack.c.b16 %v1929, %v1928
    %v1936 = vpack.c.b16 %v1931, %v1930
    %v1937 = vpack.c.b16 %v1933, %v1932
    %v1939 = vsel %vm500, %v1934, 0
    %v1942 = vsel %vm500, %v1935, 0
    %v1945 = vsel %vm500, %v1936, 0
    %v1948 = vsel %vm500, %v1937, 0
    %1950 = vmatprep.subr.bf16.mxu0 %v1855
    %1951 = vmatpush1.bf16.msra.mxu0 %v1854
    %1952 = vmatprep.subr.bf16.mxu0 %v1857
    %1953 = vmatpush1.bf16.msra.mxu0 %v1856
    %1954 = vmatprep.subr.bf16.mxu0 %v1859
    %1955 = vmatpush1.bf16.msra.mxu0 %v1858
    %1956 = vmatprep.subr.bf16.mxu0 %v1861
    %1957 = vmatpush1.bf16.msra.mxu0 %v1860
    %1958 = vmatprep.subr.bf16.mxu0 0
    %1959 = vmatpush1.bf16.msra.mxu0 0
    %1960 = vmatprep.subr.bf16.mxu0 0
    %1961 = vmatpush1.bf16.msra.mxu0 0
    %1962 = vmatprep.subr.bf16.mxu0 0
    %1963 = vmatpush1.bf16.msra.mxu0 0
    %1964 = vmatprep.subr.bf16.mxu0 0
    %1965 = vmatpush1.bf16.msra.mxu0 0
    %1966 = vmatprep.subr.bf16.mxu0 0
    %1967 = vmatpush1.bf16.msra.mxu0 0
    %1968 = vmatprep.subr.bf16.mxu0 0
    %1969 = vmatpush1.bf16.msra.mxu0 0
    %1970 = vmatprep.subr.bf16.mxu0 0
    %1971 = vmatpush1.bf16.msra.mxu0 0
    %1972 = vmatprep.subr.bf16.mxu0 0
    %1973 = vmatpush1.bf16.msra.mxu0 0
    %1974 = vmatprep.subr.bf16.mxu0 0
    %1975 = vmatpush1.bf16.msra.mxu0 0
    %1976 = vmatprep.subr.bf16.mxu0 0
    %1977 = vmatpush1.bf16.msra.mxu0 0
    %1978 = vmatprep.subr.bf16.mxu0 0
    %1979 = vmatpush1.bf16.msra.mxu0 0
    %1980 = vmatprep.subr.bf16.mxu0 0
    %1981 = vmatpush1.bf16.msra.mxu0 0
    %1982 = vmatprep.mubr.bf16.mxu0 0
    %1983 = vmatmul.mubr.bf16.gmra.mrb[0].mxu0 %v1939
    %v1984 = vpop.f32.mrb[0].mxu0
    %v1985 = vadd.f32 %v1881, %v1984
    %v1986 = vpop.f32.mrb[0].mxu0
    %v1987 = vadd.f32 %v1881, %v1986
    %v1988 = vpop.f32.mrb[0].mxu0
    %v1989 = vadd.f32 %v1886, %v1988
    %v1990 = vpop.f32.mrb[0].mxu0
    %v1991 = vadd.f32 %v1886, %v1990
    %1992 = vmatprep.mubr.bf16.mxu0 0
    %1993 = vmatmul.mubr.bf16.gmra.mrb[0].mxu0 %v1942
    %v1994 = vpop.f32.mrb[0].mxu0
    %v1995 = vadd.f32 %v1891, %v1994
    %v1996 = vpop.f32.mrb[0].mxu0
    %v1997 = vadd.f32 %v1891, %v1996
    %v1998 = vpop.f32.mrb[0].mxu0
    %v1999 = vadd.f32 %v1896, %v1998
    %v2000 = vpop.f32.mrb[0].mxu0
    %v2001 = vadd.f32 %v1896, %v2000
    %2002 = vmatprep.mubr.bf16.mxu0 0
    %2003 = vmatmul.mubr.bf16.gmra.mrb[0].mxu0 %v1945
    %v2004 = vpop.f32.mrb[0].mxu0
    %v2005 = vadd.f32 %v1901, %v2004
    %v2006 = vpop.f32.mrb[0].mxu0
    %v2007 = vadd.f32 %v1901, %v2006
    %v2008 = vpop.f32.mrb[0].mxu0
    %v2009 = vadd.f32 %v1906, %v2008
    %v2010 = vpop.f32.mrb[0].mxu0
    %v2011 = vadd.f32 %v1906, %v2010
    %2012 = vmatprep.mubr.bf16.mxu0 0
    %2013 = vmatmul.mubr.bf16.gmra.mrb[0].mxu0 %v1948
    %v2014 = vpop.f32.mrb[0].mxu0
    %v2015 = vadd.f32 %v1911, %v2014
    %v2016 = vpop.f32.mrb[0].mxu0
    %v2017 = vadd.f32 %v1911, %v2016
    %v2018 = vpop.f32.mrb[0].mxu0
    %v2019 = vadd.f32 %v1916, %v2018
    %v2020 = vpop.f32.mrb[0].mxu0
    %v2021 = vadd.f32 %v1916, %v2020
    %2022 = vdwg.mxu0
    %v2023 = vmax.f32 %v1985, 0.0
    %v2024 = vmax.f32 %v1987, 0.0
    %v2025 = vmax.f32 %v1989, 0.0
    %v2026 = vmax.f32 %v1991, 0.0
    %v2027 = vmax.f32 %v1995, 0.0
    %v2028 = vmax.f32 %v1997, 0.0
    %v2029 = vmax.f32 %v1999, 0.0
    %v2030 = vmax.f32 %v2001, 0.0
    %v2031 = vmax.f32 %v2005, 0.0
    %v2032 = vmax.f32 %v2007, 0.0
    %v2033 = vmax.f32 %v2009, 0.0
    %v2034 = vmax.f32 %v2011, 0.0
    %v2035 = vmax.f32 %v2015, 0.0
    %v2036 = vmax.f32 %v2017, 0.0
    %v2037 = vmax.f32 %v2019, 0.0
    %v2038 = vmax.f32 %v2021, 0.0
    %v2039 = vpack.c.bf16 %v2025, %v2023
    %v2040 = vpack.c.bf16 %v2026, %v2024
    %v2041 = vpack.c.bf16 %v2029, %v2027
    %v2042 = vpack.c.bf16 %v2030, %v2028
    %v2043 = vpack.c.bf16 %v2033, %v2031
    %v2044 = vpack.c.bf16 %v2034, %v2032
    %v2045 = vpack.c.bf16 %v2037, %v2035
    %v2046 = vpack.c.bf16 %v2038, %v2036
    %v2047 = vld [vmem:[%s5] sm:$0xf]
    %v2048 = vld [vmem:[%s5 + $0x4] sm:$0xf]
    %v2049 = vld [vmem:[%s5 + $0x8] sm:$0xf]
    %v2050 = vld [vmem:[%s5 + $0xc] sm:$0xf]
    %v2051 = vld [vmem:[%s5 + $0x10] sm:$0xf]
    %v2052 = vld [vmem:[%s5 + $0x14] sm:$0xf]
    %v2053 = vld [vmem:[%s5 + $0x18] sm:$0xf]
    %v2054 = vld [vmem:[%s5 + $0x1c] sm:$0xf]
    %v2055 = vld [vmem:[%s6] sm:$0xff]
    %v2056 = vld [vmem:[%s6 + $0x8] sm:$0xff]
    %v2057 = vld [vmem:[%s6 + $0x10] sm:$0xff]
    %v2058 = vld [vmem:[%s6 + $0x18] sm:$0xff]
    %v2059 = vld [vmem:[%s6 + $0x20] sm:$0xff]
    %v2060 = vld [vmem:[%s6 + $0x28] sm:$0xff]
    %v2061 = vld [vmem:[%s6 + $0x30] sm:$0xff]
    %v2062 = vld [vmem:[%s6 + $0x38] sm:$0xff]
    %2064 = vset.pattern.permute.xlu0 0
    %2065 = vperm.xlu0 %2064, %v2055
    %v2066 = vpop.permute.xlu0 %2065
    %2069 = vset.pattern.permute.xlu0 0
    %2070 = vperm.xlu0 %2069, %v2056
    %v2071 = vpop.permute.xlu0 %2070
    %2074 = vset.pattern.permute.xlu0 0
    %2075 = vperm.xlu0 %2074, %v2057
    %v2076 = vpop.permute.xlu0 %2075
    %2079 = vset.pattern.permute.xlu0 0
    %2080 = vperm.xlu0 %2079, %v2058
    %v2081 = vpop.permute.xlu0 %2080
    %2084 = vset.pattern.permute.xlu0 0
    %2085 = vperm.xlu0 %2084, %v2059
    %v2086 = vpop.permute.xlu0 %2085
    %2089 = vset.pattern.permute.xlu0 0
    %2090 = vperm.xlu0 %2089, %v2060
    %v2091 = vpop.permute.xlu0 %2090
    %2094 = vset.pattern.permute.xlu0 0
    %2095 = vperm.xlu0 %2094, %v2061
    %v2096 = vpop.permute.xlu0 %2095
    %2099 = vset.pattern.permute.xlu0 0
    %2100 = vperm.xlu0 %2099, %v2062
    %v2101 = vpop.permute.xlu0 %2100
    %v2111 = vunpack.c.l.b16 %v2047
    %v2112 = vunpack.c.l.b16 %v2048
    %v2113 = vunpack.c.l.b16 %v2049
    %v2114 = vunpack.c.l.b16 %v2050
    %v2115 = vunpack.c.l.b16 %v2051
    %v2116 = vunpack.c.l.b16 %v2052
    %v2117 = vunpack.c.l.b16 %v2053
    %v2118 = vunpack.c.l.b16 %v2054
    %v2119 = vpack.c.b16 %v2112, %v2111
    %v2120 = vpack.c.b16 %v2114, %v2113
    %v2121 = vpack.c.b16 %v2116, %v2115
    %v2122 = vpack.c.b16 %v2118, %v2117
    %v2124 = vsel %vm500, %v2119, 0
    %v2127 = vsel %vm500, %v2120, 0
    %v2130 = vsel %vm500, %v2121, 0
    %v2133 = vsel %vm500, %v2122, 0
    %2135 = vmatprep.subr.bf16.mxu0 %v2040
    %2136 = vmatpush1.bf16.msra.mxu0 %v2039
    %2137 = vmatprep.subr.bf16.mxu0 %v2042
    %2138 = vmatpush1.bf16.msra.mxu0 %v2041
    %2139 = vmatprep.subr.bf16.mxu0 %v2044
    %2140 = vmatpush1.bf16.msra.mxu0 %v2043
    %2141 = vmatprep.subr.bf16.mxu0 %v2046
    %2142 = vmatpush1.bf16.msra.mxu0 %v2045
    %2143 = vmatprep.subr.bf16.mxu0 0
    %2144 = vmatpush1.bf16.msra.mxu0 0
    %2145 = vmatprep.subr.bf16.mxu0 0
    %2146 = vmatpush1.bf16.msra.mxu0 0
    %2147 = vmatprep.subr.bf16.mxu0 0
    %2148 = vmatpush1.bf16.msra.mxu0 0
    %2149 = vmatprep.subr.bf16.mxu0 0
    %2150 = vmatpush1.bf16.msra.mxu0 0
    %2151 = vmatprep.subr.bf16.mxu0 0
    %2152 = vmatpush1.bf16.msra.mxu0 0
    %2153 = vmatprep.subr.bf16.mxu0 0
    %2154 = vmatpush1.bf16.msra.mxu0 0
    %2155 = vmatprep.subr.bf16.mxu0 0
    %2156 = vmatpush1.bf16.msra.mxu0 0
    %2157 = vmatprep.subr.bf16.mxu0 0
    %2158 = vmatpush1.bf16.msra.mxu0 0
    %2159 = vmatprep.subr.bf16.mxu0 0
    %2160 = vmatpush1.bf16.msra.mxu0 0
    %2161 = vmatprep.subr.bf16.mxu0 0
    %2162 = vmatpush1.bf16.msra.mxu0 0
    %2163 = vmatprep.subr.bf16.mxu0 0
    %2164 = vmatpush1.bf16.msra.mxu0 0
    %2165 = vmatprep.subr.bf16.mxu0 0
    %2166 = vmatpush1.bf16.msra.mxu0 0
    %2167 = vmatprep.mubr.bf16.mxu0 0
    %2168 = vmatmul.mubr.bf16.gmra.mrb[0].mxu0 %v2124
    %v2169 = vpop.f32.mrb[0].mxu0
    %v2170 = vadd.f32 %v2066, %v2169
    %v2171 = vpop.f32.mrb[0].mxu0
    %v2172 = vadd.f32 %v2066, %v2171
    %v2173 = vpop.f32.mrb[0].mxu0
    %v2174 = vadd.f32 %v2071, %v2173
    %v2175 = vpop.f32.mrb[0].mxu0
    %v2176 = vadd.f32 %v2071, %v2175
    %2177 = vmatprep.mubr.bf16.mxu0 0
    %2178 = vmatmul.mubr.bf16.gmra.mrb[0].mxu0 %v2127
    %v2179 = vpop.f32.mrb[0].mxu0
    %v2180 = vadd.f32 %v2076, %v2179
    %v2181 = vpop.f32.mrb[0].mxu0
    %v2182 = vadd.f32 %v2076, %v2181
    %v2183 = vpop.f32.mrb[0].mxu0
    %v2184 = vadd.f32 %v2081, %v2183
    %v2185 = vpop.f32.mrb[0].mxu0
    %v2186 = vadd.f32 %v2081, %v2185
    %2187 = vmatprep.mubr.bf16.mxu0 0
    %2188 = vmatmul.mubr.bf16.gmra.mrb[0].mxu0 %v2130
    %v2189 = vpop.f32.mrb[0].mxu0
    %v2190 = vadd.f32 %v2086, %v2189
    %v2191 = vpop.f32.mrb[0].mxu0
    %v2192 = vadd.f32 %v2086, %v2191
    %v2193 = vpop.f32.mrb[0].mxu0
    %v2194 = vadd.f32 %v2091, %v2193
    %v2195 = vpop.f32.mrb[0].mxu0
    %v2196 = vadd.f32 %v2091, %v2195
    %2197 = vmatprep.mubr.bf16.mxu0 0
    %2198 = vmatmul.mubr.bf16.gmra.mrb[0].mxu0 %v2133
    %v2199 = vpop.f32.mrb[0].mxu0
    %v2200 = vadd.f32 %v2096, %v2199
    %v2201 = vpop.f32.mrb[0].mxu0
    %v2202 = vadd.f32 %v2096, %v2201
    %v2203 = vpop.f32.mrb[0].mxu0
    %v2204 = vadd.f32 %v2101, %v2203
    %v2205 = vpop.f32.mrb[0].mxu0
    %v2206 = vadd.f32 %v2101, %v2205
    %2207 = vdwg.mxu0
    %v2208 = vmax.f32 %v2170, 0.0
    %v2209 = vmax.f32 %v2172, 0.0
    %v2210 = vmax.f32 %v2174, 0.0
    %v2211 = vmax.f32 %v2176, 0.0
    %v2212 = vmax.f32 %v2180, 0.0
    %v2213 = vmax.f32 %v2182, 0.0
    %v2214 = vmax.f32 %v2184, 0.0
    %v2215 = vmax.f32 %v2186, 0.0
    %v2216 = vmax.f32 %v2190, 0.0
    %v2217 = vmax.f32 %v2192, 0.0
    %v2218 = vmax.f32 %v2194, 0.0
    %v2219 = vmax.f32 %v2196, 0.0
    %v2220 = vmax.f32 %v2200, 0.0
    %v2221 = vmax.f32 %v2202, 0.0
    %v2222 = vmax.f32 %v2204, 0.0
    %v2223 = vmax.f32 %v2206, 0.0
    %v2224 = vpack.c.bf16 %v2210, %v2208
    %v2225 = vpack.c.bf16 %v2211, %v2209
    %v2226 = vpack.c.bf16 %v2214, %v2212
    %v2227 = vpack.c.bf16 %v2215, %v2213
    %v2228 = vpack.c.bf16 %v2218, %v2216
    %v2229 = vpack.c.bf16 %v2219, %v2217
    %v2230 = vpack.c.bf16 %v2222, %v2220
    %v2231 = vpack.c.bf16 %v2223, %v2221
    %v2232 = vld [vmem:[%s7] sm:$0xf]
    %v2233 = vld [vmem:[%s7 + $0x4] sm:$0xf]
    %v2234 = vld [vmem:[%s7 + $0x8] sm:$0xf]
    %v2235 = vld [vmem:[%s7 + $0xc] sm:$0xf]
    %v2236 = vld [vmem:[%s7 + $0x10] sm:$0xf]
    %v2237 = vld [vmem:[%s7 + $0x14] sm:$0xf]
    %v2238 = vld [vmem:[%s7 + $0x18] sm:$0xf]
    %v2239 = vld [vmem:[%s7 + $0x1c] sm:$0xf]
    %v2240 = vld [vmem:[%s7 + $0x20] sm:$0xf]
    %v2241 = vld [vmem:[%s7 + $0x24] sm:$0xf]
    %v2242 = vld [vmem:[%s7 + $0x28] sm:$0xf]
    %v2243 = vld [vmem:[%s7 + $0x2c] sm:$0xf]
    %v2244 = vld [vmem:[%s7 + $0x30] sm:$0xf]
    %v2245 = vld [vmem:[%s7 + $0x34] sm:$0xf]
    %v2246 = vld [vmem:[%s7 + $0x38] sm:$0xf]
    %v2247 = vld [vmem:[%s7 + $0x3c] sm:$0xf]
    %v2248 = vld [vmem:[%s8] sm:$0xff]
    %v2249 = vld [vmem:[%s8 + $0x8] sm:$0xff]
    %v2250 = vld [vmem:[%s8 + $0x10] sm:$0xff]
    %v2251 = vld [vmem:[%s8 + $0x18] sm:$0xff]
    %v2252 = vld [vmem:[%s8 + $0x20] sm:$0xff]
    %v2253 = vld [vmem:[%s8 + $0x28] sm:$0xff]
    %v2254 = vld [vmem:[%s8 + $0x30] sm:$0xff]
    %v2255 = vld [vmem:[%s8 + $0x38] sm:$0xff]
    %v2256 = vld [vmem:[%s8 + $0x40] sm:$0xff]
    %v2257 = vld [vmem:[%s8 + $0x48] sm:$0xff]
    %v2258 = vld [vmem:[%s8 + $0x50] sm:$0xff]
    %v2259 = vld [vmem:[%s8 + $0x58] sm:$0xff]
    %v2260 = vld [vmem:[%s8 + $0x60] sm:$0xff]
    %v2261 = vld [vmem:[%s8 + $0x68] sm:$0xff]
    %v2262 = vld [vmem:[%s8 + $0x70] sm:$0xff]
    %v2263 = vld [vmem:[%s8 + $0x78] sm:$0xff]
    %2265 = vset.pattern.permute.xlu0 0
    %2266 = vperm.xlu0 %2265, %v2248
    %v2267 = vpop.permute.xlu0 %2266
    %2270 = vset.pattern.permute.xlu0 0
    %2271 = vperm.xlu0 %2270, %v2249
    %v2272 = vpop.permute.xlu0 %2271
    %2275 = vset.pattern.permute.xlu0 0
    %2276 = vperm.xlu0 %2275, %v2250
    %v2277 = vpop.permute.xlu0 %2276
    %2280 = vset.pattern.permute.xlu0 0
    %2281 = vperm.xlu0 %2280, %v2251
    %v2282 = vpop.permute.xlu0 %2281
    %2285 = vset.pattern.permute.xlu0 0
    %2286 = vperm.xlu0 %2285, %v2252
    %v2287 = vpop.permute.xlu0 %2286
    %2290 = vset.pattern.permute.xlu0 0
    %2291 = vperm.xlu0 %2290, %v2253
    %v2292 = vpop.permute.xlu0 %2291
    %2295 = vset.pattern.permute.xlu0 0
    %2296 = vperm.xlu0 %2295, %v2254
    %v2297 = vpop.permute.xlu0 %2296
    %2300 = vset.pattern.permute.xlu0 0
    %2301 = vperm.xlu0 %2300, %v2255
    %v2302 = vpop.permute.xlu0 %2301
    %2305 = vset.pattern.permute.xlu0 0
    %2306 = vperm.xlu0 %2305, %v2256
    %v2307 = vpop.permute.xlu0 %2306
    %2310 = vset.pattern.permute.xlu0 0
    %2311 = vperm.xlu0 %2310, %v2257
    %v2312 = vpop.permute.xlu0 %2311
    %2315 = vset.pattern.permute.xlu0 0
    %2316 = vperm.xlu0 %2315, %v2258
    %v2317 = vpop.permute.xlu0 %2316
    %2320 = vset.pattern.permute.xlu0 0
    %2321 = vperm.xlu0 %2320, %v2259
    %v2322 = vpop.permute.xlu0 %2321
    %2325 = vset.pattern.permute.xlu0 0
    %2326 = vperm.xlu0 %2325, %v2260
    %v2327 = vpop.permute.xlu0 %2326
    %2330 = vset.pattern.permute.xlu0 0
    %2331 = vperm.xlu0 %2330, %v2261
    %v2332 = vpop.permute.xlu0 %2331
    %2335 = vset.pattern.permute.xlu0 0
    %2336 = vperm.xlu0 %2335, %v2262
    %v2337 = vpop.permute.xlu0 %2336
    %2340 = vset.pattern.permute.xlu0 0
    %2341 = vperm.xlu0 %2340, %v2263
    %v2342 = vpop.permute.xlu0 %2341
    %v2360 = vunpack.c.l.b16 %v2232
    %v2361 = vunpack.c.l.b16 %v2233
    %v2362 = vunpack.c.l.b16 %v2234
    %v2363 = vunpack.c.l.b16 %v2235
    %v2364 = vunpack.c.l.b16 %v2236
    %v2365 = vunpack.c.l.b16 %v2237
    %v2366 = vunpack.c.l.b16 %v2238
    %v2367 = vunpack.c.l.b16 %v2239
    %v2368 = vunpack.c.l.b16 %v2240
    %v2369 = vunpack.c.l.b16 %v2241
    %v2370 = vunpack.c.l.b16 %v2242
    %v2371 = vunpack.c.l.b16 %v2243
    %v2372 = vunpack.c.l.b16 %v2244
    %v2373 = vunpack.c.l.b16 %v2245
    %v2374 = vunpack.c.l.b16 %v2246
    %v2375 = vunpack.c.l.b16 %v2247
    %v2376 = vpack.c.b16 %v2361, %v2360
    %v2377 = vpack.c.b16 %v2363, %v2362
    %v2378 = vpack.c.b16 %v2365, %v2364
    %v2379 = vpack.c.b16 %v2367, %v2366
    %v2380 = vpack.c.b16 %v2369, %v2368
    %v2381 = vpack.c.b16 %v2371, %v2370
    %v2382 = vpack.c.b16 %v2373, %v2372
    %v2383 = vpack.c.b16 %v2375, %v2374
    %v2385 = vsel %vm500, %v2376, 0
    %v2388 = vsel %vm500, %v2377, 0
    %v2391 = vsel %vm500, %v2378, 0
    %v2394 = vsel %vm500, %v2379, 0
    %v2397 = vsel %vm500, %v2380, 0
    %v2400 = vsel %vm500, %v2381, 0
    %v2403 = vsel %vm500, %v2382, 0
    %v2406 = vsel %vm500, %v2383, 0
    %2408 = vmatprep.subr.bf16.mxu0 %v2225
    %2409 = vmatpush1.bf16.msra.mxu0 %v2224
    %2410 = vmatprep.subr.bf16.mxu0 %v2227
    %2411 = vmatpush1.bf16.msra.mxu0 %v2226
    %2412 = vmatprep.subr.bf16.mxu0 %v2229
    %2413 = vmatpush1.bf16.msra.mxu0 %v2228
    %2414 = vmatprep.subr.bf16.mxu0 %v2231
    %2415 = vmatpush1.bf16.msra.mxu0 %v2230
    %2416 = vmatprep.subr.bf16.mxu0 0
    %2417 = vmatpush1.bf16.msra.mxu0 0
    %2418 = vmatprep.subr.bf16.mxu0 0
    %2419 = vmatpush1.bf16.msra.mxu0 0
    %2420 = vmatprep.subr.bf16.mxu0 0
    %2421 = vmatpush1.bf16.msra.mxu0 0
    %2422 = vmatprep.subr.bf16.mxu0 0
    %2423 = vmatpush1.bf16.msra.mxu0 0
    %2424 = vmatprep.subr.bf16.mxu0 0
    %2425 = vmatpush1.bf16.msra.mxu0 0
    %2426 = vmatprep.subr.bf16.mxu0 0
    %2427 = vmatpush1.bf16.msra.mxu0 0
    %2428 = vmatprep.subr.bf16.mxu0 0
    %2429 = vmatpush1.bf16.msra.mxu0 0
    %2430 = vmatprep.subr.bf16.mxu0 0
    %2431 = vmatpush1.bf16.msra.mxu0 0
    %2432 = vmatprep.subr.bf16.mxu0 0
    %2433 = vmatpush1.bf16.msra.mxu0 0
    %2434 = vmatprep.subr.bf16.mxu0 0
    %2435 = vmatpush1.bf16.msra.mxu0 0
    %2436 = vmatprep.subr.bf16.mxu0 0
    %2437 = vmatpush1.bf16.msra.mxu0 0
    %2438 = vmatprep.subr.bf16.mxu0 0
    %2439 = vmatpush1.bf16.msra.mxu0 0
    %2440 = vmatprep.mubr.bf16.mxu0 0
    %2441 = vmatmul.mubr.bf16.gmra.mrb[0].mxu0 %v2385
    %v2442 = vpop.f32.mrb[0].mxu0
    %v2443 = vadd.f32 %v2267, %v2442
    %v2444 = vpop.f32.mrb[0].mxu0
    %v2445 = vadd.f32 %v2267, %v2444
    %v2446 = vpop.f32.mrb[0].mxu0
    %v2447 = vadd.f32 %v2272, %v2446
    %v2448 = vpop.f32.mrb[0].mxu0
    %v2449 = vadd.f32 %v2272, %v2448
    %2450 = vmatprep.mubr.bf16.mxu0 0
    %2451 = vmatmul.mubr.bf16.gmra.mrb[0].mxu0 %v2388
    %v2452 = vpop.f32.mrb[0].mxu0
    %v2453 = vadd.f32 %v2277, %v2452
    %v2454 = vpop.f32.mrb[0].mxu0
    %v2455 = vadd.f32 %v2277, %v2454
    %v2456 = vpop.f32.mrb[0].mxu0
    %v2457 = vadd.f32 %v2282, %v2456
    %v2458 = vpop.f32.mrb[0].mxu0
    %v2459 = vadd.f32 %v2282, %v2458
    %2460 = vmatprep.mubr.bf16.mxu0 0
    %2461 = vmatmul.mubr.bf16.gmra.mrb[0].mxu0 %v2391
    %v2462 = vpop.f32.mrb[0].mxu0
    %v2463 = vadd.f32 %v2287, %v2462
    %v2464 = vpop.f32.mrb[0].mxu0
    %v2465 = vadd.f32 %v2287, %v2464
    %v2466 = vpop.f32.mrb[0].mxu0
    %v2467 = vadd.f32 %v2292, %v2466
    %v2468 = vpop.f32.mrb[0].mxu0
    %v2469 = vadd.f32 %v2292, %v2468
    %2470 = vmatprep.mubr.bf16.mxu0 0
    %2471 = vmatmul.mubr.bf16.gmra.mrb[0].mxu0 %v2394
    %v2472 = vpop.f32.mrb[0].mxu0
    %v2473 = vadd.f32 %v2297, %v2472
    %v2474 = vpop.f32.mrb[0].mxu0
    %v2475 = vadd.f32 %v2297, %v2474
    %v2476 = vpop.f32.mrb[0].mxu0
    %v2477 = vadd.f32 %v2302, %v2476
    %v2478 = vpop.f32.mrb[0].mxu0
    %v2479 = vadd.f32 %v2302, %v2478
    %2480 = vmatprep.mubr.bf16.mxu0 0
    %2481 = vmatmul.mubr.bf16.gmra.mrb[0].mxu0 %v2397
    %v2482 = vpop.f32.mrb[0].mxu0
    %v2483 = vadd.f32 %v2307, %v2482
    %v2484 = vpop.f32.mrb[0].mxu0
    %v2485 = vadd.f32 %v2307, %v2484
    %v2486 = vpop.f32.mrb[0].mxu0
    %v2487 = vadd.f32 %v2312, %v2486
    %v2488 = vpop.f32.mrb[0].mxu0
    %v2489 = vadd.f32 %v2312, %v2488
    %2490 = vmatprep.mubr.bf16.mxu0 0
    %2491 = vmatmul.mubr.bf16.gmra.mrb[0].mxu0 %v2400
    %v2492 = vpop.f32.mrb[0].mxu0
    %v2493 = vadd.f32 %v2317, %v2492
    %v2494 = vpop.f32.mrb[0].mxu0
    %v2495 = vadd.f32 %v2317, %v2494
    %v2496 = vpop.f32.mrb[0].mxu0
    %v2497 = vadd.f32 %v2322, %v2496
    %v2498 = vpop.f32.mrb[0].mxu0
    %v2499 = vadd.f32 %v2322, %v2498
    %2500 = vmatprep.mubr.bf16.mxu0 0
    %2501 = vmatmul.mubr.bf16.gmra.mrb[0].mxu0 %v2403
    %v2502 = vpop.f32.mrb[0].mxu0
    %v2503 = vadd.f32 %v2327, %v2502
    %v2504 = vpop.f32.mrb[0].mxu0
    %v2505 = vadd.f32 %v2327, %v2504
    %v2506 = vpop.f32.mrb[0].mxu0
    %v2507 = vadd.f32 %v2332, %v2506
    %v2508 = vpop.f32.mrb[0].mxu0
    %v2509 = vadd.f32 %v2332, %v2508
    %2510 = vmatprep.mubr.bf16.mxu0 0
    %2511 = vmatmul.mubr.bf16.gmra.mrb[0].mxu0 %v2406
    %v2512 = vpop.f32.mrb[0].mxu0
    %v2513 = vadd.f32 %v2337, %v2512
    %v2514 = vpop.f32.mrb[0].mxu0
    %v2515 = vadd.f32 %v2337, %v2514
    %v2516 = vpop.f32.mrb[0].mxu0
    %v2517 = vadd.f32 %v2342, %v2516
    %v2518 = vpop.f32.mrb[0].mxu0
    %v2519 = vadd.f32 %v2342, %v2518
    %2520 = vdwg.mxu0
    %v2521 = vmax.f32 %v2443, 0.0
    %v2522 = vmax.f32 %v2445, 0.0
    %v2523 = vmax.f32 %v2447, 0.0
    %v2524 = vmax.f32 %v2449, 0.0
    %v2525 = vmax.f32 %v2453, 0.0
    %v2526 = vmax.f32 %v2455, 0.0
    %v2527 = vmax.f32 %v2457, 0.0
    %v2528 = vmax.f32 %v2459, 0.0
    %v2529 = vmax.f32 %v2463, 0.0
    %v2530 = vmax.f32 %v2465, 0.0
    %v2531 = vmax.f32 %v2467, 0.0
    %v2532 = vmax.f32 %v2469, 0.0
    %v2533 = vmax.f32 %v2473, 0.0
    %v2534 = vmax.f32 %v2475, 0.0
    %v2535 = vmax.f32 %v2477, 0.0
    %v2536 = vmax.f32 %v2479, 0.0
    %v2537 = vmax.f32 %v2483, 0.0
    %v2538 = vmax.f32 %v2485, 0.0
    %v2539 = vmax.f32 %v2487, 0.0
    %v2540 = vmax.f32 %v2489, 0.0
    %v2541 = vmax.f32 %v2493, 0.0
    %v2542 = vmax.f32 %v2495, 0.0
    %v2543 = vmax.f32 %v2497, 0.0
    %v2544 = vmax.f32 %v2499, 0.0
    %v2545 = vmax.f32 %v2503, 0.0
    %v2546 = vmax.f32 %v2505, 0.0
    %v2547 = vmax.f32 %v2507, 0.0
    %v2548 = vmax.f32 %v2509, 0.0
    %v2549 = vmax.f32 %v2513, 0.0
    %v2550 = vmax.f32 %v2515, 0.0
    %v2551 = vmax.f32 %v2517, 0.0
    %v2552 = vmax.f32 %v2519, 0.0
    %v2553 = vpack.c.bf16 %v2523, %v2521
    %v2554 = vpack.c.bf16 %v2524, %v2522
    %v2555 = vpack.c.bf16 %v2527, %v2525
    %v2556 = vpack.c.bf16 %v2528, %v2526
    %v2557 = vpack.c.bf16 %v2531, %v2529
    %v2558 = vpack.c.bf16 %v2532, %v2530
    %v2559 = vpack.c.bf16 %v2535, %v2533
    %v2560 = vpack.c.bf16 %v2536, %v2534
    %v2561 = vpack.c.bf16 %v2539, %v2537
    %v2562 = vpack.c.bf16 %v2540, %v2538
    %v2563 = vpack.c.bf16 %v2543, %v2541
    %v2564 = vpack.c.bf16 %v2544, %v2542
    %v2565 = vpack.c.bf16 %v2547, %v2545
    %v2566 = vpack.c.bf16 %v2548, %v2546
    %v2567 = vpack.c.bf16 %v2551, %v2549
    %v2568 = vpack.c.bf16 %v2552, %v2550
    %v2569 = vld [vmem:[%s9] sm:$0xf]
    %v2570 = vld [vmem:[%s9 + $0x4] sm:$0xf]
    %v2571 = vld [vmem:[%s9 + $0x8] sm:$0xf]
    %v2572 = vld [vmem:[%s9 + $0xc] sm:$0xf]
    %v2573 = vld [vmem:[%s9 + $0x10] sm:$0xf]
    %v2574 = vld [vmem:[%s9 + $0x14] sm:$0xf]
    %v2575 = vld [vmem:[%s9 + $0x18] sm:$0xf]
    %v2576 = vld [vmem:[%s9 + $0x1c] sm:$0xf]
    %v2577 = vld [vmem:[%s9 + $0x20] sm:$0xf]
    %v2578 = vld [vmem:[%s9 + $0x24] sm:$0xf]
    %v2579 = vld [vmem:[%s9 + $0x28] sm:$0xf]
    %v2580 = vld [vmem:[%s9 + $0x2c] sm:$0xf]
    %v2581 = vld [vmem:[%s9 + $0x30] sm:$0xf]
    %v2582 = vld [vmem:[%s9 + $0x34] sm:$0xf]
    %v2583 = vld [vmem:[%s9 + $0x38] sm:$0xf]
    %v2584 = vld [vmem:[%s9 + $0x3c] sm:$0xf]
    %v2585 = vld [vmem:[%s10] sm:$0xff]
    %v2586 = vld [vmem:[%s10 + $0x8] sm:$0xff]
    %v2587 = vld [vmem:[%s10 + $0x10] sm:$0xff]
    %v2588 = vld [vmem:[%s10 + $0x18] sm:$0xff]
    %v2589 = vld [vmem:[%s10 + $0x20] sm:$0xff]
    %v2590 = vld [vmem:[%s10 + $0x28] sm:$0xff]
    %v2591 = vld [vmem:[%s10 + $0x30] sm:$0xff]
    %v2592 = vld [vmem:[%s10 + $0x38] sm:$0xff]
    %v2593 = vld [vmem:[%s10 + $0x40] sm:$0xff]
    %v2594 = vld [vmem:[%s10 + $0x48] sm:$0xff]
    %v2595 = vld [vmem:[%s10 + $0x50] sm:$0xff]
    %v2596 = vld [vmem:[%s10 + $0x58] sm:$0xff]
    %v2597 = vld [vmem:[%s10 + $0x60] sm:$0xff]
    %v2598 = vld [vmem:[%s10 + $0x68] sm:$0xff]
    %v2599 = vld [vmem:[%s10 + $0x70] sm:$0xff]
    %v2600 = vld [vmem:[%s10 + $0x78] sm:$0xff]
    %2602 = vset.pattern.permute.xlu0 0
    %2603 = vperm.xlu0 %2602, %v2585
    %v2604 = vpop.permute.xlu0 %2603
    %2607 = vset.pattern.permute.xlu0 0
    %2608 = vperm.xlu0 %2607, %v2586
    %v2609 = vpop.permute.xlu0 %2608
    %2612 = vset.pattern.permute.xlu0 0
    %2613 = vperm.xlu0 %2612, %v2587
    %v2614 = vpop.permute.xlu0 %2613
    %2617 = vset.pattern.permute.xlu0 0
    %2618 = vperm.xlu0 %2617, %v2588
    %v2619 = vpop.permute.xlu0 %2618
    %2622 = vset.pattern.permute.xlu0 0
    %2623 = vperm.xlu0 %2622, %v2589
    %v2624 = vpop.permute.xlu0 %2623
    %2627 = vset.pattern.permute.xlu0 0
    %2628 = vperm.xlu0 %2627, %v2590
    %v2629 = vpop.permute.xlu0 %2628
    %2632 = vset.pattern.permute.xlu0 0
    %2633 = vperm.xlu0 %2632, %v2591
    %v2634 = vpop.permute.xlu0 %2633
    %2637 = vset.pattern.permute.xlu0 0
    %2638 = vperm.xlu0 %2637, %v2592
    %v2639 = vpop.permute.xlu0 %2638
    %2642 = vset.pattern.permute.xlu0 0
    %2643 = vperm.xlu0 %2642, %v2593
    %v2644 = vpop.permute.xlu0 %2643
    %2647 = vset.pattern.permute.xlu0 0
    %2648 = vperm.xlu0 %2647, %v2594
    %v2649 = vpop.permute.xlu0 %2648
    %2652 = vset.pattern.permute.xlu0 0
    %2653 = vperm.xlu0 %2652, %v2595
    %v2654 = vpop.permute.xlu0 %2653
    %2657 = vset.pattern.permute.xlu0 0
    %2658 = vperm.xlu0 %2657, %v2596
    %v2659 = vpop.permute.xlu0 %2658
    %2662 = vset.pattern.permute.xlu0 0
    %2663 = vperm.xlu0 %2662, %v2597
    %v2664 = vpop.permute.xlu0 %2663
    %2667 = vset.pattern.permute.xlu0 0
    %2668 = vperm.xlu0 %2667, %v2598
    %v2669 = vpop.permute.xlu0 %2668
    %2672 = vset.pattern.permute.xlu0 0
    %2673 = vperm.xlu0 %2672, %v2599
    %v2674 = vpop.permute.xlu0 %2673
    %2677 = vset.pattern.permute.xlu0 0
    %2678 = vperm.xlu0 %2677, %v2600
    %v2679 = vpop.permute.xlu0 %2678
    %v2697 = vunpack.c.l.b16 %v2569
    %v2698 = vunpack.c.l.b16 %v2570
    %v2699 = vunpack.c.l.b16 %v2571
    %v2700 = vunpack.c.l.b16 %v2572
    %v2701 = vunpack.c.l.b16 %v2573
    %v2702 = vunpack.c.l.b16 %v2574
    %v2703 = vunpack.c.l.b16 %v2575
    %v2704 = vunpack.c.l.b16 %v2576
    %v2705 = vunpack.c.l.b16 %v2577
    %v2706 = vunpack.c.l.b16 %v2578
    %v2707 = vunpack.c.l.b16 %v2579
    %v2708 = vunpack.c.l.b16 %v2580
    %v2709 = vunpack.c.l.b16 %v2581
    %v2710 = vunpack.c.l.b16 %v2582
    %v2711 = vunpack.c.l.b16 %v2583
    %v2712 = vunpack.c.l.b16 %v2584
    %v2713 = vpack.c.b16 %v2698, %v2697
    %v2714 = vpack.c.b16 %v2700, %v2699
    %v2715 = vpack.c.b16 %v2702, %v2701
    %v2716 = vpack.c.b16 %v2704, %v2703
    %v2717 = vpack.c.b16 %v2706, %v2705
    %v2718 = vpack.c.b16 %v2708, %v2707
    %v2719 = vpack.c.b16 %v2710, %v2709
    %v2720 = vpack.c.b16 %v2712, %v2711
    %2729 = vmatprep.subr.bf16.mxu0 %v2554
    %2730 = vmatpush1.bf16.msra.mxu0 %v2553
    %2731 = vmatprep.subr.bf16.mxu0 %v2556
    %2732 = vmatpush1.bf16.msra.mxu0 %v2555
    %2733 = vmatprep.subr.bf16.mxu0 %v2558
    %2734 = vmatpush1.bf16.msra.mxu0 %v2557
    %2735 = vmatprep.subr.bf16.mxu0 %v2560
    %2736 = vmatpush1.bf16.msra.mxu0 %v2559
    %2737 = vmatprep.subr.bf16.mxu0 %v2562
    %2738 = vmatpush1.bf16.msra.mxu0 %v2561
    %2739 = vmatprep.subr.bf16.mxu0 %v2564
    %2740 = vmatpush1.bf16.msra.mxu0 %v2563
    %2741 = vmatprep.subr.bf16.mxu0 %v2566
    %2742 = vmatpush1.bf16.msra.mxu0 %v2565
    %2743 = vmatprep.subr.bf16.mxu0 %v2568
    %2744 = vmatpush1.bf16.msra.mxu0 %v2567
    %2745 = vmatprep.subr.bf16.mxu0 0
    %2746 = vmatpush1.bf16.msra.mxu0 0
    %2747 = vmatprep.subr.bf16.mxu0 0
    %2748 = vmatpush1.bf16.msra.mxu0 0
    %2749 = vmatprep.subr.bf16.mxu0 0
    %2750 = vmatpush1.bf16.msra.mxu0 0
    %2751 = vmatprep.subr.bf16.mxu0 0
    %2752 = vmatpush1.bf16.msra.mxu0 0
    %2753 = vmatprep.subr.bf16.mxu0 0
    %2754 = vmatpush1.bf16.msra.mxu0 0
    %2755 = vmatprep.subr.bf16.mxu0 0
    %2756 = vmatpush1.bf16.msra.mxu0 0
    %2757 = vmatprep.subr.bf16.mxu0 0
    %2758 = vmatpush1.bf16.msra.mxu0 0
    %2759 = vmatprep.subr.bf16.mxu0 0
    %2760 = vmatpush1.bf16.msra.mxu0 0
    %2761 = vmatprep.mubr.bf16.mxu0 0
    %2762 = vmatmul.mubr.bf16.gmra.mrb[0].mxu0 %v2713
    %v2763 = vpop.f32.mrb[0].mxu0
    %v2764 = vadd.f32 %v2604, %v2763
    %v2765 = vpop.f32.mrb[0].mxu0
    %v2766 = vadd.f32 %v2604, %v2765
    %v2767 = vpop.f32.mrb[0].mxu0
    %v2768 = vadd.f32 %v2609, %v2767
    %v2769 = vpop.f32.mrb[0].mxu0
    %v2770 = vadd.f32 %v2609, %v2769
    %2771 = vmatprep.mubr.bf16.mxu0 0
    %2772 = vmatmul.mubr.bf16.gmra.mrb[0].mxu0 %v2714
    %v2773 = vpop.f32.mrb[0].mxu0
    %v2774 = vadd.f32 %v2614, %v2773
    %v2775 = vpop.f32.mrb[0].mxu0
    %v2776 = vadd.f32 %v2614, %v2775
    %v2777 = vpop.f32.mrb[0].mxu0
    %v2778 = vadd.f32 %v2619, %v2777
    %v2779 = vpop.f32.mrb[0].mxu0
    %v2780 = vadd.f32 %v2619, %v2779
    %2781 = vmatprep.mubr.bf16.mxu0 0
    %2782 = vmatmul.mubr.bf16.gmra.mrb[0].mxu0 %v2715
    %v2783 = vpop.f32.mrb[0].mxu0
    %v2784 = vadd.f32 %v2624, %v2783
    %v2785 = vpop.f32.mrb[0].mxu0
    %v2786 = vadd.f32 %v2624, %v2785
    %v2787 = vpop.f32.mrb[0].mxu0
    %v2788 = vadd.f32 %v2629, %v2787
    %v2789 = vpop.f32.mrb[0].mxu0
    %v2790 = vadd.f32 %v2629, %v2789
    %2791 = vmatprep.mubr.bf16.mxu0 0
    %2792 = vmatmul.mubr.bf16.gmra.mrb[0].mxu0 %v2716
    %v2793 = vpop.f32.mrb[0].mxu0
    %v2794 = vadd.f32 %v2634, %v2793
    %v2795 = vpop.f32.mrb[0].mxu0
    %v2796 = vadd.f32 %v2634, %v2795
    %v2797 = vpop.f32.mrb[0].mxu0
    %v2798 = vadd.f32 %v2639, %v2797
    %v2799 = vpop.f32.mrb[0].mxu0
    %v2800 = vadd.f32 %v2639, %v2799
    %2801 = vmatprep.mubr.bf16.mxu0 0
    %2802 = vmatmul.mubr.bf16.gmra.mrb[0].mxu0 %v2717
    %v2803 = vpop.f32.mrb[0].mxu0
    %v2804 = vadd.f32 %v2644, %v2803
    %v2805 = vpop.f32.mrb[0].mxu0
    %v2806 = vadd.f32 %v2644, %v2805
    %v2807 = vpop.f32.mrb[0].mxu0
    %v2808 = vadd.f32 %v2649, %v2807
    %v2809 = vpop.f32.mrb[0].mxu0
    %v2810 = vadd.f32 %v2649, %v2809
    %2811 = vmatprep.mubr.bf16.mxu0 0
    %2812 = vmatmul.mubr.bf16.gmra.mrb[0].mxu0 %v2718
    %v2813 = vpop.f32.mrb[0].mxu0
    %v2814 = vadd.f32 %v2654, %v2813
    %v2815 = vpop.f32.mrb[0].mxu0
    %v2816 = vadd.f32 %v2654, %v2815
    %v2817 = vpop.f32.mrb[0].mxu0
    %v2818 = vadd.f32 %v2659, %v2817
    %v2819 = vpop.f32.mrb[0].mxu0
    %v2820 = vadd.f32 %v2659, %v2819
    %2821 = vmatprep.mubr.bf16.mxu0 0
    %2822 = vmatmul.mubr.bf16.gmra.mrb[0].mxu0 %v2719
    %v2823 = vpop.f32.mrb[0].mxu0
    %v2824 = vadd.f32 %v2664, %v2823
    %v2825 = vpop.f32.mrb[0].mxu0
    %v2826 = vadd.f32 %v2664, %v2825
    %v2827 = vpop.f32.mrb[0].mxu0
    %v2828 = vadd.f32 %v2669, %v2827
    %v2829 = vpop.f32.mrb[0].mxu0
    %v2830 = vadd.f32 %v2669, %v2829
    %2831 = vmatprep.mubr.bf16.mxu0 0
    %2832 = vmatmul.mubr.bf16.gmra.mrb[0].mxu0 %v2720
    %v2833 = vpop.f32.mrb[0].mxu0
    %v2834 = vadd.f32 %v2674, %v2833
    %v2835 = vpop.f32.mrb[0].mxu0
    %v2836 = vadd.f32 %v2674, %v2835
    %v2837 = vpop.f32.mrb[0].mxu0
    %v2838 = vadd.f32 %v2679, %v2837
    %v2839 = vpop.f32.mrb[0].mxu0
    %v2840 = vadd.f32 %v2679, %v2839
    %2841 = vdwg.mxu0
    %v2842 = vmax.f32 %v2764, 0.0
    %v2843 = vmax.f32 %v2766, 0.0
    %v2844 = vmax.f32 %v2768, 0.0
    %v2845 = vmax.f32 %v2770, 0.0
    %v2846 = vmax.f32 %v2774, 0.0
    %v2847 = vmax.f32 %v2776, 0.0
    %v2848 = vmax.f32 %v2778, 0.0
    %v2849 = vmax.f32 %v2780, 0.0
    %v2850 = vmax.f32 %v2784, 0.0
    %v2851 = vmax.f32 %v2786, 0.0
    %v2852 = vmax.f32 %v2788, 0.0
    %v2853 = vmax.f32 %v2790, 0.0
    %v2854 = vmax.f32 %v2794, 0.0
    %v2855 = vmax.f32 %v2796, 0.0
    %v2856 = vmax.f32 %v2798, 0.0
    %v2857 = vmax.f32 %v2800, 0.0
    %v2858 = vmax.f32 %v2804, 0.0
    %v2859 = vmax.f32 %v2806, 0.0
    %v2860 = vmax.f32 %v2808, 0.0
    %v2861 = vmax.f32 %v2810, 0.0
    %v2862 = vmax.f32 %v2814, 0.0
    %v2863 = vmax.f32 %v2816, 0.0
    %v2864 = vmax.f32 %v2818, 0.0
    %v2865 = vmax.f32 %v2820, 0.0
    %v2866 = vmax.f32 %v2824, 0.0
    %v2867 = vmax.f32 %v2826, 0.0
    %v2868 = vmax.f32 %v2828, 0.0
    %v2869 = vmax.f32 %v2830, 0.0
    %v2870 = vmax.f32 %v2834, 0.0
    %v2871 = vmax.f32 %v2836, 0.0
    %v2872 = vmax.f32 %v2838, 0.0
    %v2873 = vmax.f32 %v2840, 0.0
    %v2874 = vpack.c.bf16 %v2844, %v2842
    %v2875 = vpack.c.bf16 %v2845, %v2843
    %v2876 = vpack.c.bf16 %v2848, %v2846
    %v2877 = vpack.c.bf16 %v2849, %v2847
    %v2878 = vpack.c.bf16 %v2852, %v2850
    %v2879 = vpack.c.bf16 %v2853, %v2851
    %v2880 = vpack.c.bf16 %v2856, %v2854
    %v2881 = vpack.c.bf16 %v2857, %v2855
    %v2882 = vpack.c.bf16 %v2860, %v2858
    %v2883 = vpack.c.bf16 %v2861, %v2859
    %v2884 = vpack.c.bf16 %v2864, %v2862
    %v2885 = vpack.c.bf16 %v2865, %v2863
    %v2886 = vpack.c.bf16 %v2868, %v2866
    %v2887 = vpack.c.bf16 %v2869, %v2867
    %v2888 = vpack.c.bf16 %v2872, %v2870
    %v2889 = vpack.c.bf16 %v2873, %v2871
    %v2890 = vmax.bf16 %v2874, %v2875
    %v2891 = vmax.bf16 %v2876, %v2877
    %v2892 = vmax.bf16 %v2878, %v2879
    %v2893 = vmax.bf16 %v2880, %v2881
    %v2894 = vmax.bf16 %v2882, %v2883
    %v2895 = vmax.bf16 %v2884, %v2885
    %v2896 = vmax.bf16 %v2886, %v2887
    %v2897 = vmax.bf16 %v2888, %v2889
    %s2898 = scalar_lea.vmem [#allocation2], 128
    %v2899 = vld [vmem:[%s2898] sm:$0xff]
    %v2900 = vld [vmem:[%s2898 + $0x8] sm:$0xff]
    %v2901 = vld [vmem:[%s2898 + $0x10] sm:$0xff]
    %v2902 = vld [vmem:[%s2898 + $0x18] sm:$0xff]
    %v2903 = vld [vmem:[%s2898 + $0x20] sm:$0xff]
    %v2904 = vld [vmem:[%s2898 + $0x28] sm:$0xff]
    %v2905 = vld [vmem:[%s2898 + $0x30] sm:$0xff]
    %v2906 = vld [vmem:[%s2898 + $0x38] sm:$0xff]
    %v2907 = vld [vmem:[%s2898 + $0x40] sm:$0xff]
    %v2908 = vld [vmem:[%s2898 + $0x48] sm:$0xff]
    %v2909 = vld [vmem:[%s2898 + $0x50] sm:$0xff]
    %v2910 = vld [vmem:[%s2898 + $0x58] sm:$0xff]
    %v2911 = vld [vmem:[%s2898 + $0x60] sm:$0xff]
    %v2912 = vld [vmem:[%s2898 + $0x68] sm:$0xff]
    %v2913 = vld [vmem:[%s2898 + $0x70] sm:$0xff]
    %v2914 = vld [vmem:[%s2898 + $0x78] sm:$0xff]
    %v2915 = vunpack.c.l.bf16 %v2890
    %v2916 = vunpack.c.h.bf16 %v2890
    %v2917 = vunpack.c.l.bf16 %v2891
    %v2918 = vunpack.c.h.bf16 %v2891
    %v2919 = vunpack.c.l.bf16 %v2892
    %v2920 = vunpack.c.h.bf16 %v2892
    %v2921 = vunpack.c.l.bf16 %v2893
    %v2922 = vunpack.c.h.bf16 %v2893
    %v2923 = vunpack.c.l.bf16 %v2894
    %v2924 = vunpack.c.h.bf16 %v2894
    %v2925 = vunpack.c.l.bf16 %v2895
    %v2926 = vunpack.c.h.bf16 %v2895
    %v2927 = vunpack.c.l.bf16 %v2896
    %v2928 = vunpack.c.h.bf16 %v2896
    %v2929 = vunpack.c.l.bf16 %v2897
    %v2930 = vunpack.c.h.bf16 %v2897
    %v2931 = vmax.f32 %v2899, %v2915
    %v2932 = vmax.f32 %v2900, %v2916
    %v2933 = vmax.f32 %v2901, %v2917
    %v2934 = vmax.f32 %v2902, %v2918
    %v2935 = vmax.f32 %v2903, %v2919
    %v2936 = vmax.f32 %v2904, %v2920
    %v2937 = vmax.f32 %v2905, %v2921
    %v2938 = vmax.f32 %v2906, %v2922
    %v2939 = vmax.f32 %v2907, %v2923
    %v2940 = vmax.f32 %v2908, %v2924
    %v2941 = vmax.f32 %v2909, %v2925
    %v2942 = vmax.f32 %v2910, %v2926
    %v2943 = vmax.f32 %v2911, %v2927
    %v2944 = vmax.f32 %v2912, %v2928
    %v2945 = vmax.f32 %v2913, %v2929
    %v2946 = vmax.f32 %v2914, %v2930
    %2947 = vst [vmem:[%s2898] sm:$0xff] %v2931
    %2948 = vst [vmem:[%s2898 + $0x8] sm:$0xff] %v2932
    %2949 = vst [vmem:[%s2898 + $0x10] sm:$0xff] %v2933
    %2950 = vst [vmem:[%s2898 + $0x18] sm:$0xff] %v2934
    %2951 = vst [vmem:[%s2898 + $0x20] sm:$0xff] %v2935
    %2952 = vst [vmem:[%s2898 + $0x28] sm:$0xff] %v2936
    %2953 = vst [vmem:[%s2898 + $0x30] sm:$0xff] %v2937
    %2954 = vst [vmem:[%s2898 + $0x38] sm:$0xff] %v2938
    %2955 = vst [vmem:[%s2898 + $0x40] sm:$0xff] %v2939
    %2956 = vst [vmem:[%s2898 + $0x48] sm:$0xff] %v2940
    %2957 = vst [vmem:[%s2898 + $0x50] sm:$0xff] %v2941
    %2958 = vst [vmem:[%s2898 + $0x58] sm:$0xff] %v2942
    %2959 = vst [vmem:[%s2898 + $0x60] sm:$0xff] %v2943
    %2960 = vst [vmem:[%s2898 + $0x68] sm:$0xff] %v2944
    %2961 = vst [vmem:[%s2898 + $0x70] sm:$0xff] %v2945
    %2962 = vst [vmem:[%s2898 + $0x78] sm:$0xff] %v2946
    // Predicated region
    $region66: #{pointnet_forward.1} parent=1 // pred_check
      %p2963 = pneg %p52
    $region67: #{pointnet_forward.1} parent=1 // pred_check_branch
      %2965 = sbr.rel (%p2963) target = $region69
    $region68: #{pointnet_forward.1} parent=1 // pred_region
      %v2966 = vld [vmem:[#allocation2] sm:$0xff]
      %v2967 = vld [vmem:[#allocation2 + $0x8] sm:$0xff]
      %v2968 = vld [vmem:[#allocation2 + $0x10] sm:$0xff]
      %v2969 = vld [vmem:[#allocation2 + $0x18] sm:$0xff]
      %v2970 = vld [vmem:[#allocation2 + $0x20] sm:$0xff]
      %v2971 = vld [vmem:[#allocation2 + $0x28] sm:$0xff]
      %v2972 = vld [vmem:[#allocation2 + $0x30] sm:$0xff]
      %v2973 = vld [vmem:[#allocation2 + $0x38] sm:$0xff]
      %v2974 = vld [vmem:[#allocation2 + $0x40] sm:$0xff]
      %v2975 = vld [vmem:[#allocation2 + $0x48] sm:$0xff]
      %v2976 = vld [vmem:[#allocation2 + $0x50] sm:$0xff]
      %v2977 = vld [vmem:[#allocation2 + $0x58] sm:$0xff]
      %v2978 = vld [vmem:[#allocation2 + $0x60] sm:$0xff]
      %v2979 = vld [vmem:[#allocation2 + $0x68] sm:$0xff]
      %v2980 = vld [vmem:[#allocation2 + $0x70] sm:$0xff]
      %v2981 = vld [vmem:[#allocation2 + $0x78] sm:$0xff]
      %v2982 = vld [vmem:[#allocation2 + $0x80] sm:$0xff]
      %v2983 = vld [vmem:[#allocation2 + $0x88] sm:$0xff]
      %v2984 = vld [vmem:[#allocation2 + $0x90] sm:$0xff]
      %v2985 = vld [vmem:[#allocation2 + $0x98] sm:$0xff]
      %v2986 = vld [vmem:[#allocation2 + $0xa0] sm:$0xff]
      %v2987 = vld [vmem:[#allocation2 + $0xa8] sm:$0xff]
      %v2988 = vld [vmem:[#allocation2 + $0xb0] sm:$0xff]
      %v2989 = vld [vmem:[#allocation2 + $0xb8] sm:$0xff]
      %v2990 = vld [vmem:[#allocation2 + $0xc0] sm:$0xff]
      %v2991 = vld [vmem:[#allocation2 + $0xc8] sm:$0xff]
      %v2992 = vld [vmem:[#allocation2 + $0xd0] sm:$0xff]
      %v2993 = vld [vmem:[#allocation2 + $0xd8] sm:$0xff]
      %v2994 = vld [vmem:[#allocation2 + $0xe0] sm:$0xff]
      %v2995 = vld [vmem:[#allocation2 + $0xe8] sm:$0xff]
      %v2996 = vld [vmem:[#allocation2 + $0xf0] sm:$0xff]
      %v2997 = vld [vmem:[#allocation2 + $0xf8] sm:$0xff]
      %2998 = vmax.xlane.f32.xlu0 %v2966
      %v2999 = vpop.xlane.xlu0 %2998
      %3000 = vmax.xlane.f32.xlu0 %v2967
      %v3001 = vpop.xlane.xlu0 %3000
      %3002 = vmax.xlane.f32.xlu0 %v2968
      %v3003 = vpop.xlane.xlu0 %3002
      %3004 = vmax.xlane.f32.xlu0 %v2969
      %v3005 = vpop.xlane.xlu0 %3004
      %3006 = vmax.xlane.f32.xlu0 %v2970
      %v3007 = vpop.xlane.xlu0 %3006
      %3008 = vmax.xlane.f32.xlu0 %v2971
      %v3009 = vpop.xlane.xlu0 %3008
      %3010 = vmax.xlane.f32.xlu0 %v2972
      %v3011 = vpop.xlane.xlu0 %3010
      %3012 = vmax.xlane.f32.xlu0 %v2973
      %v3013 = vpop.xlane.xlu0 %3012
      %3014 = vmax.xlane.f32.xlu0 %v2974
      %v3015 = vpop.xlane.xlu0 %3014
      %3016 = vmax.xlane.f32.xlu0 %v2975
      %v3017 = vpop.xlane.xlu0 %3016
      %3018 = vmax.xlane.f32.xlu0 %v2976
      %v3019 = vpop.xlane.xlu0 %3018
      %3020 = vmax.xlane.f32.xlu0 %v2977
      %v3021 = vpop.xlane.xlu0 %3020
      %3022 = vmax.xlane.f32.xlu0 %v2978
      %v3023 = vpop.xlane.xlu0 %3022
      %3024 = vmax.xlane.f32.xlu0 %v2979
      %v3025 = vpop.xlane.xlu0 %3024
      %3026 = vmax.xlane.f32.xlu0 %v2980
      %v3027 = vpop.xlane.xlu0 %3026
      %3028 = vmax.xlane.f32.xlu0 %v2981
      %v3029 = vpop.xlane.xlu0 %3028
      %3030 = vmax.xlane.f32.xlu0 %v2982
      %v3031 = vpop.xlane.xlu0 %3030
      %3032 = vmax.xlane.f32.xlu0 %v2983
      %v3033 = vpop.xlane.xlu0 %3032
      %3034 = vmax.xlane.f32.xlu0 %v2984
      %v3035 = vpop.xlane.xlu0 %3034
      %3036 = vmax.xlane.f32.xlu0 %v2985
      %v3037 = vpop.xlane.xlu0 %3036
      %3038 = vmax.xlane.f32.xlu0 %v2986
      %v3039 = vpop.xlane.xlu0 %3038
      %3040 = vmax.xlane.f32.xlu0 %v2987
      %v3041 = vpop.xlane.xlu0 %3040
      %3042 = vmax.xlane.f32.xlu0 %v2988
      %v3043 = vpop.xlane.xlu0 %3042
      %3044 = vmax.xlane.f32.xlu0 %v2989
      %v3045 = vpop.xlane.xlu0 %3044
      %3046 = vmax.xlane.f32.xlu0 %v2990
      %v3047 = vpop.xlane.xlu0 %3046
      %3048 = vmax.xlane.f32.xlu0 %v2991
      %v3049 = vpop.xlane.xlu0 %3048
      %3050 = vmax.xlane.f32.xlu0 %v2992
      %v3051 = vpop.xlane.xlu0 %3050
      %3052 = vmax.xlane.f32.xlu0 %v2993
      %v3053 = vpop.xlane.xlu0 %3052
      %3054 = vmax.xlane.f32.xlu0 %v2994
      %v3055 = vpop.xlane.xlu0 %3054
      %3056 = vmax.xlane.f32.xlu0 %v2995
      %v3057 = vpop.xlane.xlu0 %3056
      %3058 = vmax.xlane.f32.xlu0 %v2996
      %v3059 = vpop.xlane.xlu0 %3058
      %3060 = vmax.xlane.f32.xlu0 %v2997
      %v3061 = vpop.xlane.xlu0 %3060
      %v3062 = vpack.c.bf16 %v3001, %v2999
      %v3063 = vpack.c.bf16 %v3005, %v3003
      %v3064 = vpack.c.bf16 %v3009, %v3007
      %v3065 = vpack.c.bf16 %v3013, %v3011
      %v3066 = vpack.c.bf16 %v3017, %v3015
      %v3067 = vpack.c.bf16 %v3021, %v3019
      %v3068 = vpack.c.bf16 %v3025, %v3023
      %v3069 = vpack.c.bf16 %v3029, %v3027
      %v3070 = vpack.c.bf16 %v3033, %v3031
      %v3071 = vpack.c.bf16 %v3037, %v3035
      %v3072 = vpack.c.bf16 %v3041, %v3039
      %v3073 = vpack.c.bf16 %v3045, %v3043
      %v3074 = vpack.c.bf16 %v3049, %v3047
      %v3075 = vpack.c.bf16 %v3053, %v3051
      %v3076 = vpack.c.bf16 %v3057, %v3055
      %v3077 = vpack.c.bf16 %v3061, %v3059
      %v3078 = vld [vmem:[%s11] sm:$0xff]
      %v3079 = vld [vmem:[%s11 + $0x8] sm:$0xff]
      %v3080 = vld [vmem:[%s11 + $0x10] sm:$0xff]
      %v3081 = vld [vmem:[%s11 + $0x18] sm:$0xff]
      %v3082 = vld [vmem:[%s11 + $0x20] sm:$0xff]
      %v3083 = vld [vmem:[%s11 + $0x28] sm:$0xff]
      %v3084 = vld [vmem:[%s11 + $0x30] sm:$0xff]
      %v3085 = vld [vmem:[%s11 + $0x38] sm:$0xff]
      %v3086 = vld [vmem:[%s11 + $0x40] sm:$0xff]
      %v3087 = vld [vmem:[%s11 + $0x48] sm:$0xff]
      %v3088 = vld [vmem:[%s11 + $0x50] sm:$0xff]
      %v3089 = vld [vmem:[%s11 + $0x58] sm:$0xff]
      %v3090 = vld [vmem:[%s11 + $0x60] sm:$0xff]
      %v3091 = vld [vmem:[%s11 + $0x68] sm:$0xff]
      %v3092 = vld [vmem:[%s11 + $0x70] sm:$0xff]
      %v3093 = vld [vmem:[%s11 + $0x78] sm:$0xff]
      %v3094 = vld [vmem:[%s12] sm:$0x3]
      %v3096 = vlaneseq
      %v3097 = vshrl.u32 %v3096, 7
      %v3098 = vsub.s32 0, %v3097
      %v3099 = vrot.slane %v3094, %v3098
      %v3100 = vlaneseq
      %v3101 = vshrl.u32 %v3100, 7
      %v3102 = vsub.s32 1, %v3101
      %v3103 = vrot.slane %v3094, %v3102
      %v3122 = vunpack.c.l.b16 %v3062
      %v3123 = vunpack.c.h.b16 %v3062
      %v3124 = vunpack.c.l.b16 %v3063
      %v3125 = vunpack.c.h.b16 %v3063
      %v3126 = vunpack.c.l.b16 %v3064
      %v3127 = vunpack.c.h.b16 %v3064
      %v3128 = vunpack.c.l.b16 %v3065
      %v3129 = vunpack.c.h.b16 %v3065
      %v3130 = vunpack.c.l.b16 %v3066
      %v3131 = vunpack.c.h.b16 %v3066
      %v3132 = vunpack.c.l.b16 %v3067
      %v3133 = vunpack.c.h.b16 %v3067
      %v3134 = vunpack.c.l.b16 %v3068
      %v3135 = vunpack.c.h.b16 %v3068
      %v3136 = vunpack.c.l.b16 %v3069
      %v3137 = vunpack.c.h.b16 %v3069
      %v3138 = vunpack.c.l.b16 %v3070
      %v3139 = vunpack.c.h.b16 %v3070
      %v3140 = vunpack.c.l.b16 %v3071
      %v3141 = vunpack.c.h.b16 %v3071
      %v3142 = vunpack.c.l.b16 %v3072
      %v3143 = vunpack.c.h.b16 %v3072
      %v3144 = vunpack.c.l.b16 %v3073
      %v3145 = vunpack.c.h.b16 %v3073
      %v3146 = vunpack.c.l.b16 %v3074
      %v3147 = vunpack.c.h.b16 %v3074
      %v3148 = vunpack.c.l.b16 %v3075
      %v3149 = vunpack.c.h.b16 %v3075
      %v3150 = vunpack.c.l.b16 %v3076
      %v3151 = vunpack.c.h.b16 %v3076
      %v3152 = vunpack.c.l.b16 %v3077
      %v3153 = vunpack.c.h.b16 %v3077
      %v3154 = vlaneseq
      %v3155 = vand.u32 %v3154, 127
      %v3156 = vlaneseq
      %v3157 = vshrl.u32 %v3156, 7
      %v3158 = vsub.s32 %v3155, %v3157
      %v3159 = vrot.slane %v3122, %v3158
      %v3160 = vadd.s32 %v3155, 4294967288
      %v3161 = vlaneseq
      %v3162 = vshrl.u32 %v3161, 7
      %v3163 = vsub.s32 %v3160, %v3162
      %v3164 = vrot.slane %v3123, %v3163
      %vm3165 = vcmask 130112
      %v3166 = vsel %vm3165, %v3164, %v3159
      %v3167 = vadd.s32 %v3155, 4294967280
      %v3168 = vlaneseq
      %v3169 = vshrl.u32 %v3168, 7
      %v3170 = vsub.s32 %v3167, %v3169
      %v3171 = vrot.slane %v3124, %v3170
      %vm3172 = vcmask 195712
      %v3173 = vsel %vm3172, %v3171, %v3166
      %v3174 = vadd.s32 %v3155, 4294967272
      %v3175 = vlaneseq
      %v3176 = vshrl.u32 %v3175, 7
      %v3177 = vsub.s32 %v3174, %v3176
      %v3178 = vrot.slane %v3125, %v3177
      %vm3179 = vcmask 261312
      %v3180 = vsel %vm3179, %v3178, %v3173
      %v3181 = vadd.s32 %v3155, 4294967264
      %v3182 = vlaneseq
      %v3183 = vshrl.u32 %v3182, 7
      %v3184 = vsub.s32 %v3181, %v3183
      %v3185 = vrot.slane %v3126, %v3184
      %vm3186 = vcmask 326912
      %v3187 = vsel %vm3186, %v3185, %v3180
      %v3188 = vadd.s32 %v3155, 4294967256
      %v3189 = vlaneseq
      %v3190 = vshrl.u32 %v3189, 7
      %v3191 = vsub.s32 %v3188, %v3190
      %v3192 = vrot.slane %v3127, %v3191
      %vm3193 = vcmask 392512
      %v3194 = vsel %vm3193, %v3192, %v3187
      %v3195 = vadd.s32 %v3155, 4294967248
      %v3196 = vlaneseq
      %v3197 = vshrl.u32 %v3196, 7
      %v3198 = vsub.s32 %v3195, %v3197
      %v3199 = vrot.slane %v3128, %v3198
      %vm3200 = vcmask 458112
      %v3201 = vsel %vm3200, %v3199, %v3194
      %v3202 = vadd.s32 %v3155, 4294967240
      %v3203 = vlaneseq
      %v3204 = vshrl.u32 %v3203, 7
      %v3205 = vsub.s32 %v3202, %v3204
      %v3206 = vrot.slane %v3129, %v3205
      %vm3207 = vcmask 523712
      %v3208 = vsel %vm3207, %v3206, %v3201
      %v3209 = vadd.s32 %v3155, 4294967232
      %v3210 = vlaneseq
      %v3211 = vshrl.u32 %v3210, 7
      %v3212 = vsub.s32 %v3209, %v3211
      %v3213 = vrot.slane %v3130, %v3212
      %vm3214 = vcmask 589312
      %v3215 = vsel %vm3214, %v3213, %v3208
      %v3216 = vadd.s32 %v3155, 4294967224
      %v3217 = vlaneseq
      %v3218 = vshrl.u32 %v3217, 7
      %v3219 = vsub.s32 %v3216, %v3218
      %v3220 = vrot.slane %v3131, %v3219
      %vm3221 = vcmask 654912
      %v3222 = vsel %vm3221, %v3220, %v3215
      %v3223 = vadd.s32 %v3155, 4294967216
      %v3224 = vlaneseq
      %v3225 = vshrl.u32 %v3224, 7
      %v3226 = vsub.s32 %v3223, %v3225
      %v3227 = vrot.slane %v3132, %v3226
      %vm3228 = vcmask 720512
      %v3229 = vsel %vm3228, %v3227, %v3222
      %v3230 = vadd.s32 %v3155, 4294967208
      %v3231 = vlaneseq
      %v3232 = vshrl.u32 %v3231, 7
      %v3233 = vsub.s32 %v3230, %v3232
      %v3234 = vrot.slane %v3133, %v3233
      %vm3235 = vcmask 786112
      %v3236 = vsel %vm3235, %v3234, %v3229
      %v3237 = vadd.s32 %v3155, 4294967200
      %v3238 = vlaneseq
      %v3239 = vshrl.u32 %v3238, 7
      %v3240 = vsub.s32 %v3237, %v3239
      %v3241 = vrot.slane %v3134, %v3240
      %vm3242 = vcmask 851712
      %v3243 = vsel %vm3242, %v3241, %v3236
      %v3244 = vadd.s32 %v3155, 4294967192
      %v3245 = vlaneseq
      %v3246 = vshrl.u32 %v3245, 7
      %v3247 = vsub.s32 %v3244, %v3246
      %v3248 = vrot.slane %v3135, %v3247
      %vm3249 = vcmask 917312
      %v3250 = vsel %vm3249, %v3248, %v3243
      %v3251 = vadd.s32 %v3155, 4294967184
      %v3252 = vlaneseq
      %v3253 = vshrl.u32 %v3252, 7
      %v3254 = vsub.s32 %v3251, %v3253
      %v3255 = vrot.slane %v3136, %v3254
      %vm3256 = vcmask 982912
      %v3257 = vsel %vm3256, %v3255, %v3250
      %v3258 = vadd.s32 %v3155, 4294967176
      %v3259 = vlaneseq
      %v3260 = vshrl.u32 %v3259, 7
      %v3261 = vsub.s32 %v3258, %v3260
      %v3262 = vrot.slane %v3137, %v3261
      %vm3263 = vcmask 1048512
      %v3264 = vsel %vm3263, %v3262, %v3257
      %v3265 = vlaneseq
      %v3266 = vshrl.u32 %v3265, 7
      %v3267 = vsub.s32 %v3155, %v3266
      %v3268 = vrot.slane %v3138, %v3267
      %v3269 = vlaneseq
      %v3270 = vshrl.u32 %v3269, 7
      %v3271 = vsub.s32 %v3160, %v3270
      %v3272 = vrot.slane %v3139, %v3271
      %v3273 = vsel %vm3165, %v3272, %v3268
      %v3274 = vlaneseq
      %v3275 = vshrl.u32 %v3274, 7
      %v3276 = vsub.s32 %v3167, %v3275
      %v3277 = vrot.slane %v3140, %v3276
      %v3278 = vsel %vm3172, %v3277, %v3273
      %v3279 = vlaneseq
      %v3280 = vshrl.u32 %v3279, 7
      %v3281 = vsub.s32 %v3174, %v3280
      %v3282 = vrot.slane %v3141, %v3281
      %v3283 = vsel %vm3179, %v3282, %v3278
      %v3284 = vlaneseq
      %v3285 = vshrl.u32 %v3284, 7
      %v3286 = vsub.s32 %v3181, %v3285
      %v3287 = vrot.slane %v3142, %v3286
      %v3288 = vsel %vm3186, %v3287, %v3283
      %v3289 = vlaneseq
      %v3290 = vshrl.u32 %v3289, 7
      %v3291 = vsub.s32 %v3188, %v3290
      %v3292 = vrot.slane %v3143, %v3291
      %v3293 = vsel %vm3193, %v3292, %v3288
      %v3294 = vlaneseq
      %v3295 = vshrl.u32 %v3294, 7
      %v3296 = vsub.s32 %v3195, %v3295
      %v3297 = vrot.slane %v3144, %v3296
      %v3298 = vsel %vm3200, %v3297, %v3293
      %v3299 = vlaneseq
      %v3300 = vshrl.u32 %v3299, 7
      %v3301 = vsub.s32 %v3202, %v3300
      %v3302 = vrot.slane %v3145, %v3301
      %v3303 = vsel %vm3207, %v3302, %v3298
      %v3304 = vlaneseq
      %v3305 = vshrl.u32 %v3304, 7
      %v3306 = vsub.s32 %v3209, %v3305
      %v3307 = vrot.slane %v3146, %v3306
      %v3308 = vsel %vm3214, %v3307, %v3303
      %v3309 = vlaneseq
      %v3310 = vshrl.u32 %v3309, 7
      %v3311 = vsub.s32 %v3216, %v3310
      %v3312 = vrot.slane %v3147, %v3311
      %v3313 = vsel %vm3221, %v3312, %v3308
      %v3314 = vlaneseq
      %v3315 = vshrl.u32 %v3314, 7
      %v3316 = vsub.s32 %v3223, %v3315
      %v3317 = vrot.slane %v3148, %v3316
      %v3318 = vsel %vm3228, %v3317, %v3313
      %v3319 = vlaneseq
      %v3320 = vshrl.u32 %v3319, 7
      %v3321 = vsub.s32 %v3230, %v3320
      %v3322 = vrot.slane %v3149, %v3321
      %v3323 = vsel %vm3235, %v3322, %v3318
      %v3324 = vlaneseq
      %v3325 = vshrl.u32 %v3324, 7
      %v3326 = vsub.s32 %v3237, %v3325
      %v3327 = vrot.slane %v3150, %v3326
      %v3328 = vsel %vm3242, %v3327, %v3323
      %v3329 = vlaneseq
      %v3330 = vshrl.u32 %v3329, 7
      %v3331 = vsub.s32 %v3244, %v3330
      %v3332 = vrot.slane %v3151, %v3331
      %v3333 = vsel %vm3249, %v3332, %v3328
      %v3334 = vlaneseq
      %v3335 = vshrl.u32 %v3334, 7
      %v3336 = vsub.s32 %v3251, %v3335
      %v3337 = vrot.slane %v3152, %v3336
      %v3338 = vsel %vm3256, %v3337, %v3333
      %v3339 = vlaneseq
      %v3340 = vshrl.u32 %v3339, 7
      %v3341 = vsub.s32 %v3258, %v3340
      %v3342 = vrot.slane %v3153, %v3341
      %v3343 = vsel %vm3263, %v3342, %v3338
      %vm3344 = vcmask 1041409
      %v3345 = vsel %vm3344, %v3343, %v3264
      %v3346 = vpack.c.b16 %v3345, %v3345
      %v3364 = vunpack.c.l.b16 %v3078
      %v3365 = vunpack.c.h.b16 %v3078
      %v3366 = vunpack.c.l.b16 %v3079
      %v3367 = vunpack.c.h.b16 %v3079
      %v3368 = vunpack.c.l.b16 %v3080
      %v3369 = vunpack.c.h.b16 %v3080
      %v3370 = vunpack.c.l.b16 %v3081
      %v3371 = vunpack.c.h.b16 %v3081
      %v3372 = vunpack.c.l.b16 %v3082
      %v3373 = vunpack.c.h.b16 %v3082
      %v3374 = vunpack.c.l.b16 %v3083
      %v3375 = vunpack.c.h.b16 %v3083
      %v3376 = vunpack.c.l.b16 %v3084
      %v3377 = vunpack.c.h.b16 %v3084
      %v3378 = vunpack.c.l.b16 %v3085
      %v3379 = vunpack.c.h.b16 %v3085
      %v3380 = vunpack.c.l.b16 %v3086
      %v3381 = vunpack.c.h.b16 %v3086
      %v3382 = vunpack.c.l.b16 %v3087
      %v3383 = vunpack.c.h.b16 %v3087
      %v3384 = vunpack.c.l.b16 %v3088
      %v3385 = vunpack.c.h.b16 %v3088
      %v3386 = vunpack.c.l.b16 %v3089
      %v3387 = vunpack.c.h.b16 %v3089
      %v3388 = vunpack.c.l.b16 %v3090
      %v3389 = vunpack.c.h.b16 %v3090
      %v3390 = vunpack.c.l.b16 %v3091
      %v3391 = vunpack.c.h.b16 %v3091
      %v3392 = vunpack.c.l.b16 %v3092
      %v3393 = vunpack.c.h.b16 %v3092
      %v3394 = vunpack.c.l.b16 %v3093
      %v3395 = vunpack.c.h.b16 %v3093
      %v3396 = vpack.c.b16 %v3366, %v3364
      %v3397 = vpack.c.b16 %v3367, %v3365
      %v3398 = vpack.c.b16 %v3370, %v3368
      %v3399 = vpack.c.b16 %v3371, %v3369
      %v3400 = vpack.c.b16 %v3374, %v3372
      %v3401 = vpack.c.b16 %v3375, %v3373
      %v3402 = vpack.c.b16 %v3378, %v3376
      %v3403 = vpack.c.b16 %v3379, %v3377
      %v3404 = vpack.c.b16 %v3382, %v3380
      %v3405 = vpack.c.b16 %v3383, %v3381
      %v3406 = vpack.c.b16 %v3386, %v3384
      %v3407 = vpack.c.b16 %v3387, %v3385
      %v3408 = vpack.c.b16 %v3390, %v3388
      %v3409 = vpack.c.b16 %v3391, %v3389
      %v3410 = vpack.c.b16 %v3394, %v3392
      %v3411 = vpack.c.b16 %v3395, %v3393
      %3428 = vmatprep.subr.bf16.mxu0 %v3397
      %3429 = vmatpush1.bf16.msra.mxu0 %v3396
      %3430 = vmatprep.subr.bf16.mxu0 %v3399
      %3431 = vmatpush1.bf16.msra.mxu0 %v3398
      %3432 = vmatprep.subr.bf16.mxu0 %v3401
      %3433 = vmatpush1.bf16.msra.mxu0 %v3400
      %3434 = vmatprep.subr.bf16.mxu0 %v3403
      %3435 = vmatpush1.bf16.msra.mxu0 %v3402
      %3436 = vmatprep.subr.bf16.mxu0 %v3405
      %3437 = vmatpush1.bf16.msra.mxu0 %v3404
      %3438 = vmatprep.subr.bf16.mxu0 %v3407
      %3439 = vmatpush1.bf16.msra.mxu0 %v3406
      %3440 = vmatprep.subr.bf16.mxu0 %v3409
      %3441 = vmatpush1.bf16.msra.mxu0 %v3408
      %3442 = vmatprep.subr.bf16.mxu0 %v3411
      %3443 = vmatpush1.bf16.msra.mxu0 %v3410
      %3444 = vmatprep.subr.bf16.mxu0 0
      %3445 = vmatpush1.bf16.msra.mxu0 0
      %3446 = vmatprep.subr.bf16.mxu0 0
      %3447 = vmatpush1.bf16.msra.mxu0 0
      %3448 = vmatprep.subr.bf16.mxu0 0
      %3449 = vmatpush1.bf16.msra.mxu0 0
      %3450 = vmatprep.subr.bf16.mxu0 0
      %3451 = vmatpush1.bf16.msra.mxu0 0
      %3452 = vmatprep.subr.bf16.mxu0 0
      %3453 = vmatpush1.bf16.msra.mxu0 0
      %3454 = vmatprep.subr.bf16.mxu0 0
      %3455 = vmatpush1.bf16.msra.mxu0 0
      %3456 = vmatprep.subr.bf16.mxu0 0
      %3457 = vmatpush1.bf16.msra.mxu0 0
      %3458 = vmatprep.subr.bf16.mxu0 0
      %3459 = vmatpush1.bf16.msra.mxu0 0
      %3460 = vmatprep.mubr.bf16.mxu0 0
      %3461 = vmatmul.mubr.bf16.gmra.mrb[0].mxu0 %v3346
      %v3462 = vpop.f32.mrb[0].mxu0
      %v3463 = vadd.f32 %v3099, %v3462
      %v3464 = vpop.f32.mrb[0].mxu0
      %v3465 = vadd.f32 %v3103, %v3464
      %v3466 = vpop.f32.mrb[0].mxu0
      %v3467 = vpop.f32.mrb[0].mxu0
      %3468 = vdwg.mxu0
      %v3469 = vmax.f32 %v3463, 0.0
      %v3470 = vmax.f32 %v3465, 0.0
      %v3471 = vpack.c.bf16 %v3469, %v3469
      %v3472 = vpack.c.bf16 %v3470, %v3470
      %v3473 = vld [vmem:[%s13] sm:$0xf]
      %v3474 = vld [vmem:[%s13 + $0x4] sm:$0xf]
      %v3475 = vld [vmem:[%s13 + $0x8] sm:$0xf]
      %v3476 = vld [vmem:[%s13 + $0xc] sm:$0xf]
      %v3477 = vld [vmem:[%s13 + $0x10] sm:$0xf]
      %v3478 = vld [vmem:[%s13 + $0x14] sm:$0xf]
      %v3479 = vld [vmem:[%s13 + $0x18] sm:$0xf]
      %v3480 = vld [vmem:[%s13 + $0x1c] sm:$0xf]
      %v3481 = vld [vmem:[%s13 + $0x20] sm:$0xf]
      %v3482 = vld [vmem:[%s13 + $0x24] sm:$0xf]
      %v3483 = vld [vmem:[%s13 + $0x28] sm:$0xf]
      %v3484 = vld [vmem:[%s13 + $0x2c] sm:$0xf]
      %v3485 = vld [vmem:[%s13 + $0x30] sm:$0xf]
      %v3486 = vld [vmem:[%s13 + $0x34] sm:$0xf]
      %v3487 = vld [vmem:[%s13 + $0x38] sm:$0xf]
      %v3488 = vld [vmem:[%s13 + $0x3c] sm:$0xf]
      %v3489 = vld [vmem:[%s13 + $0x40] sm:$0xf]
      %v3490 = vld [vmem:[%s13 + $0x44] sm:$0xf]
      %v3491 = vld [vmem:[%s13 + $0x48] sm:$0xf]
      %v3492 = vld [vmem:[%s13 + $0x4c] sm:$0xf]
      %v3493 = vld [vmem:[%s13 + $0x50] sm:$0xf]
      %v3494 = vld [vmem:[%s13 + $0x54] sm:$0xf]
      %v3495 = vld [vmem:[%s13 + $0x58] sm:$0xf]
      %v3496 = vld [vmem:[%s13 + $0x5c] sm:$0xf]
      %v3497 = vld [vmem:[%s13 + $0x60] sm:$0xf]
      %v3498 = vld [vmem:[%s13 + $0x64] sm:$0xf]
      %v3499 = vld [vmem:[%s13 + $0x68] sm:$0xf]
      %v3500 = vld [vmem:[%s13 + $0x6c] sm:$0xf]
      %v3501 = vld [vmem:[%s13 + $0x70] sm:$0xf]
      %v3502 = vld [vmem:[%s13 + $0x74] sm:$0xf]
      %v3503 = vld [vmem:[%s13 + $0x78] sm:$0xf]
      %v3504 = vld [vmem:[%s13 + $0x7c] sm:$0xf]
      %v3505 = vld [vmem:[%s14] sm:$0x1]
      %v3507 = vlaneseq
      %v3508 = vshrl.u32 %v3507, 7
      %v3509 = vsub.s32 0, %v3508
      %v3510 = vrot.slane %v3505, %v3509
      %v3544 = vunpack.c.l.b16 %v3473
      %v3545 = vunpack.c.l.b16 %v3474
      %v3546 = vunpack.c.l.b16 %v3475
      %v3547 = vunpack.c.l.b16 %v3476
      %v3548 = vunpack.c.l.b16 %v3477
      %v3549 = vunpack.c.l.b16 %v3478
      %v3550 = vunpack.c.l.b16 %v3479
      %v3551 = vunpack.c.l.b16 %v3480
      %v3552 = vunpack.c.l.b16 %v3481
      %v3553 = vunpack.c.l.b16 %v3482
      %v3554 = vunpack.c.l.b16 %v3483
      %v3555 = vunpack.c.l.b16 %v3484
      %v3556 = vunpack.c.l.b16 %v3485
      %v3557 = vunpack.c.l.b16 %v3486
      %v3558 = vunpack.c.l.b16 %v3487
      %v3559 = vunpack.c.l.b16 %v3488
      %v3560 = vunpack.c.l.b16 %v3489
      %v3561 = vunpack.c.l.b16 %v3490
      %v3562 = vunpack.c.l.b16 %v3491
      %v3563 = vunpack.c.l.b16 %v3492
      %v3564 = vunpack.c.l.b16 %v3493
      %v3565 = vunpack.c.l.b16 %v3494
      %v3566 = vunpack.c.l.b16 %v3495
      %v3567 = vunpack.c.l.b16 %v3496
      %v3568 = vunpack.c.l.b16 %v3497
      %v3569 = vunpack.c.l.b16 %v3498
      %v3570 = vunpack.c.l.b16 %v3499
      %v3571 = vunpack.c.l.b16 %v3500
      %v3572 = vunpack.c.l.b16 %v3501
      %v3573 = vunpack.c.l.b16 %v3502
      %v3574 = vunpack.c.l.b16 %v3503
      %v3575 = vunpack.c.l.b16 %v3504
      %v3576 = vpack.c.b16 %v3545, %v3544
      %v3577 = vpack.c.b16 %v3547, %v3546
      %v3578 = vpack.c.b16 %v3549, %v3548
      %v3579 = vpack.c.b16 %v3551, %v3550
      %v3580 = vpack.c.b16 %v3553, %v3552
      %v3581 = vpack.c.b16 %v3555, %v3554
      %v3582 = vpack.c.b16 %v3557, %v3556
      %v3583 = vpack.c.b16 %v3559, %v3558
      %v3584 = vpack.c.b16 %v3561, %v3560
      %v3585 = vpack.c.b16 %v3563, %v3562
      %v3586 = vpack.c.b16 %v3565, %v3564
      %v3587 = vpack.c.b16 %v3567, %v3566
      %v3588 = vpack.c.b16 %v3569, %v3568
      %v3589 = vpack.c.b16 %v3571, %v3570
      %v3590 = vpack.c.b16 %v3573, %v3572
      %v3591 = vpack.c.b16 %v3575, %v3574
      %3608 = vmatprep.subr.bf16.mxu0 0
      %3609 = vmatpush1.bf16.msra.mxu0 %v3576
      %3610 = vmatprep.subr.bf16.mxu0 0
      %3611 = vmatpush1.bf16.msra.mxu0 %v3577
      %3612 = vmatprep.subr.bf16.mxu0 0
      %3613 = vmatpush1.bf16.msra.mxu0 %v3578
      %3614 = vmatprep.subr.bf16.mxu0 0
      %3615 = vmatpush1.bf16.msra.mxu0 %v3579
      %3616 = vmatprep.subr.bf16.mxu0 0
      %3617 = vmatpush1.bf16.msra.mxu0 %v3580
      %3618 = vmatprep.subr.bf16.mxu0 0
      %3619 = vmatpush1.bf16.msra.mxu0 %v3581
      %3620 = vmatprep.subr.bf16.mxu0 0
      %3621 = vmatpush1.bf16.msra.mxu0 %v3582
      %3622 = vmatprep.subr.bf16.mxu0 0
      %3623 = vmatpush1.bf16.msra.mxu0 %v3583
      %3624 = vmatprep.subr.bf16.mxu0 0
      %3625 = vmatpush1.bf16.msra.mxu0 %v3584
      %3626 = vmatprep.subr.bf16.mxu0 0
      %3627 = vmatpush1.bf16.msra.mxu0 %v3585
      %3628 = vmatprep.subr.bf16.mxu0 0
      %3629 = vmatpush1.bf16.msra.mxu0 %v3586
      %3630 = vmatprep.subr.bf16.mxu0 0
      %3631 = vmatpush1.bf16.msra.mxu0 %v3587
      %3632 = vmatprep.subr.bf16.mxu0 0
      %3633 = vmatpush1.bf16.msra.mxu0 %v3588
      %3634 = vmatprep.subr.bf16.mxu0 0
      %3635 = vmatpush1.bf16.msra.mxu0 %v3589
      %3636 = vmatprep.subr.bf16.mxu0 0
      %3637 = vmatpush1.bf16.msra.mxu0 %v3590
      %3638 = vmatprep.subr.bf16.mxu0 0
      %3639 = vmatpush1.bf16.msra.mxu0 %v3591
      %3640 = vmatprep.mubr.bf16.mxu0 %v3472
      %3641 = vmatmul.mubr.bf16.gmra.mrb[0].mxu0 %v3471
      %v3642 = vpop.f32.mrb[0].mxu0
      %v3643 = vadd.f32 %v3510, %v3642
      %v3644 = vpop.f32.mrb[0].mxu0
      %v3645 = vpop.f32.mrb[0].mxu0
      %v3646 = vpop.f32.mrb[0].mxu0
      %3647 = vdwg.mxu0
      %vm3648 = vcmask 123904
      %3649 = vst.msk [vmem:[#allocation3] sm:$0x3] %vm3648, %v3643
    $region69: #{pointnet_forward.1} parent=1 // pred_fallthru
      _
    // Predicated region
    $region70: #{pointnet_forward.1} parent=1 // pred_check
      _
    $region71: #{pointnet_forward.1} parent=1 // pred_check_branch
      %3651 = sbr.rel (0) target = $region73
    $region72: #{pointnet_forward.1} parent=1 // pred_region
      %s3653 = ssub.s32 32, 32
      %3654 = vsyncadd [#allocation4], %s3653
      %s3656 = sshll.u32 [#allocation3], 4
      %s3657 = int_to_ptr.vmem [resolvable:$true] %s3656
      %3659 = dma.vmem_to_hbm [thread:$0]  %s3657, 32, %s15, [#allocation4]
    $region73: #{pointnet_forward.1} parent=1 // pred_fallthru
      _
    // Predicated region
    $region74: #{pointnet_forward.1} parent=1 // pred_check
      _
    $region75: #{pointnet_forward.1} parent=1 // pred_check_branch
      %3661 = sbr.rel (0) target = $region77
    $region76: #{pointnet_forward.1} parent=1 // pred_region
      %3662 = dma.done [#allocation4], 32
    $region77: #{pointnet_forward.1} parent=1 // pred_fallthru
      _
    %3663 = vsyncpa [#allocation4], 1

</llo_original>
